<compile_context>
chip_gen: v6e
topology: v6e:2x2x1
jax: 0.10.0
libtpu: 0.0.40
codegen_flags: <defaults>
</compile_context>

<pallas_src>
import jax
import jax.numpy as jnp
from jax.experimental import pallas as pl
from jax.experimental.pallas import tpu as pltpu


def make_fused_kernel(stage_cfg, fin_c):
    """Build the fused kernel for a static stage configuration.

    stage_cfg: tuple of (cin, cout, K, L) per CNN stage (static Python ints).
    fin_c:     channel count feeding the final Linear (static).

    Kernel ref order:
      x_ref,
      [wf, bias, gamma, beta, sel_even, sel_odd]  per stage,
      w3, b3,                 (final Linear, out dim padded to 128 lanes)
      o_ref,                  (B,1,co_pad) output block (1,1,co_pad)
      [stack scratch]         one (K*cin, L) VMEM scratch per stage
    """
    num = len(stage_cfg)

    def kernel(*args):
        x_ref = args[0]
        w3_ref = args[1 + 6 * num]
        b3_ref = args[2 + 6 * num]
        o_ref = args[3 + 6 * num]
        stack_refs = args[4 + 6 * num:]

        h = x_ref[0]                                     # (1, L0) first-stage input
        for s, (cin, cout, K, L) in enumerate(stage_cfg):
            wf_ref, b_ref, g_ref, bt_ref, se_ref, so_ref = args[1 + 6 * s: 7 + 6 * s]
            stack_ref = stack_refs[s]
            pad_l = (K - 1) // 2          # odd K -> symmetric PyTorch 'same' padding

            # ---- Conv1d('same') as ONE dot: stage a (K*cin, L) operand in VMEM.
            # Zeroing the scratch provides the zero padding at the edges.
            stack_ref[...] = jnp.zeros_like(stack_ref)
            for k in range(K):                            # K is small & static
                sh = k - pad_l
                if sh <= 0:
                    stack_ref[k * cin:(k + 1) * cin, -sh:L] = h[:, 0:L + sh]
                else:
                    stack_ref[k * cin:(k + 1) * cin, 0:L - sh] = h[:, sh:L]
            conv = jnp.dot(wf_ref[...], stack_ref[...],
                           preferred_element_type=jnp.float32) + b_ref[...]

            # ---- LayerNorm over the length dim (torch nn.LayerNorm(L), eps=1e-5).
            mean = jnp.mean(conv, axis=-1, keepdims=True)
            cent = conv - mean
            var = jnp.mean(cent * cent, axis=-1, keepdims=True)
            y = cent * jax.lax.rsqrt(var + 1e-5) * g_ref[...] + bt_ref[...]

            # ---- MaxPool1d(2): exact 0/1 selection matmuls with precomputed,
            # VMEM-resident masks (adding zeros / multiplying by 1.0 is exact).
            even = jnp.dot(y, se_ref[...], preferred_element_type=jnp.float32)
            odd = jnp.dot(y, so_ref[...], preferred_element_type=jnp.float32)
            h = jnp.maximum(even, odd)                    # (cout, L // 2)
            # nn.Dropout(0.1): identity at inference.

        # ---- Flatten (channel-major) + Linear + exact erf GELU, lane-dense out.
        acc = b3_ref[...]                                 # (1, co_pad)
        for c in range(fin_c):                            # static unroll (8 dots)
            acc = acc + jnp.dot(h[c:c + 1, :], w3_ref[c],
                                preferred_element_type=jnp.float32)
        inv_sqrt2 = 0.7071067811865476
        o_ref[0] = 0.5 * acc * (1.0 + jax.lax.erf(acc * inv_sqrt2))
        # nn.Dropout(0.1): identity at inference.

    return kernel


@jax.jit
def bruce_cnn_cell_forward(inputs, params):
    """inputs: (B, F) -> (B, core_out).  Matches BruceCNNCell.forward (eval mode)."""
    B, F = inputs.shape
    x = inputs.astype(jnp.float32).reshape(B, 1, F)       # torch: reshape(b,1,f).float()

    stage_cfg = []
    flat_args = [x]
    in_specs = [pl.BlockSpec((1, 1, F), lambda i: (i, 0, 0))]

    cin, L = 1, F
    for (w, b, g, bt) in params["cnn"]:
        cout, _, K = w.shape
        Lh = L // 2
        # Conv weight flattened to [cout, k*cin + ci] to match the staged operand.
        wf = jnp.transpose(w, (0, 2, 1)).reshape(cout, K * cin)
        # Precomputed (hoisted) MaxPool selection matrices: even / odd columns.
        rows = jax.lax.broadcasted_iota(jnp.int32, (L, Lh), 0)
        cols = jax.lax.broadcasted_iota(jnp.int32, (L, Lh), 1)
        se = (rows == 2 * cols).astype(jnp.float32)
        so = (rows == 2 * cols + 1).astype(jnp.float32)

        stage_args = [wf, b.reshape(cout, 1), g.reshape(1, L), bt.reshape(1, L), se, so]
        flat_args += stage_args
        in_specs += [pl.BlockSpec(a.shape, lambda i: (0, 0)) for a in stage_args]

        stage_cfg.append((cin, cout, K, L))
        cin, L = cout, Lh

    # Final Linear: pad out-features to a multiple of 128 for lane-dense stores,
    # and reshape the weight to (C, Lh, co_pad) so no in-kernel flatten is needed.
    core_out = params["b_out"].shape[0]
    fin_c, fin_l = cin, L
    w_out = params["w_out"]                                # (core_out, fin_c*fin_l)
    assert w_out.shape == (core_out, fin_c * fin_l)
    co_pad = ((core_out + 127) // 128) * 128
    w_pad = jnp.zeros((co_pad, fin_c * fin_l), jnp.float32).at[:core_out].set(w_out)
    w3 = jnp.transpose(w_pad.reshape(co_pad, fin_c, fin_l), (1, 2, 0))  # (C, Lh, co_pad)
    b3 = jnp.zeros((1, co_pad), jnp.float32).at[0, :core_out].set(params["b_out"])
    flat_args += [w3, b3]
    in_specs += [pl.BlockSpec(w3.shape, lambda i: (0, 0, 0)),
                 pl.BlockSpec(b3.shape, lambda i: (0, 0))]

    kernel = make_fused_kernel(tuple(stage_cfg), fin_c)
    out = pl.pallas_call(
        kernel,
        out_shape=jax.ShapeDtypeStruct((B, 1, co_pad), jnp.float32),
        grid=(B,),
        in_specs=in_specs,
        out_specs=pl.BlockSpec((1, 1, co_pad), lambda i: (i, 0, 0)),
        scratch_shapes=[pltpu.VMEM((K * ci, Li), jnp.float32)
                        for (ci, co, K, Li) in stage_cfg],
        compiler_params=pltpu.CompilerParams(
            dimension_semantics=("parallel",)),
    )(*flat_args)
    return out[:, 0, :core_out]


def init_params(key, *, num_cnn, kernel_size, output_channel, core_out, feat=524):
    assert num_cnn <= len(kernel_size)
    params = {"cnn": []}
    out_c = feat
    cin = 1
    for i in range(num_cnn):
        cout = output_channel[i]
        k = kernel_size[i]
        key, kw, kb, kg, kbt = jax.random.split(key, 5)
        w = 0.1 * jax.random.normal(kw, (cout, cin, k), jnp.float32)
        b = 0.1 * jax.random.normal(kb, (cout,), jnp.float32)
        gamma = 1.0 + 0.1 * jax.random.normal(kg, (out_c,), jnp.float32)
        beta = 0.1 * jax.random.normal(kbt, (out_c,), jnp.float32)
        params["cnn"].append((w, b, gamma, beta))
        cin = cout
        out_c = out_c // 2
    fin = output_channel[num_cnn - 1] * out_c
    key, kw, kb = jax.random.split(key, 3)
    params["w_out"] = 0.05 * jax.random.normal(kw, (core_out, fin), jnp.float32)
    params["b_out"] = 0.05 * jax.random.normal(kb, (core_out,), jnp.float32)
    return params


def reference_forward(inputs, params):
    """Pure-XLA reference with identical semantics (for correctness check)."""
    h = inputs.astype(jnp.float32)[:, None, :]
    for (w, b, g, bt) in params["cnn"]:
        h = jax.lax.conv_general_dilated(
            h, w, window_strides=(1,), padding="SAME",
            dimension_numbers=("NCH", "OIH", "NCH"))
        h = h + b[None, :, None]
        mean = jnp.mean(h, axis=-1, keepdims=True)
        var = jnp.mean((h - mean) ** 2, axis=-1, keepdims=True)
        h = (h - mean) * jax.lax.rsqrt(var + 1e-5) * g[None, None, :] + bt[None, None, :]
        Bb, C, L = h.shape
        h = h[..., : (L // 2) * 2].reshape(Bb, C, L // 2, 2).max(axis=-1)
    flat = h.reshape(h.shape[0], -1)
    z = flat @ params["w_out"].T + params["b_out"][None, :]
    return 0.5 * z * (1.0 + jax.lax.erf(z * 0.7071067811865476))


if __name__ == "__main__":
    # F must be 524: nn.LayerNorm(out_c=524) is hard-coded in BruceCNNCell.
    cfg = dict(num_cnn=2, kernel_size=(3, 5), output_channel=(4, 8), core_out=32)
    B, F = 2, 524

    key = jax.random.PRNGKey(0)
    key_x, key_p = jax.random.split(key)
    params = init_params(key_p, **cfg)
    x = jax.random.normal(key_x, (B, F), jnp.float32)

    out = bruce_cnn_cell_forward(x, params)
    out = jax.block_until_ready(out)

    assert out.shape == (B, cfg["core_out"]), out.shape
    assert bool(jnp.all(jnp.isfinite(out)))

    # Loose tolerance: both paths run f32 matmuls through MXU bf16 passes with
    # different summation orders; structural errors would be O(1) or larger.
    ref = reference_forward(x, params)
    max_err = float(jnp.max(jnp.abs(out - ref)))
    assert max_err < 1e-1, f"mismatch vs reference: {max_err}"
    print("KERNEL_OK")
</pallas_src>

<mosaic_0001>
module attributes {stable_mosaic.version = 11 : i64} {
  func.func @kernel(%arg0: i32, %arg1: memref<1x1x524xf32, #tpu.memory_space<vmem>>, %arg2: memref<4x3xf32, #tpu.memory_space<vmem>>, %arg3: memref<4x1xf32, #tpu.memory_space<vmem>>, %arg4: memref<1x524xf32, #tpu.memory_space<vmem>>, %arg5: memref<1x524xf32, #tpu.memory_space<vmem>>, %arg6: memref<524x262xf32, #tpu.memory_space<vmem>>, %arg7: memref<524x262xf32, #tpu.memory_space<vmem>>, %arg8: memref<8x20xf32, #tpu.memory_space<vmem>>, %arg9: memref<8x1xf32, #tpu.memory_space<vmem>>, %arg10: memref<1x262xf32, #tpu.memory_space<vmem>>, %arg11: memref<1x262xf32, #tpu.memory_space<vmem>>, %arg12: memref<262x131xf32, #tpu.memory_space<vmem>>, %arg13: memref<262x131xf32, #tpu.memory_space<vmem>>, %arg14: memref<8x131x128xf32, #tpu.memory_space<vmem>>, %arg15: memref<1x128xf32, #tpu.memory_space<vmem>>, %arg16: memref<1x1x128xf32, #tpu.memory_space<vmem>>, %arg17: memref<3x524xf32, #tpu.memory_space<vmem>>, %arg18: memref<20x262xf32, #tpu.memory_space<vmem>>) attributes {dimension_semantics = [#tpu.dimension_semantics<parallel>], iteration_bounds = array<i64: 2>, scalar_prefetch = 0 : i64, scratch_operands = 2 : i64, tpu.core_type = #tpu.core_type<tc>, window_params = [{transform_indices = @transform_0, window_bounds = array<i64: 1, 1, 524>}, {pipeline_mode = #tpu.pipeline_mode<synchronous>, transform_indices = @transform_1, window_bounds = array<i64: 4, 3>}, {pipeline_mode = #tpu.pipeline_mode<synchronous>, transform_indices = @transform_2, window_bounds = array<i64: 4, 1>}, {pipeline_mode = #tpu.pipeline_mode<synchronous>, transform_indices = @transform_3, window_bounds = array<i64: 1, 524>}, {pipeline_mode = #tpu.pipeline_mode<synchronous>, transform_indices = @transform_4, window_bounds = array<i64: 1, 524>}, {pipeline_mode = #tpu.pipeline_mode<synchronous>, transform_indices = @transform_5, window_bounds = array<i64: 524, 262>}, {pipeline_mode = #tpu.pipeline_mode<synchronous>, transform_indices = @transform_6, window_bounds = array<i64: 524, 262>}, {pipeline_mode = #tpu.pipeline_mode<synchronous>, transform_indices = @transform_7, window_bounds = array<i64: 8, 20>}, {pipeline_mode = #tpu.pipeline_mode<synchronous>, transform_indices = @transform_8, window_bounds = array<i64: 8, 1>}, {pipeline_mode = #tpu.pipeline_mode<synchronous>, transform_indices = @transform_9, window_bounds = array<i64: 1, 262>}, {pipeline_mode = #tpu.pipeline_mode<synchronous>, transform_indices = @transform_10, window_bounds = array<i64: 1, 262>}, {pipeline_mode = #tpu.pipeline_mode<synchronous>, transform_indices = @transform_11, window_bounds = array<i64: 262, 131>}, {pipeline_mode = #tpu.pipeline_mode<synchronous>, transform_indices = @transform_12, window_bounds = array<i64: 262, 131>}, {pipeline_mode = #tpu.pipeline_mode<synchronous>, transform_indices = @transform_13, window_bounds = array<i64: 8, 131, 128>}, {pipeline_mode = #tpu.pipeline_mode<synchronous>, transform_indices = @transform_14, window_bounds = array<i64: 1, 128>}, {transform_indices = @transform_15, window_bounds = array<i64: 1, 1, 128>}]} {
    %c0 = arith.constant 0 : index
    %c0_0 = arith.constant 0 : index
    %c0_1 = arith.constant 0 : index
    %0 = vector.load %arg1[%c0, %c0_0, %c0_1] : memref<1x1x524xf32, #tpu.memory_space<vmem>>, vector<1x1x524xf32>
    %1 = vector.shape_cast %0 : vector<1x1x524xf32> to vector<1x524xf32>
    %cst = arith.constant 0.000000e+00 : f32
    %2 = vector.broadcast %cst : f32 to vector<3x524xf32>
    %c0_2 = arith.constant 0 : index
    %c0_3 = arith.constant 0 : index
    %3 = vector.load %arg17[%c0_2, %c0_3] : memref<3x524xf32, #tpu.memory_space<vmem>>, vector<3x524xf32>
    tpu.vector_store %arg17[%c0_2, %c0_3], %2 {strides = array<i32>} : memref<3x524xf32, #tpu.memory_space<vmem>>, vector<3x524xf32>,
    %4 = vector.extract_strided_slice %1 {offsets = [0, 0], sizes = [1, 523], strides = [1, 1]} : vector<1x524xf32> to vector<1x523xf32>
    %c0_4 = arith.constant 0 : index
    %c1 = arith.constant 1 : index
    %5 = vector.load %arg17[%c0_4, %c1] : memref<3x524xf32, #tpu.memory_space<vmem>>, vector<1x523xf32>
    tpu.vector_store %arg17[%c0_4, %c1], %4 {strides = array<i32>} : memref<3x524xf32, #tpu.memory_space<vmem>>, vector<1x523xf32>,
    %c1_5 = arith.constant 1 : index
    %c0_6 = arith.constant 0 : index
    %6 = vector.load %arg17[%c1_5, %c0_6] : memref<3x524xf32, #tpu.memory_space<vmem>>, vector<1x524xf32>
    tpu.vector_store %arg17[%c1_5, %c0_6], %1 {strides = array<i32>} : memref<3x524xf32, #tpu.memory_space<vmem>>, vector<1x524xf32>,
    %7 = vector.extract_strided_slice %1 {offsets = [0, 1], sizes = [1, 523], strides = [1, 1]} : vector<1x524xf32> to vector<1x523xf32>
    %c2 = arith.constant 2 : index
    %c0_7 = arith.constant 0 : index
    %8 = vector.load %arg17[%c2, %c0_7] : memref<3x524xf32, #tpu.memory_space<vmem>>, vector<1x523xf32>
    tpu.vector_store %arg17[%c2, %c0_7], %7 {strides = array<i32>} : memref<3x524xf32, #tpu.memory_space<vmem>>, vector<1x523xf32>,
    %c0_8 = arith.constant 0 : index
    %c0_9 = arith.constant 0 : index
    %9 = vector.load %arg2[%c0_8, %c0_9] : memref<4x3xf32, #tpu.memory_space<vmem>>, vector<4x3xf32>
    %c0_10 = arith.constant 0 : index
    %c0_11 = arith.constant 0 : index
    %10 = vector.load %arg17[%c0_10, %c0_11] : memref<3x524xf32, #tpu.memory_space<vmem>>, vector<3x524xf32>
    %cst_12 = arith.constant dense<0.000000e+00> : vector<4x524xf32>
    %11 = tpu.matmul %9, %10, %cst_12 {dimension_numbers = #tpu.dot_dimension_numbers<[1], [0], [0], [1], [0, 0, 1, 1], [], []>} : vector<4x3xf32>, vector<3x524xf32>, vector<4x524xf32> -> vector<4x524xf32>
    %c0_13 = arith.constant 0 : index
    %c0_14 = arith.constant 0 : index
    %12 = vector.load %arg3[%c0_13, %c0_14] : memref<4x1xf32, #tpu.memory_space<vmem>>, vector<4x1xf32>
    %13 = vector.broadcast %12 : vector<4x1xf32> to vector<4x524xf32>
    %14 = arith.addf %11, %13 : vector<4x524xf32>
    %cst_15 = arith.constant dense<0.000000e+00> : vector<4xf32>
    %15 = vector.multi_reduction <add>, %14, %cst_15 [1] : vector<4x524xf32> to vector<4xf32>
    %16 = vector.shape_cast %15 : vector<4xf32> to vector<4x1xf32>
    %cst_16 = arith.constant 5.240000e+02 : f32
    %17 = vector.broadcast %cst_16 : f32 to vector<4x1xf32>
    %18 = arith.divf %16, %17 : vector<4x1xf32>
    %19 = vector.broadcast %18 : vector<4x1xf32> to vector<4x524xf32>
    %20 = arith.subf %14, %19 : vector<4x524xf32>
    %21 = arith.mulf %20, %20 : vector<4x524xf32>
    %cst_17 = arith.constant dense<0.000000e+00> : vector<4xf32>
    %22 = vector.multi_reduction <add>, %21, %cst_17 [1] : vector<4x524xf32> to vector<4xf32>
    %23 = vector.shape_cast %22 : vector<4xf32> to vector<4x1xf32>
    %cst_18 = arith.constant 5.240000e+02 : f32
    %24 = vector.broadcast %cst_18 : f32 to vector<4x1xf32>
    %25 = arith.divf %23, %24 : vector<4x1xf32>
    %cst_19 = arith.constant 9.99999974E-6 : f32
    %26 = vector.broadcast %cst_19 : f32 to vector<4x1xf32>
    %27 = arith.addf %25, %26 : vector<4x1xf32>
    %28 = math.rsqrt %27 : vector<4x1xf32>
    %29 = vector.broadcast %28 : vector<4x1xf32> to vector<4x524xf32>
    %30 = arith.mulf %20, %29 : vector<4x524xf32>
    %c0_20 = arith.constant 0 : index
    %c0_21 = arith.constant 0 : index
    %31 = vector.load %arg4[%c0_20, %c0_21] : memref<1x524xf32, #tpu.memory_space<vmem>>, vector<1x524xf32>
    %32 = vector.broadcast %31 : vector<1x524xf32> to vector<4x524xf32>
    %33 = arith.mulf %30, %32 : vector<4x524xf32>
    %c0_22 = arith.constant 0 : index
    %c0_23 = arith.constant 0 : index
    %34 = vector.load %arg5[%c0_22, %c0_23] : memref<1x524xf32, #tpu.memory_space<vmem>>, vector<1x524xf32>
    %35 = vector.broadcast %34 : vector<1x524xf32> to vector<4x524xf32>
    %36 = arith.addf %33, %35 : vector<4x524xf32>
    %c0_24 = arith.constant 0 : index
    %c0_25 = arith.constant 0 : index
    %37 = vector.load %arg6[%c0_24, %c0_25] : memref<524x262xf32, #tpu.memory_space<vmem>>, vector<524x262xf32>
    %cst_26 = arith.constant dense<0.000000e+00> : vector<4x262xf32>
    %38 = tpu.matmul %36, %37, %cst_26 {dimension_numbers = #tpu.dot_dimension_numbers<[1], [0], [0], [1], [0, 0, 1, 1], [], []>} : vector<4x524xf32>, vector<524x262xf32>, vector<4x262xf32> -> vector<4x262xf32>
    %c0_27 = arith.constant 0 : index
    %c0_28 = arith.constant 0 : index
    %39 = vector.load %arg7[%c0_27, %c0_28] : memref<524x262xf32, #tpu.memory_space<vmem>>, vector<524x262xf32>
    %cst_29 = arith.constant dense<0.000000e+00> : vector<4x262xf32>
    %40 = tpu.matmul %36, %39, %cst_29 {dimension_numbers = #tpu.dot_dimension_numbers<[1], [0], [0], [1], [0, 0, 1, 1], [], []>} : vector<4x524xf32>, vector<524x262xf32>, vector<4x262xf32> -> vector<4x262xf32>
    %41 = arith.maximumf %38, %40 : vector<4x262xf32>
    %cst_30 = arith.constant 0.000000e+00 : f32
    %42 = vector.broadcast %cst_30 : f32 to vector<20x262xf32>
    %c0_31 = arith.constant 0 : index
    %c0_32 = arith.constant 0 : index
    %43 = vector.load %arg18[%c0_31, %c0_32] : memref<20x262xf32, #tpu.memory_space<vmem>>, vector<20x262xf32>
    tpu.vector_store %arg18[%c0_31, %c0_32], %42 {strides = array<i32>} : memref<20x262xf32, #tpu.memory_space<vmem>>, vector<20x262xf32>,
    %44 = vector.extract_strided_slice %41 {offsets = [0, 0], sizes = [4, 260], strides = [1, 1]} : vector<4x262xf32> to vector<4x260xf32>
    %c0_33 = arith.constant 0 : index
    %c2_34 = arith.constant 2 : index
    %45 = vector.load %arg18[%c0_33, %c2_34] : memref<20x262xf32, #tpu.memory_space<vmem>>, vector<4x260xf32>
    tpu.vector_store %arg18[%c0_33, %c2_34], %44 {strides = array<i32>} : memref<20x262xf32, #tpu.memory_space<vmem>>, vector<4x260xf32>,
    %46 = vector.extract_strided_slice %41 {offsets = [0, 0], sizes = [4, 261], strides = [1, 1]} : vector<4x262xf32> to vector<4x261xf32>
    %c4 = arith.constant 4 : index
    %c1_35 = arith.constant 1 : index
    %47 = vector.load %arg18[%c4, %c1_35] : memref<20x262xf32, #tpu.memory_space<vmem>>, vector<4x261xf32>
    tpu.vector_store %arg18[%c4, %c1_35], %46 {strides = array<i32>} : memref<20x262xf32, #tpu.memory_space<vmem>>, vector<4x261xf32>,
    %c8 = arith.constant 8 : index
    %c0_36 = arith.constant 0 : index
    %48 = vector.load %arg18[%c8, %c0_36] : memref<20x262xf32, #tpu.memory_space<vmem>>, vector<4x262xf32>
    tpu.vector_store %arg18[%c8, %c0_36], %41 {strides = array<i32>} : memref<20x262xf32, #tpu.memory_space<vmem>>, vector<4x262xf32>,
    %49 = vector.extract_strided_slice %41 {offsets = [0, 1], sizes = [4, 261], strides = [1, 1]} : vector<4x262xf32> to vector<4x261xf32>
    %c12 = arith.constant 12 : index
    %c0_37 = arith.constant 0 : index
    %50 = vector.load %arg18[%c12, %c0_37] : memref<20x262xf32, #tpu.memory_space<vmem>>, vector<4x261xf32>
    tpu.vector_store %arg18[%c12, %c0_37], %49 {strides = array<i32>} : memref<20x262xf32, #tpu.memory_space<vmem>>, vector<4x261xf32>,
    %51 = vector.extract_strided_slice %41 {offsets = [0, 2], sizes = [4, 260], strides = [1, 1]} : vector<4x262xf32> to vector<4x260xf32>
    %c16 = arith.constant 16 : index
    %c0_38 = arith.constant 0 : index
    %52 = vector.load %arg18[%c16, %c0_38] : memref<20x262xf32, #tpu.memory_space<vmem>>, vector<4x260xf32>
    tpu.vector_store %arg18[%c16, %c0_38], %51 {strides = array<i32>} : memref<20x262xf32, #tpu.memory_space<vmem>>, vector<4x260xf32>,
    %c0_39 = arith.constant 0 : index
    %c0_40 = arith.constant 0 : index
    %53 = vector.load %arg8[%c0_39, %c0_40] : memref<8x20xf32, #tpu.memory_space<vmem>>, vector<8x20xf32>
    %c0_41 = arith.constant 0 : index
    %c0_42 = arith.constant 0 : index
    %54 = vector.load %arg18[%c0_41, %c0_42] : memref<20x262xf32, #tpu.memory_space<vmem>>, vector<20x262xf32>
    %cst_43 = arith.constant dense<0.000000e+00> : vector<8x262xf32>
    %55 = tpu.matmul %53, %54, %cst_43 {dimension_numbers = #tpu.dot_dimension_numbers<[1], [0], [0], [1], [0, 0, 1, 1], [], []>} : vector<8x20xf32>, vector<20x262xf32>, vector<8x262xf32> -> vector<8x262xf32>
    %c0_44 = arith.constant 0 : index
    %c0_45 = arith.constant 0 : index
    %56 = vector.load %arg9[%c0_44, %c0_45] : memref<8x1xf32, #tpu.memory_space<vmem>>, vector<8x1xf32>
    %57 = vector.broadcast %56 : vector<8x1xf32> to vector<8x262xf32>
    %58 = arith.addf %55, %57 : vector<8x262xf32>
    %cst_46 = arith.constant dense<0.000000e+00> : vector<8xf32>
    %59 = vector.multi_reduction <add>, %58, %cst_46 [1] : vector<8x262xf32> to vector<8xf32>
    %60 = vector.shape_cast %59 : vector<8xf32> to vector<8x1xf32>
    %cst_47 = arith.constant 2.620000e+02 : f32
    %61 = vector.broadcast %cst_47 : f32 to vector<8x1xf32>
    %62 = arith.divf %60, %61 : vector<8x1xf32>
    %63 = vector.broadcast %62 : vector<8x1xf32> to vector<8x262xf32>
    %64 = arith.subf %58, %63 : vector<8x262xf32>
    %65 = arith.mulf %64, %64 : vector<8x262xf32>
    %cst_48 = arith.constant dense<0.000000e+00> : vector<8xf32>
    %66 = vector.multi_reduction <add>, %65, %cst_48 [1] : vector<8x262xf32> to vector<8xf32>
    %67 = vector.shape_cast %66 : vector<8xf32> to vector<8x1xf32>
    %cst_49 = arith.constant 2.620000e+02 : f32
    %68 = vector.broadcast %cst_49 : f32 to vector<8x1xf32>
    %69 = arith.divf %67, %68 : vector<8x1xf32>
    %cst_50 = arith.constant 9.99999974E-6 : f32
    %70 = vector.broadcast %cst_50 : f32 to vector<8x1xf32>
    %71 = arith.addf %69, %70 : vector<8x1xf32>
    %72 = math.rsqrt %71 : vector<8x1xf32>
    %73 = vector.broadcast %72 : vector<8x1xf32> to vector<8x262xf32>
    %74 = arith.mulf %64, %73 : vector<8x262xf32>
    %c0_51 = arith.constant 0 : index
    %c0_52 = arith.constant 0 : index
    %75 = vector.load %arg10[%c0_51, %c0_52] : memref<1x262xf32, #tpu.memory_space<vmem>>, vector<1x262xf32>
    %76 = vector.broadcast %75 : vector<1x262xf32> to vector<8x262xf32>
    %77 = arith.mulf %74, %76 : vector<8x262xf32>
    %c0_53 = arith.constant 0 : index
    %c0_54 = arith.constant 0 : index
    %78 = vector.load %arg11[%c0_53, %c0_54] : memref<1x262xf32, #tpu.memory_space<vmem>>, vector<1x262xf32>
    %79 = vector.broadcast %78 : vector<1x262xf32> to vector<8x262xf32>
    %80 = arith.addf %77, %79 : vector<8x262xf32>
    %c0_55 = arith.constant 0 : index
    %c0_56 = arith.constant 0 : index
    %81 = vector.load %arg12[%c0_55, %c0_56] : memref<262x131xf32, #tpu.memory_space<vmem>>, vector<262x131xf32>
    %cst_57 = arith.constant dense<0.000000e+00> : vector<8x131xf32>
    %82 = tpu.matmul %80, %81, %cst_57 {dimension_numbers = #tpu.dot_dimension_numbers<[1], [0], [0], [1], [0, 0, 1, 1], [], []>} : vector<8x262xf32>, vector<262x131xf32>, vector<8x131xf32> -> vector<8x131xf32>
    %c0_58 = arith.constant 0 : index
    %c0_59 = arith.constant 0 : index
    %83 = vector.load %arg13[%c0_58, %c0_59] : memref<262x131xf32, #tpu.memory_space<vmem>>, vector<262x131xf32>
    %cst_60 = arith.constant dense<0.000000e+00> : vector<8x131xf32>
    %84 = tpu.matmul %80, %83, %cst_60 {dimension_numbers = #tpu.dot_dimension_numbers<[1], [0], [0], [1], [0, 0, 1, 1], [], []>} : vector<8x262xf32>, vector<262x131xf32>, vector<8x131xf32> -> vector<8x131xf32>
    %85 = arith.maximumf %82, %84 : vector<8x131xf32>
    %c0_61 = arith.constant 0 : index
    %c0_62 = arith.constant 0 : index
    %86 = vector.load %arg15[%c0_61, %c0_62] : memref<1x128xf32, #tpu.memory_space<vmem>>, vector<1x128xf32>
    %87 = vector.extract_strided_slice %85 {offsets = [0, 0], sizes = [1, 131], strides = [1, 1]} : vector<8x131xf32> to vector<1x131xf32>
    %c0_63 = arith.constant 0 : index
    %c0_64 = arith.constant 0 : index
    %c0_65 = arith.constant 0 : index
    %88 = vector.load %arg14[%c0_63, %c0_64, %c0_65] : memref<8x131x128xf32, #tpu.memory_space<vmem>>, vector<1x131x128xf32>
    %89 = vector.shape_cast %88 : vector<1x131x128xf32> to vector<131x128xf32>
    %cst_66 = arith.constant dense<0.000000e+00> : vector<1x128xf32>
    %90 = tpu.matmul %87, %89, %cst_66 {dimension_numbers = #tpu.dot_dimension_numbers<[1], [0], [0], [1], [0, 0, 1, 1], [], []>} : vector<1x131xf32>, vector<131x128xf32>, vector<1x128xf32> -> vector<1x128xf32>
    %91 = arith.addf %86, %90 : vector<1x128xf32>
    %92 = vector.extract_strided_slice %85 {offsets = [1, 0], sizes = [1, 131], strides = [1, 1]} : vector<8x131xf32> to vector<1x131xf32>
    %c1_67 = arith.constant 1 : index
    %c0_68 = arith.constant 0 : index
    %c0_69 = arith.constant 0 : index
    %93 = vector.load %arg14[%c1_67, %c0_68, %c0_69] : memref<8x131x128xf32, #tpu.memory_space<vmem>>, vector<1x131x128xf32>
    %94 = vector.shape_cast %93 : vector<1x131x128xf32> to vector<131x128xf32>
    %cst_70 = arith.constant dense<0.000000e+00> : vector<1x128xf32>
    %95 = tpu.matmul %92, %94, %cst_70 {dimension_numbers = #tpu.dot_dimension_numbers<[1], [0], [0], [1], [0, 0, 1, 1], [], []>} : vector<1x131xf32>, vector<131x128xf32>, vector<1x128xf32> -> vector<1x128xf32>
    %96 = arith.addf %91, %95 : vector<1x128xf32>
    %97 = vector.extract_strided_slice %85 {offsets = [2, 0], sizes = [1, 131], strides = [1, 1]} : vector<8x131xf32> to vector<1x131xf32>
    %c2_71 = arith.constant 2 : index
    %c0_72 = arith.constant 0 : index
    %c0_73 = arith.constant 0 : index
    %98 = vector.load %arg14[%c2_71, %c0_72, %c0_73] : memref<8x131x128xf32, #tpu.memory_space<vmem>>, vector<1x131x128xf32>
    %99 = vector.shape_cast %98 : vector<1x131x128xf32> to vector<131x128xf32>
    %cst_74 = arith.constant dense<0.000000e+00> : vector<1x128xf32>
    %100 = tpu.matmul %97, %99, %cst_74 {dimension_numbers = #tpu.dot_dimension_numbers<[1], [0], [0], [1], [0, 0, 1, 1], [], []>} : vector<1x131xf32>, vector<131x128xf32>, vector<1x128xf32> -> vector<1x128xf32>
    %101 = arith.addf %96, %100 : vector<1x128xf32>
    %102 = vector.extract_strided_slice %85 {offsets = [3, 0], sizes = [1, 131], strides = [1, 1]} : vector<8x131xf32> to vector<1x131xf32>
    %c3 = arith.constant 3 : index
    %c0_75 = arith.constant 0 : index
    %c0_76 = arith.constant 0 : index
    %103 = vector.load %arg14[%c3, %c0_75, %c0_76] : memref<8x131x128xf32, #tpu.memory_space<vmem>>, vector<1x131x128xf32>
    %104 = vector.shape_cast %103 : vector<1x131x128xf32> to vector<131x128xf32>
    %cst_77 = arith.constant dense<0.000000e+00> : vector<1x128xf32>
    %105 = tpu.matmul %102, %104, %cst_77 {dimension_numbers = #tpu.dot_dimension_numbers<[1], [0], [0], [1], [0, 0, 1, 1], [], []>} : vector<1x131xf32>, vector<131x128xf32>, vector<1x128xf32> -> vector<1x128xf32>
    %106 = arith.addf %101, %105 : vector<1x128xf32>
    %107 = vector.extract_strided_slice %85 {offsets = [4, 0], sizes = [1, 131], strides = [1, 1]} : vector<8x131xf32> to vector<1x131xf32>
    %c4_78 = arith.constant 4 : index
    %c0_79 = arith.constant 0 : index
    %c0_80 = arith.constant 0 : index
    %108 = vector.load %arg14[%c4_78, %c0_79, %c0_80] : memref<8x131x128xf32, #tpu.memory_space<vmem>>, vector<1x131x128xf32>
    %109 = vector.shape_cast %108 : vector<1x131x128xf32> to vector<131x128xf32>
    %cst_81 = arith.constant dense<0.000000e+00> : vector<1x128xf32>
    %110 = tpu.matmul %107, %109, %cst_81 {dimension_numbers = #tpu.dot_dimension_numbers<[1], [0], [0], [1], [0, 0, 1, 1], [], []>} : vector<1x131xf32>, vector<131x128xf32>, vector<1x128xf32> -> vector<1x128xf32>
    %111 = arith.addf %106, %110 : vector<1x128xf32>
    %112 = vector.extract_strided_slice %85 {offsets = [5, 0], sizes = [1, 131], strides = [1, 1]} : vector<8x131xf32> to vector<1x131xf32>
    %c5 = arith.constant 5 : index
    %c0_82 = arith.constant 0 : index
    %c0_83 = arith.constant 0 : index
    %113 = vector.load %arg14[%c5, %c0_82, %c0_83] : memref<8x131x128xf32, #tpu.memory_space<vmem>>, vector<1x131x128xf32>
    %114 = vector.shape_cast %113 : vector<1x131x128xf32> to vector<131x128xf32>
    %cst_84 = arith.constant dense<0.000000e+00> : vector<1x128xf32>
    %115 = tpu.matmul %112, %114, %cst_84 {dimension_numbers = #tpu.dot_dimension_numbers<[1], [0], [0], [1], [0, 0, 1, 1], [], []>} : vector<1x131xf32>, vector<131x128xf32>, vector<1x128xf32> -> vector<1x128xf32>
    %116 = arith.addf %111, %115 : vector<1x128xf32>
    %117 = vector.extract_strided_slice %85 {offsets = [6, 0], sizes = [1, 131], strides = [1, 1]} : vector<8x131xf32> to vector<1x131xf32>
    %c6 = arith.constant 6 : index
    %c0_85 = arith.constant 0 : index
    %c0_86 = arith.constant 0 : index
    %118 = vector.load %arg14[%c6, %c0_85, %c0_86] : memref<8x131x128xf32, #tpu.memory_space<vmem>>, vector<1x131x128xf32>
    %119 = vector.shape_cast %118 : vector<1x131x128xf32> to vector<131x128xf32>
    %cst_87 = arith.constant dense<0.000000e+00> : vector<1x128xf32>
    %120 = tpu.matmul %117, %119, %cst_87 {dimension_numbers = #tpu.dot_dimension_numbers<[1], [0], [0], [1], [0, 0, 1, 1], [], []>} : vector<1x131xf32>, vector<131x128xf32>, vector<1x128xf32> -> vector<1x128xf32>
    %121 = arith.addf %116, %120 : vector<1x128xf32>
    %122 = vector.extract_strided_slice %85 {offsets = [7, 0], sizes = [1, 131], strides = [1, 1]} : vector<8x131xf32> to vector<1x131xf32>
    %c7 = arith.constant 7 : index
    %c0_88 = arith.constant 0 : index
    %c0_89 = arith.constant 0 : index
    %123 = vector.load %arg14[%c7, %c0_88, %c0_89] : memref<8x131x128xf32, #tpu.memory_space<vmem>>, vector<1x131x128xf32>
    %124 = vector.shape_cast %123 : vector<1x131x128xf32> to vector<131x128xf32>
    %cst_90 = arith.constant dense<0.000000e+00> : vector<1x128xf32>
    %125 = tpu.matmul %122, %124, %cst_90 {dimension_numbers = #tpu.dot_dimension_numbers<[1], [0], [0], [1], [0, 0, 1, 1], [], []>} : vector<1x131xf32>, vector<131x128xf32>, vector<1x128xf32> -> vector<1x128xf32>
    %126 = arith.addf %121, %125 : vector<1x128xf32>
    %cst_91 = arith.constant 5.000000e-01 : f32
    %127 = vector.broadcast %cst_91 : f32 to vector<1x128xf32>
    %128 = arith.mulf %127, %126 : vector<1x128xf32>
    %cst_92 = arith.constant 0.707106769 : f32
    %129 = vector.broadcast %cst_92 : f32 to vector<1x128xf32>
    %130 = arith.mulf %126, %129 : vector<1x128xf32>
    %131 = math.erf %130 : vector<1x128xf32>
    %cst_93 = arith.constant 1.000000e+00 : f32
    %132 = vector.broadcast %cst_93 : f32 to vector<1x128xf32>
    %133 = arith.addf %132, %131 : vector<1x128xf32>
    %134 = arith.mulf %128, %133 : vector<1x128xf32>
    %c0_94 = arith.constant 0 : index
    %c0_95 = arith.constant 0 : index
    %c0_96 = arith.constant 0 : index
    %135 = vector.load %arg16[%c0_94, %c0_95, %c0_96] : memref<1x1x128xf32, #tpu.memory_space<vmem>>, vector<1x1x128xf32>
    %136 = vector.shape_cast %135 : vector<1x1x128xf32> to vector<1x128xf32>
    %137 = vector.shape_cast %134 : vector<1x128xf32> to vector<1x1x128xf32>
    tpu.vector_store %arg16[%c0_94, %c0_95, %c0_96], %137 {strides = array<i32>} : memref<1x1x128xf32, #tpu.memory_space<vmem>>, vector<1x1x128xf32>,
    return
  }
  func.func @transform_0(%arg0: i32) -> (i32, i32, i32) {
    %c0_i32 = arith.constant 0 : i32
    %c0_i32_0 = arith.constant 0 : i32
    %c0_i32_1 = arith.constant 0 : i32
    return %arg0, %c0_i32, %c0_i32_0 : i32, i32, i32
  }
  func.func @transform_1(%arg0: i32) -> (i32, i32) {
    %c0_i32 = arith.constant 0 : i32
    %c0_i32_0 = arith.constant 0 : i32
    %c0_i32_1 = arith.constant 0 : i32
    return %c0_i32, %c0_i32_0 : i32, i32
  }
  func.func @transform_2(%arg0: i32) -> (i32, i32) {
    %c0_i32 = arith.constant 0 : i32
    %c0_i32_0 = arith.constant 0 : i32
    %c0_i32_1 = arith.constant 0 : i32
    return %c0_i32, %c0_i32_0 : i32, i32
  }
  func.func @transform_3(%arg0: i32) -> (i32, i32) {
    %c0_i32 = arith.constant 0 : i32
    %c0_i32_0 = arith.constant 0 : i32
    %c0_i32_1 = arith.constant 0 : i32
    return %c0_i32, %c0_i32_0 : i32, i32
  }
  func.func @transform_4(%arg0: i32) -> (i32, i32) {
    %c0_i32 = arith.constant 0 : i32
    %c0_i32_0 = arith.constant 0 : i32
    %c0_i32_1 = arith.constant 0 : i32
    return %c0_i32, %c0_i32_0 : i32, i32
  }
  func.func @transform_5(%arg0: i32) -> (i32, i32) {
    %c0_i32 = arith.constant 0 : i32
    %c0_i32_0 = arith.constant 0 : i32
    %c0_i32_1 = arith.constant 0 : i32
    return %c0_i32, %c0_i32_0 : i32, i32
  }
  func.func @transform_6(%arg0: i32) -> (i32, i32) {
    %c0_i32 = arith.constant 0 : i32
    %c0_i32_0 = arith.constant 0 : i32
    %c0_i32_1 = arith.constant 0 : i32
    return %c0_i32, %c0_i32_0 : i32, i32
  }
  func.func @transform_7(%arg0: i32) -> (i32, i32) {
    %c0_i32 = arith.constant 0 : i32
    %c0_i32_0 = arith.constant 0 : i32
    %c0_i32_1 = arith.constant 0 : i32
    return %c0_i32, %c0_i32_0 : i32, i32
  }
  func.func @transform_8(%arg0: i32) -> (i32, i32) {
    %c0_i32 = arith.constant 0 : i32
    %c0_i32_0 = arith.constant 0 : i32
    %c0_i32_1 = arith.constant 0 : i32
    return %c0_i32, %c0_i32_0 : i32, i32
  }
  func.func @transform_9(%arg0: i32) -> (i32, i32) {
    %c0_i32 = arith.constant 0 : i32
    %c0_i32_0 = arith.constant 0 : i32
    %c0_i32_1 = arith.constant 0 : i32
    return %c0_i32, %c0_i32_0 : i32, i32
  }
  func.func @transform_10(%arg0: i32) -> (i32, i32) {
    %c0_i32 = arith.constant 0 : i32
    %c0_i32_0 = arith.constant 0 : i32
    %c0_i32_1 = arith.constant 0 : i32
    return %c0_i32, %c0_i32_0 : i32, i32
  }
  func.func @transform_11(%arg0: i32) -> (i32, i32) {
    %c0_i32 = arith.constant 0 : i32
    %c0_i32_0 = arith.constant 0 : i32
    %c0_i32_1 = arith.constant 0 : i32
    return %c0_i32, %c0_i32_0 : i32, i32
  }
  func.func @transform_12(%arg0: i32) -> (i32, i32) {
    %c0_i32 = arith.constant 0 : i32
    %c0_i32_0 = arith.constant 0 : i32
    %c0_i32_1 = arith.constant 0 : i32
    return %c0_i32, %c0_i32_0 : i32, i32
  }
  func.func @transform_13(%arg0: i32) -> (i32, i32, i32) {
    %c0_i32 = arith.constant 0 : i32
    %c0_i32_0 = arith.constant 0 : i32
    %c0_i32_1 = arith.constant 0 : i32
    %c0_i32_2 = arith.constant 0 : i32
    return %c0_i32, %c0_i32_0, %c0_i32_1 : i32, i32, i32
  }
  func.func @transform_14(%arg0: i32) -> (i32, i32) {
    %c0_i32 = arith.constant 0 : i32
    %c0_i32_0 = arith.constant 0 : i32
    %c0_i32_1 = arith.constant 0 : i32
    return %c0_i32, %c0_i32_0 : i32, i32
  }
  func.func @transform_15(%arg0: i32) -> (i32, i32, i32) {
    %c0_i32 = arith.constant 0 : i32
    %c0_i32_0 = arith.constant 0 : i32
    %c0_i32_1 = arith.constant 0 : i32
    return %arg0, %c0_i32, %c0_i32_0 : i32, i32, i32
  }
}

</mosaic_0001>

<llo_original>
// kernel: bruce_cnn_cell_forward.1
$region0: #{bruce_cnn_cell_forward.1}
  #allocation0 [shape = 'u32[]', space=smem, size = 0x4, offset = 0x4, fixed_abs, tag = 'smem constant byte address 0x4 - core index']
  #allocation1 [shape = 'u32[144,128]{1,0:T(1,128)}', space=vmem, size = 0x12000, scoped, tag = 'internal scratch']
  #allocation2 [shape = 'f32[3,524]{1,0:T(4,128)}', space=vmem, size = 0x2800, scoped, tag = 'scratch operand']
  #allocation3 [shape = 'f32[20,262]{1,0:T(8,128)}', space=vmem, size = 0x9000, scoped, tag = 'scratch operand']
  %s0 = inlined_call_operand.vmem [shape: f32[2,1,524], index: 0, kind: input, shape index: {}]
  %s1 = inlined_call_operand.vmem [shape: f32[4,3], index: 1, kind: input, shape index: {}]
  %s2 = inlined_call_operand.vmem [shape: f32[4,1], index: 2, kind: input, shape index: {}]
  %s3 = inlined_call_operand.vmem [shape: f32[1,524], index: 3, kind: input, shape index: {}]
  %s4 = inlined_call_operand.vmem [shape: f32[1,524], index: 4, kind: input, shape index: {}]
  %s5 = inlined_call_operand.vmem [shape: f32[524,262], index: 5, kind: input, shape index: {}]
  %s6 = inlined_call_operand.vmem [shape: f32[524,262], index: 6, kind: input, shape index: {}]
  %s7 = inlined_call_operand.vmem [shape: f32[8,20], index: 7, kind: input, shape index: {}]
  %s8 = inlined_call_operand.vmem [shape: f32[8,1], index: 8, kind: input, shape index: {}]
  %s9 = inlined_call_operand.vmem [shape: f32[1,262], index: 9, kind: input, shape index: {}]
  %s10 = inlined_call_operand.vmem [shape: f32[1,262], index: 10, kind: input, shape index: {}]
  %s11 = inlined_call_operand.vmem [shape: f32[262,131], index: 11, kind: input, shape index: {}]
  %s12 = inlined_call_operand.vmem [shape: f32[262,131], index: 12, kind: input, shape index: {}]
  %s13 = inlined_call_operand.vmem [shape: f32[8,131,128], index: 13, kind: input, shape index: {}]
  %s14 = inlined_call_operand.vmem [shape: f32[1,128], index: 14, kind: input, shape index: {}]
  %s15 = inlined_call_operand.hbm [shape: f32[2,1,128], index: 15, kind: output, shape index: {}]
  %s16 = sld [smem:[#allocation0]]
  $region93: #{bruce_cnn_cell_forward.1} parent=0
    _
  %s18 = ssub.s32 1, %s16
  %s19 = scalar_select 0, %s18, %s16
  $region1: #{bruce_cnn_cell_forward.1} parent=0
    #allocation4 [shape = 'u8[1024]{0}', space=vmem, size = 0x400, scoped, tag = 'output window, operand 0']
    #allocation5 [shape = 's32[2]{0}', space=sflag, size = 0x8, scoped, tag = 'scoped memory for bruce_cnn_cell_forward.1']
    %20 = vsyncpa [#allocation5], 0
    %s21 = scalar_lea.sflag [#allocation5], 1
    %22 = vsyncpa %s21, 0
    loop: start=0, step=1, limit=4
    $region2: #{bruce_cnn_cell_forward.1} parent=1 // loop_pre_header
      _
    $region3: #{bruce_cnn_cell_forward.1} parent=1 // loop_header
      %s24 = sphi 0, %s28
      %p25 = scmp.ge.s32.totalorder %s24, 4
      %s34 = sphi 0, %s36
      %s37 = sphi 0, %s34
      %s38 = sphi 0, %s37
      %s54 = sphi 0, %s38
      %s58 = sphi 0, %s58
      %s60 = sphi 0, %s58
      %s61 = sphi 0, %s60
      %s75 = sphi 0, %s61
      %s79 = sphi 0, %s79
      %s81 = sphi 0, %s79
      %s82 = sphi 0, %s81
      %s96 = sphi 0, %s82
      %s100 = sphi 0, %s100
      %s102 = sphi 0, %s100
      %s103 = sphi 0, %s102
      %s117 = sphi 0, %s103
      %s121 = sphi 0, %s121
      %s123 = sphi 0, %s121
      %s124 = sphi 0, %s123
      %s138 = sphi 0, %s124
      %s142 = sphi 0, %s142
      %s144 = sphi 0, %s142
      %s145 = sphi 0, %s144
      %s159 = sphi 0, %s145
      %s163 = sphi 0, %s163
      %s165 = sphi 0, %s163
      %s166 = sphi 0, %s165
      %s180 = sphi 0, %s166
      %s184 = sphi 0, %s184
      %s186 = sphi 0, %s184
      %s187 = sphi 0, %s186
      %s201 = sphi 0, %s187
      %s205 = sphi 0, %s205
      %s207 = sphi 0, %s205
      %s208 = sphi 0, %s207
      %s222 = sphi 0, %s208
      %s226 = sphi 0, %s226
      %s228 = sphi 0, %s226
      %s229 = sphi 0, %s228
      %s243 = sphi 0, %s229
      %s247 = sphi 0, %s247
      %s249 = sphi 0, %s247
      %s250 = sphi 0, %s249
      %s264 = sphi 0, %s250
      %s268 = sphi 0, %s268
      %s270 = sphi 0, %s268
      %s271 = sphi 0, %s270
      %s285 = sphi 0, %s271
      %s289 = sphi 0, %s289
      %s291 = sphi 0, %s289
      %s292 = sphi 0, %s291
      %s306 = sphi 0, %s292
      %s310 = sphi 0, %s310
      %s312 = sphi 0, %s310
      %s313 = sphi 0, %s312
      %s327 = sphi 0, %s313
      %s331 = sphi 0, %s331
      %s333 = sphi 0, %s331
      %s334 = sphi 0, %s333
      %s348 = sphi 0, %s334
      %s354 = sphi 0, %s356
      %s357 = sphi 0, %s354
      %s358 = sphi 0, %s357
      %s374 = sphi 0, %s358
    $region4: #{bruce_cnn_cell_forward.1} parent=1 // loop_header_branch
      %27 = sbr.rel (%p25) target = $region8
    $region5: #{bruce_cnn_cell_forward.1} parent=1 // loop_body
      %s29 = ssub.s32 %s24, 1
      %s30 = ssub.s32 %s24, 2
      %s31 = sadd.s32 %s24, 1
      %s32 = ssub.s32 %s24, %s31
      %p33 = scmp.eq.s32.totalorder %s32, 0
      %s35 = sadd.s32 %s34, 1
      %s36 = scalar_select %p33, %s34, %s35
      %p39 = pneg %p33
      %p40 = scmp.eq.s32.totalorder %s24, 1
      %p41 = por %p39, %p40
      %p42 = scmp.ne.s32.totalorder %s34, %s37
      %p43 = scmp.eq.s32.totalorder %s24, 0
      %p44 = por %p42, %p43
      %p45 = scmp.ne.s32.totalorder %s34, %s37
      %p46 = scmp.eq.s32.totalorder %s29, 1
      %p47 = por %p45, %p46
      %p48 = scmp.ne.s32.totalorder %s37, %s38
      %p49 = scmp.eq.s32.totalorder %s29, 0
      %p50 = por %p48, %p49
      %p51 = scmp.ne.s32.totalorder %s37, %s38
      %p52 = scmp.eq.s32.totalorder %s30, 1
      %p53 = por %p51, %p52
      %p55 = scmp.ne.s32.totalorder %s38, %s54
      %p56 = scmp.eq.s32.totalorder %s30, 0
      %p57 = por %p55, %p56
      %s59 = sadd.s32 %s58, 1
      %p62 = scmp.eq.s32.totalorder %s24, 1
      %p63 = scmp.ne.s32.totalorder %s58, %s60
      %p64 = scmp.eq.s32.totalorder %s24, 0
      %p65 = por %p63, %p64
      %p66 = scmp.ne.s32.totalorder %s58, %s60
      %p67 = scmp.eq.s32.totalorder %s29, 1
      %p68 = por %p66, %p67
      %p69 = scmp.ne.s32.totalorder %s60, %s61
      %p70 = scmp.eq.s32.totalorder %s29, 0
      %p71 = por %p69, %p70
      %p72 = scmp.ne.s32.totalorder %s60, %s61
      %p73 = scmp.eq.s32.totalorder %s30, 1
      %p74 = por %p72, %p73
      %p76 = scmp.ne.s32.totalorder %s61, %s75
      %p77 = scmp.eq.s32.totalorder %s30, 0
      %p78 = por %p76, %p77
      %s80 = sadd.s32 %s79, 1
      %p83 = scmp.eq.s32.totalorder %s24, 1
      %p84 = scmp.ne.s32.totalorder %s79, %s81
      %p85 = scmp.eq.s32.totalorder %s24, 0
      %p86 = por %p84, %p85
      %p87 = scmp.ne.s32.totalorder %s79, %s81
      %p88 = scmp.eq.s32.totalorder %s29, 1
      %p89 = por %p87, %p88
      %p90 = scmp.ne.s32.totalorder %s81, %s82
      %p91 = scmp.eq.s32.totalorder %s29, 0
      %p92 = por %p90, %p91
      %p93 = scmp.ne.s32.totalorder %s81, %s82
      %p94 = scmp.eq.s32.totalorder %s30, 1
      %p95 = por %p93, %p94
      %p97 = scmp.ne.s32.totalorder %s82, %s96
      %p98 = scmp.eq.s32.totalorder %s30, 0
      %p99 = por %p97, %p98
      %s101 = sadd.s32 %s100, 1
      %p104 = scmp.eq.s32.totalorder %s24, 1
      %p105 = scmp.ne.s32.totalorder %s100, %s102
      %p106 = scmp.eq.s32.totalorder %s24, 0
      %p107 = por %p105, %p106
      %p108 = scmp.ne.s32.totalorder %s100, %s102
      %p109 = scmp.eq.s32.totalorder %s29, 1
      %p110 = por %p108, %p109
      %p111 = scmp.ne.s32.totalorder %s102, %s103
      %p112 = scmp.eq.s32.totalorder %s29, 0
      %p113 = por %p111, %p112
      %p114 = scmp.ne.s32.totalorder %s102, %s103
      %p115 = scmp.eq.s32.totalorder %s30, 1
      %p116 = por %p114, %p115
      %p118 = scmp.ne.s32.totalorder %s103, %s117
      %p119 = scmp.eq.s32.totalorder %s30, 0
      %p120 = por %p118, %p119
      %s122 = sadd.s32 %s121, 1
      %p125 = scmp.eq.s32.totalorder %s24, 1
      %p126 = scmp.ne.s32.totalorder %s121, %s123
      %p127 = scmp.eq.s32.totalorder %s24, 0
      %p128 = por %p126, %p127
      %p129 = scmp.ne.s32.totalorder %s121, %s123
      %p130 = scmp.eq.s32.totalorder %s29, 1
      %p131 = por %p129, %p130
      %p132 = scmp.ne.s32.totalorder %s123, %s124
      %p133 = scmp.eq.s32.totalorder %s29, 0
      %p134 = por %p132, %p133
      %p135 = scmp.ne.s32.totalorder %s123, %s124
      %p136 = scmp.eq.s32.totalorder %s30, 1
      %p137 = por %p135, %p136
      %p139 = scmp.ne.s32.totalorder %s124, %s138
      %p140 = scmp.eq.s32.totalorder %s30, 0
      %p141 = por %p139, %p140
      %s143 = sadd.s32 %s142, 1
      %p146 = scmp.eq.s32.totalorder %s24, 1
      %p147 = scmp.ne.s32.totalorder %s142, %s144
      %p148 = scmp.eq.s32.totalorder %s24, 0
      %p149 = por %p147, %p148
      %p150 = scmp.ne.s32.totalorder %s142, %s144
      %p151 = scmp.eq.s32.totalorder %s29, 1
      %p152 = por %p150, %p151
      %p153 = scmp.ne.s32.totalorder %s144, %s145
      %p154 = scmp.eq.s32.totalorder %s29, 0
      %p155 = por %p153, %p154
      %p156 = scmp.ne.s32.totalorder %s144, %s145
      %p157 = scmp.eq.s32.totalorder %s30, 1
      %p158 = por %p156, %p157
      %p160 = scmp.ne.s32.totalorder %s145, %s159
      %p161 = scmp.eq.s32.totalorder %s30, 0
      %p162 = por %p160, %p161
      %s164 = sadd.s32 %s163, 1
      %p167 = scmp.eq.s32.totalorder %s24, 1
      %p168 = scmp.ne.s32.totalorder %s163, %s165
      %p169 = scmp.eq.s32.totalorder %s24, 0
      %p170 = por %p168, %p169
      %p171 = scmp.ne.s32.totalorder %s163, %s165
      %p172 = scmp.eq.s32.totalorder %s29, 1
      %p173 = por %p171, %p172
      %p174 = scmp.ne.s32.totalorder %s165, %s166
      %p175 = scmp.eq.s32.totalorder %s29, 0
      %p176 = por %p174, %p175
      %p177 = scmp.ne.s32.totalorder %s165, %s166
      %p178 = scmp.eq.s32.totalorder %s30, 1
      %p179 = por %p177, %p178
      %p181 = scmp.ne.s32.totalorder %s166, %s180
      %p182 = scmp.eq.s32.totalorder %s30, 0
      %p183 = por %p181, %p182
      %s185 = sadd.s32 %s184, 1
      %p188 = scmp.eq.s32.totalorder %s24, 1
      %p189 = scmp.ne.s32.totalorder %s184, %s186
      %p190 = scmp.eq.s32.totalorder %s24, 0
      %p191 = por %p189, %p190
      %p192 = scmp.ne.s32.totalorder %s184, %s186
      %p193 = scmp.eq.s32.totalorder %s29, 1
      %p194 = por %p192, %p193
      %p195 = scmp.ne.s32.totalorder %s186, %s187
      %p196 = scmp.eq.s32.totalorder %s29, 0
      %p197 = por %p195, %p196
      %p198 = scmp.ne.s32.totalorder %s186, %s187
      %p199 = scmp.eq.s32.totalorder %s30, 1
      %p200 = por %p198, %p199
      %p202 = scmp.ne.s32.totalorder %s187, %s201
      %p203 = scmp.eq.s32.totalorder %s30, 0
      %p204 = por %p202, %p203
      %s206 = sadd.s32 %s205, 1
      %p209 = scmp.eq.s32.totalorder %s24, 1
      %p210 = scmp.ne.s32.totalorder %s205, %s207
      %p211 = scmp.eq.s32.totalorder %s24, 0
      %p212 = por %p210, %p211
      %p213 = scmp.ne.s32.totalorder %s205, %s207
      %p214 = scmp.eq.s32.totalorder %s29, 1
      %p215 = por %p213, %p214
      %p216 = scmp.ne.s32.totalorder %s207, %s208
      %p217 = scmp.eq.s32.totalorder %s29, 0
      %p218 = por %p216, %p217
      %p219 = scmp.ne.s32.totalorder %s207, %s208
      %p220 = scmp.eq.s32.totalorder %s30, 1
      %p221 = por %p219, %p220
      %p223 = scmp.ne.s32.totalorder %s208, %s222
      %p224 = scmp.eq.s32.totalorder %s30, 0
      %p225 = por %p223, %p224
      %s227 = sadd.s32 %s226, 1
      %p230 = scmp.eq.s32.totalorder %s24, 1
      %p231 = scmp.ne.s32.totalorder %s226, %s228
      %p232 = scmp.eq.s32.totalorder %s24, 0
      %p233 = por %p231, %p232
      %p234 = scmp.ne.s32.totalorder %s226, %s228
      %p235 = scmp.eq.s32.totalorder %s29, 1
      %p236 = por %p234, %p235
      %p237 = scmp.ne.s32.totalorder %s228, %s229
      %p238 = scmp.eq.s32.totalorder %s29, 0
      %p239 = por %p237, %p238
      %p240 = scmp.ne.s32.totalorder %s228, %s229
      %p241 = scmp.eq.s32.totalorder %s30, 1
      %p242 = por %p240, %p241
      %p244 = scmp.ne.s32.totalorder %s229, %s243
      %p245 = scmp.eq.s32.totalorder %s30, 0
      %p246 = por %p244, %p245
      %s248 = sadd.s32 %s247, 1
      %p251 = scmp.eq.s32.totalorder %s24, 1
      %p252 = scmp.ne.s32.totalorder %s247, %s249
      %p253 = scmp.eq.s32.totalorder %s24, 0
      %p254 = por %p252, %p253
      %p255 = scmp.ne.s32.totalorder %s247, %s249
      %p256 = scmp.eq.s32.totalorder %s29, 1
      %p257 = por %p255, %p256
      %p258 = scmp.ne.s32.totalorder %s249, %s250
      %p259 = scmp.eq.s32.totalorder %s29, 0
      %p260 = por %p258, %p259
      %p261 = scmp.ne.s32.totalorder %s249, %s250
      %p262 = scmp.eq.s32.totalorder %s30, 1
      %p263 = por %p261, %p262
      %p265 = scmp.ne.s32.totalorder %s250, %s264
      %p266 = scmp.eq.s32.totalorder %s30, 0
      %p267 = por %p265, %p266
      %s269 = sadd.s32 %s268, 1
      %p272 = scmp.eq.s32.totalorder %s24, 1
      %p273 = scmp.ne.s32.totalorder %s268, %s270
      %p274 = scmp.eq.s32.totalorder %s24, 0
      %p275 = por %p273, %p274
      %p276 = scmp.ne.s32.totalorder %s268, %s270
      %p277 = scmp.eq.s32.totalorder %s29, 1
      %p278 = por %p276, %p277
      %p279 = scmp.ne.s32.totalorder %s270, %s271
      %p280 = scmp.eq.s32.totalorder %s29, 0
      %p281 = por %p279, %p280
      %p282 = scmp.ne.s32.totalorder %s270, %s271
      %p283 = scmp.eq.s32.totalorder %s30, 1
      %p284 = por %p282, %p283
      %p286 = scmp.ne.s32.totalorder %s271, %s285
      %p287 = scmp.eq.s32.totalorder %s30, 0
      %p288 = por %p286, %p287
      %s290 = sadd.s32 %s289, 1
      %p293 = scmp.eq.s32.totalorder %s24, 1
      %p294 = scmp.ne.s32.totalorder %s289, %s291
      %p295 = scmp.eq.s32.totalorder %s24, 0
      %p296 = por %p294, %p295
      %p297 = scmp.ne.s32.totalorder %s289, %s291
      %p298 = scmp.eq.s32.totalorder %s29, 1
      %p299 = por %p297, %p298
      %p300 = scmp.ne.s32.totalorder %s291, %s292
      %p301 = scmp.eq.s32.totalorder %s29, 0
      %p302 = por %p300, %p301
      %p303 = scmp.ne.s32.totalorder %s291, %s292
      %p304 = scmp.eq.s32.totalorder %s30, 1
      %p305 = por %p303, %p304
      %p307 = scmp.ne.s32.totalorder %s292, %s306
      %p308 = scmp.eq.s32.totalorder %s30, 0
      %p309 = por %p307, %p308
      %s311 = sadd.s32 %s310, 1
      %p314 = scmp.eq.s32.totalorder %s24, 1
      %p315 = scmp.ne.s32.totalorder %s310, %s312
      %p316 = scmp.eq.s32.totalorder %s24, 0
      %p317 = por %p315, %p316
      %p318 = scmp.ne.s32.totalorder %s310, %s312
      %p319 = scmp.eq.s32.totalorder %s29, 1
      %p320 = por %p318, %p319
      %p321 = scmp.ne.s32.totalorder %s312, %s313
      %p322 = scmp.eq.s32.totalorder %s29, 0
      %p323 = por %p321, %p322
      %p324 = scmp.ne.s32.totalorder %s312, %s313
      %p325 = scmp.eq.s32.totalorder %s30, 1
      %p326 = por %p324, %p325
      %p328 = scmp.ne.s32.totalorder %s313, %s327
      %p329 = scmp.eq.s32.totalorder %s30, 0
      %p330 = por %p328, %p329
      %s332 = sadd.s32 %s331, 1
      %p335 = scmp.eq.s32.totalorder %s24, 1
      %p336 = scmp.ne.s32.totalorder %s331, %s333
      %p337 = scmp.eq.s32.totalorder %s24, 0
      %p338 = por %p336, %p337
      %p339 = scmp.ne.s32.totalorder %s331, %s333
      %p340 = scmp.eq.s32.totalorder %s29, 1
      %p341 = por %p339, %p340
      %p342 = scmp.ne.s32.totalorder %s333, %s334
      %p343 = scmp.eq.s32.totalorder %s29, 0
      %p344 = por %p342, %p343
      %p345 = scmp.ne.s32.totalorder %s333, %s334
      %p346 = scmp.eq.s32.totalorder %s30, 1
      %p347 = por %p345, %p346
      %p349 = scmp.ne.s32.totalorder %s334, %s348
      %p350 = scmp.eq.s32.totalorder %s30, 0
      %p351 = por %p349, %p350
      %s352 = ssub.s32 %s24, %s31
      %p353 = scmp.eq.s32.totalorder %s352, 0
      %s355 = sadd.s32 %s354, 1
      %s356 = scalar_select %p353, %s354, %s355
      %p359 = pneg %p353
      %p360 = scmp.eq.s32.totalorder %s24, 1
      %p361 = por %p359, %p360
      %p362 = scmp.ne.s32.totalorder %s354, %s357
      %p363 = scmp.eq.s32.totalorder %s24, 0
      %p364 = por %p362, %p363
      %p365 = scmp.ne.s32.totalorder %s354, %s357
      %p366 = scmp.eq.s32.totalorder %s29, 1
      %p367 = por %p365, %p366
      %p368 = scmp.ne.s32.totalorder %s357, %s358
      %p369 = scmp.eq.s32.totalorder %s29, 0
      %p370 = por %p368, %p369
      %p371 = scmp.ne.s32.totalorder %s357, %s358
      %p372 = scmp.eq.s32.totalorder %s30, 1
      %p373 = por %p371, %p372
      %p375 = scmp.ne.s32.totalorder %s358, %s374
      %p376 = scmp.eq.s32.totalorder %s30, 0
      %p377 = por %p375, %p376
      %p378 = scmp.le.s32.totalorder 1, %s24
      %p379 = scmp.lt.s32.totalorder %s24, 3
      %p380 = pnand %p378, %p379
      %p381 = pneg %p380
      // Predicated region
      $region9: #{bruce_cnn_cell_forward.1} parent=5 // pred_check
        _
      $region10: #{bruce_cnn_cell_forward.1} parent=5 // pred_check_branch
        %383 = sbr.rel (%p380) target = $region12
      $region11: #{bruce_cnn_cell_forward.1} parent=5 // pred_region
        %s384 = ssub.s32 %s24, 1
        // Predicated region
        $region13: #{bruce_cnn_cell_forward.1} parent=11 // pred_check
          %p385 = pneg %p71
        $region14: #{bruce_cnn_cell_forward.1} parent=11 // pred_check_branch
          %387 = sbr.rel (%p385) target = $region16
        $region15: #{bruce_cnn_cell_forward.1} parent=11 // pred_region
          _
        $region16: #{bruce_cnn_cell_forward.1} parent=11 // pred_fallthru
          _
        // Predicated region
        $region17: #{bruce_cnn_cell_forward.1} parent=11 // pred_check
          %p388 = pneg %p92
        $region18: #{bruce_cnn_cell_forward.1} parent=11 // pred_check_branch
          %390 = sbr.rel (%p388) target = $region20
        $region19: #{bruce_cnn_cell_forward.1} parent=11 // pred_region
          _
        $region20: #{bruce_cnn_cell_forward.1} parent=11 // pred_fallthru
          _
        // Predicated region
        $region21: #{bruce_cnn_cell_forward.1} parent=11 // pred_check
          %p391 = pneg %p113
        $region22: #{bruce_cnn_cell_forward.1} parent=11 // pred_check_branch
          %393 = sbr.rel (%p391) target = $region24
        $region23: #{bruce_cnn_cell_forward.1} parent=11 // pred_region
          _
        $region24: #{bruce_cnn_cell_forward.1} parent=11 // pred_fallthru
          _
        // Predicated region
        $region25: #{bruce_cnn_cell_forward.1} parent=11 // pred_check
          %p394 = pneg %p134
        $region26: #{bruce_cnn_cell_forward.1} parent=11 // pred_check_branch
          %396 = sbr.rel (%p394) target = $region28
        $region27: #{bruce_cnn_cell_forward.1} parent=11 // pred_region
          _
        $region28: #{bruce_cnn_cell_forward.1} parent=11 // pred_fallthru
          _
        // Predicated region
        $region29: #{bruce_cnn_cell_forward.1} parent=11 // pred_check
          %p397 = pneg %p155
        $region30: #{bruce_cnn_cell_forward.1} parent=11 // pred_check_branch
          %399 = sbr.rel (%p397) target = $region32
        $region31: #{bruce_cnn_cell_forward.1} parent=11 // pred_region
          _
        $region32: #{bruce_cnn_cell_forward.1} parent=11 // pred_fallthru
          _
        // Predicated region
        $region33: #{bruce_cnn_cell_forward.1} parent=11 // pred_check
          %p400 = pneg %p176
        $region34: #{bruce_cnn_cell_forward.1} parent=11 // pred_check_branch
          %402 = sbr.rel (%p400) target = $region36
        $region35: #{bruce_cnn_cell_forward.1} parent=11 // pred_region
          _
        $region36: #{bruce_cnn_cell_forward.1} parent=11 // pred_fallthru
          _
        // Predicated region
        $region37: #{bruce_cnn_cell_forward.1} parent=11 // pred_check
          %p403 = pneg %p197
        $region38: #{bruce_cnn_cell_forward.1} parent=11 // pred_check_branch
          %405 = sbr.rel (%p403) target = $region40
        $region39: #{bruce_cnn_cell_forward.1} parent=11 // pred_region
          _
        $region40: #{bruce_cnn_cell_forward.1} parent=11 // pred_fallthru
          _
        // Predicated region
        $region41: #{bruce_cnn_cell_forward.1} parent=11 // pred_check
          %p406 = pneg %p218
        $region42: #{bruce_cnn_cell_forward.1} parent=11 // pred_check_branch
          %408 = sbr.rel (%p406) target = $region44
        $region43: #{bruce_cnn_cell_forward.1} parent=11 // pred_region
          _
        $region44: #{bruce_cnn_cell_forward.1} parent=11 // pred_fallthru
          _
        // Predicated region
        $region45: #{bruce_cnn_cell_forward.1} parent=11 // pred_check
          %p409 = pneg %p239
        $region46: #{bruce_cnn_cell_forward.1} parent=11 // pred_check_branch
          %411 = sbr.rel (%p409) target = $region48
        $region47: #{bruce_cnn_cell_forward.1} parent=11 // pred_region
          _
        $region48: #{bruce_cnn_cell_forward.1} parent=11 // pred_fallthru
          _
        // Predicated region
        $region49: #{bruce_cnn_cell_forward.1} parent=11 // pred_check
          %p412 = pneg %p260
        $region50: #{bruce_cnn_cell_forward.1} parent=11 // pred_check_branch
          %414 = sbr.rel (%p412) target = $region52
        $region51: #{bruce_cnn_cell_forward.1} parent=11 // pred_region
          _
        $region52: #{bruce_cnn_cell_forward.1} parent=11 // pred_fallthru
          _
        // Predicated region
        $region53: #{bruce_cnn_cell_forward.1} parent=11 // pred_check
          %p415 = pneg %p281
        $region54: #{bruce_cnn_cell_forward.1} parent=11 // pred_check_branch
          %417 = sbr.rel (%p415) target = $region56
        $region55: #{bruce_cnn_cell_forward.1} parent=11 // pred_region
          _
        $region56: #{bruce_cnn_cell_forward.1} parent=11 // pred_fallthru
          _
        // Predicated region
        $region57: #{bruce_cnn_cell_forward.1} parent=11 // pred_check
          %p418 = pneg %p302
        $region58: #{bruce_cnn_cell_forward.1} parent=11 // pred_check_branch
          %420 = sbr.rel (%p418) target = $region60
        $region59: #{bruce_cnn_cell_forward.1} parent=11 // pred_region
          _
        $region60: #{bruce_cnn_cell_forward.1} parent=11 // pred_fallthru
          _
        // Predicated region
        $region61: #{bruce_cnn_cell_forward.1} parent=11 // pred_check
          %p421 = pneg %p323
        $region62: #{bruce_cnn_cell_forward.1} parent=11 // pred_check_branch
          %423 = sbr.rel (%p421) target = $region64
        $region63: #{bruce_cnn_cell_forward.1} parent=11 // pred_region
          _
        $region64: #{bruce_cnn_cell_forward.1} parent=11 // pred_fallthru
          _
        // Predicated region
        $region65: #{bruce_cnn_cell_forward.1} parent=11 // pred_check
          %p424 = pneg %p344
        $region66: #{bruce_cnn_cell_forward.1} parent=11 // pred_check_branch
          %426 = sbr.rel (%p424) target = $region68
        $region67: #{bruce_cnn_cell_forward.1} parent=11 // pred_region
          _
        $region68: #{bruce_cnn_cell_forward.1} parent=11 // pred_fallthru
          _
      $region12: #{bruce_cnn_cell_forward.1} parent=5 // pred_fallthru
        _
      %p427 = scmp.lt.s32.totalorder %s24, 2
      // Predicated region
      $region69: #{bruce_cnn_cell_forward.1} parent=5 // pred_check
        %p428 = pneg %p427
      $region70: #{bruce_cnn_cell_forward.1} parent=5 // pred_check_branch
        %430 = sbr.rel (%p428) target = $region72
      $region71: #{bruce_cnn_cell_forward.1} parent=5 // pred_region
        // Predicated region
        $region73: #{bruce_cnn_cell_forward.1} parent=71 // pred_check
          %p431 = pneg %p44
        $region74: #{bruce_cnn_cell_forward.1} parent=71 // pred_check_branch
          %433 = sbr.rel (%p431) target = $region76
        $region75: #{bruce_cnn_cell_forward.1} parent=71 // pred_region
          %p434 = scmp.lt.s32.totalorder %s24, 1
          %s435 = scalar_select %p434, %s24, 1
          %s436 = smul.addr %s435, 5
          %s437 = scalar_lea.vmem %s0, %s436
        $region76: #{bruce_cnn_cell_forward.1} parent=71 // pred_fallthru
          _
      $region72: #{bruce_cnn_cell_forward.1} parent=5 // pred_fallthru
        _
      %p438 = scmp.le.s32.totalorder 1, %s24
      %p439 = scmp.lt.s32.totalorder %s24, 3
      %p440 = pnand %p438, %p439
      %p441 = pneg %p440
      // Predicated region
      $region77: #{bruce_cnn_cell_forward.1} parent=5 // pred_check
        _
      $region78: #{bruce_cnn_cell_forward.1} parent=5 // pred_check_branch
        %443 = sbr.rel (%p440) target = $region80
      $region79: #{bruce_cnn_cell_forward.1} parent=5 // pred_region
        %s444 = ssub.s32 %s24, 1
        %p445 = scmp.lt.s32.totalorder %s29, 1
        %s446 = scalar_select %p445, %s29, 1
        %s447 = smul.addr %s446, 5
        %s448 = scalar_lea.vmem %s0, %s447
        %p449 = pneg %p50
        %p450 = pneg %p47
        %p451 = pneg %p71
        %p452 = pneg %p68
        %p453 = pneg %p92
        %p454 = pneg %p89
        %p455 = pneg %p113
        %p456 = pneg %p110
        %p457 = pneg %p134
        %p458 = pneg %p131
        %p459 = pneg %p155
        %p460 = pneg %p152
        %p461 = pneg %p176
        %p462 = pneg %p173
        %p463 = pneg %p197
        %p464 = pneg %p194
        %p465 = pneg %p218
        %p466 = pneg %p215
        %p467 = pneg %p239
        %p468 = pneg %p236
        %p469 = pneg %p260
        %p470 = pneg %p257
        %p471 = pneg %p281
        %p472 = pneg %p278
        %p473 = pneg %p302
        %p474 = pneg %p299
        %p475 = pneg %p323
        %p476 = pneg %p320
        %p477 = pneg %p344
        %p478 = pneg %p341
        %p479 = pneg %p370
        %p480 = pneg %p367
        %s481 = sand.u32 %s357, 1
        %s482 = scalar_lea.sflag [#allocation5], %s481
        %s483 = sand.u32 %s357, 1
        %s484 = scalar_lea.vmem [#allocation4], %s483
        %p485 = scmp.lt.s32.totalorder %s29, 1
        %s486 = scalar_select %p485, %s29, 1
        %s487 = smul.addr %s486, 5
        %s488 = scalar_lea.vmem %s0, %s487
        %v489 = vld [vmem:[%s488] sm:$0x1f]
        %490 = vst [vmem:[#allocation2] sm:$0x77] 0.0
        %491 = vst [vmem:[#allocation2 + $0x8] sm:$0x77] 0.0
        %vm492 = vcmask 92160
        %493 = vst.msk [vmem:[#allocation2 + $0x10] sm:$0x7] %vm492, 0.0
        %495 = vrot.lane.b32.xlu0 %v489, 1
        %v496 = vpop.permute.xlu0 %495
        %v497 = vrot.slane %v496, 7
        %vm498 = vcmask 7168
        %v499 = vsel %vm498, %v497, %v496
        %v501 = vlaneseq
        %vm502 = vcmp.ge.s32.totalorder %v501, 1
        %vm503 = vcmp.lt.s32.totalorder %v501, 524
        %vm504 = vmand %vm502, %vm503
        %505 = vst.msk [vmem:[#allocation2] ss:$4 sm:$0x1f] %vm504, %v499
        %vm506 = vcmp.ge.s32.totalorder %v501, 0
        %vm507 = vmand %vm506, %vm503
        %s508 = scalar_lea.vmem [#allocation2], 1
        %509 = vst.msk [vmem:[%s508] ss:$4 sm:$0x1f] %vm507, %v489
        %510 = vrot.lane.b32.xlu0 %v489, 127
        %v511 = vpop.permute.xlu0 %510
        %v512 = vrot.slane %v511, 1
        %vm513 = vcmask 1039360
        %v514 = vsel %vm513, %v511, %v512
        %vm516 = vcmp.lt.s32.totalorder %v501, 523
        %vm517 = vmand %vm506, %vm516
        %s518 = scalar_lea.vmem [#allocation2], 2
        %519 = vst.msk [vmem:[%s518] ss:$4 sm:$0x1f] %vm517, %v514
        %v520 = vld [vmem:[%s1] sm:$0xf]
        %v521 = vld [vmem:[#allocation2] sm:$0x77]
        %v522 = vld [vmem:[#allocation2 + $0x8] sm:$0x77]
        %v523 = vld [vmem:[#allocation2 + $0x10] sm:$0x7]
        %v524 = vld [vmem:[%s2] sm:$0xf]
        %526 = vset.pattern.permute.xlu0 0
        %527 = vperm.xlu0 %526, %v524
        %v528 = vpop.permute.xlu0 %527
        %v533 = vcombine.high %v521, %v521
        %v534 = vcombine.high %v522, %v522
        %vm535 = vcmask 23552
        %v537 = vsel %vm535, %v520, 0
        %vm539 = vcmask 1042432
        %v540 = vsel %vm539, %v521, 0
        %v542 = vsel %vm539, %v533, 0
        %v544 = vsel %vm539, %v522, 0
        %v546 = vsel %vm539, %v534, 0
        %v548 = vsel %vm539, %v523, 0
        %550 = vmatprep.subr.mxu0 0.0
        %551 = vmatpush1.msra.mxu0 0.0
        %552 = vmatprep.subr.mxu0 0.0
        %553 = vmatpush1.msra.mxu0 0.0
        %554 = vmatprep.subr.mxu0 0.0
        %555 = vmatpush1.msra.mxu0 0.0
        %556 = vmatprep.subr.mxu0 0.0
        %557 = vmatpush1.msra.mxu0 0.0
        %558 = vmatprep.subr.mxu0 0.0
        %559 = vmatpush1.msra.mxu0 0.0
        %560 = vmatprep.subr.mxu0 0.0
        %561 = vmatpush1.msra.mxu0 0.0
        %562 = vmatprep.subr.mxu0 0.0
        %563 = vmatpush1.msra.mxu0 0.0
        %564 = vmatprep.subr.mxu0 0.0
        %565 = vmatpush1.msra.mxu0 0.0
        %566 = vmatprep.subr.mxu0 0.0
        %567 = vmatpush1.msra.mxu0 0.0
        %568 = vmatprep.subr.mxu0 0.0
        %569 = vmatpush1.msra.mxu0 0.0
        %570 = vmatprep.subr.mxu0 0.0
        %571 = vmatpush1.msra.mxu0 0.0
        %572 = vmatprep.subr.mxu0 0.0
        %573 = vmatpush1.msra.mxu0 0.0
        %574 = vmatprep.subr.mxu0 0.0
        %575 = vmatpush1.msra.mxu0 0.0
        %576 = vmatprep.subr.mxu0 0.0
        %577 = vmatpush1.msra.mxu0 0.0
        %578 = vmatprep.subr.mxu0 0.0
        %579 = vmatpush1.msra.mxu0 0.0
        %580 = vmatprep.subr.mxu0 %v542
        %581 = vmatpush1.msra.mxu0 %v540
        %582 = vmatprep.subr.mxu0 0.0
        %583 = vmatpush2.msra.mxu0 0.0
        %584 = vmatprep.subr.mxu0 0.0
        %585 = vmatpush2.msra.mxu0 0.0
        %586 = vmatprep.subr.mxu0 0.0
        %587 = vmatpush2.msra.mxu0 0.0
        %588 = vmatprep.subr.mxu0 0.0
        %589 = vmatpush2.msra.mxu0 0.0
        %590 = vmatprep.subr.mxu0 0.0
        %591 = vmatpush2.msra.mxu0 0.0
        %592 = vmatprep.subr.mxu0 0.0
        %593 = vmatpush2.msra.mxu0 0.0
        %594 = vmatprep.subr.mxu0 0.0
        %595 = vmatpush2.msra.mxu0 0.0
        %596 = vmatprep.subr.mxu0 0.0
        %597 = vmatpush2.msra.mxu0 0.0
        %598 = vmatprep.subr.mxu0 0.0
        %599 = vmatpush2.msra.mxu0 0.0
        %600 = vmatprep.subr.mxu0 0.0
        %601 = vmatpush2.msra.mxu0 0.0
        %602 = vmatprep.subr.mxu0 0.0
        %603 = vmatpush2.msra.mxu0 0.0
        %604 = vmatprep.subr.mxu0 0.0
        %605 = vmatpush2.msra.mxu0 0.0
        %606 = vmatprep.subr.mxu0 0.0
        %607 = vmatpush2.msra.mxu0 0.0
        %608 = vmatprep.subr.mxu0 0.0
        %609 = vmatpush2.msra.mxu0 0.0
        %610 = vmatprep.subr.mxu0 0.0
        %611 = vmatpush2.msra.mxu0 0.0
        %612 = vmatprep.subr.mxu0 0.0
        %613 = vmatpush2.msra.mxu0 0.0
        %614 = vmatprep.mubr.f32.mxu0 0.0
        %615 = vmatmul.mubr.f32.gmra.mxu0 %v537
        %v616 = vpop.f32.mrf.mxu0
        %v617 = vadd.f32 %v528, %v616
        %v618 = vpop.f32.mrf.mxu0
        %v619 = vadd.f32 %v528, %v618
        %620 = vdwg.mxu0
        %621 = vmatprep.subr.mxu0 0.0
        %622 = vmatpush1.msra.mxu0 0.0
        %623 = vmatprep.subr.mxu0 0.0
        %624 = vmatpush1.msra.mxu0 0.0
        %625 = vmatprep.subr.mxu0 0.0
        %626 = vmatpush1.msra.mxu0 0.0
        %627 = vmatprep.subr.mxu0 0.0
        %628 = vmatpush1.msra.mxu0 0.0
        %629 = vmatprep.subr.mxu0 0.0
        %630 = vmatpush1.msra.mxu0 0.0
        %631 = vmatprep.subr.mxu0 0.0
        %632 = vmatpush1.msra.mxu0 0.0
        %633 = vmatprep.subr.mxu0 0.0
        %634 = vmatpush1.msra.mxu0 0.0
        %635 = vmatprep.subr.mxu0 0.0
        %636 = vmatpush1.msra.mxu0 0.0
        %637 = vmatprep.subr.mxu0 0.0
        %638 = vmatpush1.msra.mxu0 0.0
        %639 = vmatprep.subr.mxu0 0.0
        %640 = vmatpush1.msra.mxu0 0.0
        %641 = vmatprep.subr.mxu0 0.0
        %642 = vmatpush1.msra.mxu0 0.0
        %643 = vmatprep.subr.mxu0 0.0
        %644 = vmatpush1.msra.mxu0 0.0
        %645 = vmatprep.subr.mxu0 0.0
        %646 = vmatpush1.msra.mxu0 0.0
        %647 = vmatprep.subr.mxu0 0.0
        %648 = vmatpush1.msra.mxu0 0.0
        %649 = vmatprep.subr.mxu0 0.0
        %650 = vmatpush1.msra.mxu0 0.0
        %651 = vmatprep.subr.mxu0 %v546
        %652 = vmatpush1.msra.mxu0 %v544
        %653 = vmatprep.subr.mxu0 0.0
        %654 = vmatpush2.msra.mxu0 0.0
        %655 = vmatprep.subr.mxu0 0.0
        %656 = vmatpush2.msra.mxu0 0.0
        %657 = vmatprep.subr.mxu0 0.0
        %658 = vmatpush2.msra.mxu0 0.0
        %659 = vmatprep.subr.mxu0 0.0
        %660 = vmatpush2.msra.mxu0 0.0
        %661 = vmatprep.subr.mxu0 0.0
        %662 = vmatpush2.msra.mxu0 0.0
        %663 = vmatprep.subr.mxu0 0.0
        %664 = vmatpush2.msra.mxu0 0.0
        %665 = vmatprep.subr.mxu0 0.0
        %666 = vmatpush2.msra.mxu0 0.0
        %667 = vmatprep.subr.mxu0 0.0
        %668 = vmatpush2.msra.mxu0 0.0
        %669 = vmatprep.subr.mxu0 0.0
        %670 = vmatpush2.msra.mxu0 0.0
        %671 = vmatprep.subr.mxu0 0.0
        %672 = vmatpush2.msra.mxu0 0.0
        %673 = vmatprep.subr.mxu0 0.0
        %674 = vmatpush2.msra.mxu0 0.0
        %675 = vmatprep.subr.mxu0 0.0
        %676 = vmatpush2.msra.mxu0 0.0
        %677 = vmatprep.subr.mxu0 0.0
        %678 = vmatpush2.msra.mxu0 0.0
        %679 = vmatprep.subr.mxu0 0.0
        %680 = vmatpush2.msra.mxu0 0.0
        %681 = vmatprep.subr.mxu0 0.0
        %682 = vmatpush2.msra.mxu0 0.0
        %683 = vmatprep.subr.mxu0 0.0
        %684 = vmatpush2.msra.mxu0 0.0
        %685 = vmatprep.mubr.f32.mxu0 0.0
        %686 = vmatmul.mubr.f32.gmra.mxu0 %v537
        %v687 = vpop.f32.mrf.mxu0
        %v688 = vadd.f32 %v528, %v687
        %v689 = vpop.f32.mrf.mxu0
        %v690 = vadd.f32 %v528, %v689
        %691 = vdwg.mxu0
        %692 = vmatprep.subr.mxu0 0.0
        %693 = vmatpush1.msra.mxu0 0.0
        %694 = vmatprep.subr.mxu0 0.0
        %695 = vmatpush1.msra.mxu0 0.0
        %696 = vmatprep.subr.mxu0 0.0
        %697 = vmatpush1.msra.mxu0 0.0
        %698 = vmatprep.subr.mxu0 0.0
        %699 = vmatpush1.msra.mxu0 0.0
        %700 = vmatprep.subr.mxu0 0.0
        %701 = vmatpush1.msra.mxu0 0.0
        %702 = vmatprep.subr.mxu0 0.0
        %703 = vmatpush1.msra.mxu0 0.0
        %704 = vmatprep.subr.mxu0 0.0
        %705 = vmatpush1.msra.mxu0 0.0
        %706 = vmatprep.subr.mxu0 0.0
        %707 = vmatpush1.msra.mxu0 0.0
        %708 = vmatprep.subr.mxu0 0.0
        %709 = vmatpush1.msra.mxu0 0.0
        %710 = vmatprep.subr.mxu0 0.0
        %711 = vmatpush1.msra.mxu0 0.0
        %712 = vmatprep.subr.mxu0 0.0
        %713 = vmatpush1.msra.mxu0 0.0
        %714 = vmatprep.subr.mxu0 0.0
        %715 = vmatpush1.msra.mxu0 0.0
        %716 = vmatprep.subr.mxu0 0.0
        %717 = vmatpush1.msra.mxu0 0.0
        %718 = vmatprep.subr.mxu0 0.0
        %719 = vmatpush1.msra.mxu0 0.0
        %720 = vmatprep.subr.mxu0 0.0
        %721 = vmatpush1.msra.mxu0 0.0
        %722 = vmatprep.subr.mxu0 0.0
        %723 = vmatpush1.msra.mxu0 %v548
        %724 = vmatprep.subr.mxu0 0.0
        %725 = vmatpush2.msra.mxu0 0.0
        %726 = vmatprep.subr.mxu0 0.0
        %727 = vmatpush2.msra.mxu0 0.0
        %728 = vmatprep.subr.mxu0 0.0
        %729 = vmatpush2.msra.mxu0 0.0
        %730 = vmatprep.subr.mxu0 0.0
        %731 = vmatpush2.msra.mxu0 0.0
        %732 = vmatprep.subr.mxu0 0.0
        %733 = vmatpush2.msra.mxu0 0.0
        %734 = vmatprep.subr.mxu0 0.0
        %735 = vmatpush2.msra.mxu0 0.0
        %736 = vmatprep.subr.mxu0 0.0
        %737 = vmatpush2.msra.mxu0 0.0
        %738 = vmatprep.subr.mxu0 0.0
        %739 = vmatpush2.msra.mxu0 0.0
        %740 = vmatprep.subr.mxu0 0.0
        %741 = vmatpush2.msra.mxu0 0.0
        %742 = vmatprep.subr.mxu0 0.0
        %743 = vmatpush2.msra.mxu0 0.0
        %744 = vmatprep.subr.mxu0 0.0
        %745 = vmatpush2.msra.mxu0 0.0
        %746 = vmatprep.subr.mxu0 0.0
        %747 = vmatpush2.msra.mxu0 0.0
        %748 = vmatprep.subr.mxu0 0.0
        %749 = vmatpush2.msra.mxu0 0.0
        %750 = vmatprep.subr.mxu0 0.0
        %751 = vmatpush2.msra.mxu0 0.0
        %752 = vmatprep.subr.mxu0 0.0
        %753 = vmatpush2.msra.mxu0 0.0
        %754 = vmatprep.subr.mxu0 0.0
        %755 = vmatpush2.msra.mxu0 0.0
        %756 = vmatprep.mubr.f32.mxu0 0.0
        %757 = vmatmul.mubr.f32.gmra.mxu0 %v537
        %v758 = vpop.f32.mrf.mxu0
        %v759 = vadd.f32 %v528, %v758
        %v760 = vpop.f32.mrf.mxu0
        %761 = vdwg.mxu0
        %vm762 = vcmask 1043456
        %v763 = vsel %vm762, %v617, 0.0
        %v764 = vsel %vm762, %v619, 0.0
        %v765 = vadd.f32 %v763, %v764
        %v766 = vsel %vm762, %v688, 0.0
        %v767 = vadd.f32 %v765, %v766
        %v768 = vsel %vm762, %v690, 0.0
        %v769 = vadd.f32 %v767, %v768
        %vm770 = vcmask 93184
        %v771 = vsel %vm770, %v759, 0.0
        %v772 = vadd.f32 %v769, %v771
        %773 = vadd.xlane.f32.xlu0 %v772
        %v774 = vpop.xlane.xlu0 %773
        %v775 = vrcp.pop 524.0
        %v776 = vmul.f32 %v774, %v775
        %v777 = vsub.f32 %v617, %v776
        %v778 = vsub.f32 %v619, %v776
        %v779 = vsub.f32 %v688, %v776
        %v780 = vsub.f32 %v690, %v776
        %v781 = vsub.f32 %v759, %v776
        %v782 = vmul.f32 %v777, %v777
        %v783 = vmul.f32 %v778, %v778
        %v784 = vmul.f32 %v779, %v779
        %v785 = vmul.f32 %v780, %v780
        %v786 = vmul.f32 %v781, %v781
        %v787 = vsel %vm762, %v782, 0.0
        %v788 = vsel %vm762, %v783, 0.0
        %v789 = vadd.f32 %v787, %v788
        %v790 = vsel %vm762, %v784, 0.0
        %v791 = vadd.f32 %v789, %v790
        %v792 = vsel %vm762, %v785, 0.0
        %v793 = vadd.f32 %v791, %v792
        %v794 = vsel %vm770, %v786, 0.0
        %v795 = vadd.f32 %v793, %v794
        %796 = vadd.xlane.f32.xlu0 %v795
        %v797 = vpop.xlane.xlu0 %796
        %v798 = vmul.f32 %v797, %v775
        %v799 = vadd.f32 %v798, 1e-05
        %v800 = vrsqrt.pop %v799
        %v801 = vmul.f32 %v777, %v800
        %v802 = vmul.f32 %v778, %v800
        %v803 = vmul.f32 %v779, %v800
        %v804 = vmul.f32 %v780, %v800
        %v805 = vmul.f32 %v781, %v800
        %v806 = vld [vmem:[%s3] sm:$0x1f]
        %v808 = vlaneseq
        %v809 = vshrl.u32 %v808, 7
        %v810 = vsub.s32 0, %v809
        %v811 = vrot.slane %v806, %v810
        %v812 = vlaneseq
        %v813 = vshrl.u32 %v812, 7
        %v814 = vsub.s32 1, %v813
        %v815 = vrot.slane %v806, %v814
        %v816 = vlaneseq
        %v817 = vshrl.u32 %v816, 7
        %v818 = vsub.s32 2, %v817
        %v819 = vrot.slane %v806, %v818
        %v820 = vlaneseq
        %v821 = vshrl.u32 %v820, 7
        %v822 = vsub.s32 3, %v821
        %v823 = vrot.slane %v806, %v822
        %v824 = vlaneseq
        %v825 = vshrl.u32 %v824, 7
        %v826 = vsub.s32 4, %v825
        %v827 = vrot.slane %v806, %v826
        %v833 = vmul.f32 %v801, %v811
        %v834 = vmul.f32 %v802, %v815
        %v835 = vmul.f32 %v803, %v819
        %v836 = vmul.f32 %v804, %v823
        %v837 = vmul.f32 %v805, %v827
        %v838 = vld [vmem:[%s4] sm:$0x1f]
        %v840 = vlaneseq
        %v841 = vshrl.u32 %v840, 7
        %v842 = vsub.s32 0, %v841
        %v843 = vrot.slane %v838, %v842
        %v844 = vlaneseq
        %v845 = vshrl.u32 %v844, 7
        %v846 = vsub.s32 1, %v845
        %v847 = vrot.slane %v838, %v846
        %v848 = vlaneseq
        %v849 = vshrl.u32 %v848, 7
        %v850 = vsub.s32 2, %v849
        %v851 = vrot.slane %v838, %v850
        %v852 = vlaneseq
        %v853 = vshrl.u32 %v852, 7
        %v854 = vsub.s32 3, %v853
        %v855 = vrot.slane %v838, %v854
        %v856 = vlaneseq
        %v857 = vshrl.u32 %v856, 7
        %v858 = vsub.s32 4, %v857
        %v859 = vrot.slane %v838, %v858
        %v865 = vadd.f32 %v833, %v843
        %v866 = vadd.f32 %v834, %v847
        %v867 = vadd.f32 %v835, %v851
        %v868 = vadd.f32 %v836, %v855
        %v869 = vadd.f32 %v837, %v859
        %v870 = vld [vmem:[%s5] sm:$0xff]
        %v871 = vld [vmem:[%s5 + $0x8] sm:$0xff]
        %v872 = vld [vmem:[%s5 + $0x10] sm:$0xff]
        %v873 = vld [vmem:[%s5 + $0x18] sm:$0xff]
        %v874 = vld [vmem:[%s5 + $0x20] sm:$0xff]
        %v875 = vld [vmem:[%s5 + $0x28] sm:$0xff]
        %v876 = vld [vmem:[%s5 + $0x30] sm:$0xff]
        %v877 = vld [vmem:[%s5 + $0x38] sm:$0xff]
        %v878 = vld [vmem:[%s5 + $0x40] sm:$0xff]
        %v879 = vld [vmem:[%s5 + $0x48] sm:$0xff]
        %v880 = vld [vmem:[%s5 + $0x50] sm:$0xff]
        %v881 = vld [vmem:[%s5 + $0x58] sm:$0xff]
        %v882 = vld [vmem:[%s5 + $0x60] sm:$0xff]
        %v883 = vld [vmem:[%s5 + $0x68] sm:$0xff]
        %v884 = vld [vmem:[%s5 + $0x70] sm:$0xff]
        %v885 = vld [vmem:[%s5 + $0x78] sm:$0xff]
        %v886 = vld [vmem:[%s5 + $0x80] sm:$0xff]
        %v887 = vld [vmem:[%s5 + $0x88] sm:$0xff]
        %v888 = vld [vmem:[%s5 + $0x90] sm:$0xff]
        %v889 = vld [vmem:[%s5 + $0x98] sm:$0xff]
        %v890 = vld [vmem:[%s5 + $0xa0] sm:$0xff]
        %v891 = vld [vmem:[%s5 + $0xa8] sm:$0xff]
        %v892 = vld [vmem:[%s5 + $0xb0] sm:$0xff]
        %v893 = vld [vmem:[%s5 + $0xb8] sm:$0xff]
        %v894 = vld [vmem:[%s5 + $0xc0] sm:$0xff]
        %v895 = vld [vmem:[%s5 + $0xc8] sm:$0xff]
        %v896 = vld [vmem:[%s5 + $0xd0] sm:$0xff]
        %v897 = vld [vmem:[%s5 + $0xd8] sm:$0xff]
        %v898 = vld [vmem:[%s5 + $0xe0] sm:$0xff]
        %v899 = vld [vmem:[%s5 + $0xe8] sm:$0xff]
        %v900 = vld [vmem:[%s5 + $0xf0] sm:$0xff]
        %v901 = vld [vmem:[%s5 + $0xf8] sm:$0xff]
        %v902 = vld [vmem:[%s5 + $0x100] sm:$0xff]
        %v903 = vld [vmem:[%s5 + $0x108] sm:$0xff]
        %v904 = vld [vmem:[%s5 + $0x110] sm:$0xff]
        %v905 = vld [vmem:[%s5 + $0x118] sm:$0xff]
        %v906 = vld [vmem:[%s5 + $0x120] sm:$0xff]
        %v907 = vld [vmem:[%s5 + $0x128] sm:$0xff]
        %v908 = vld [vmem:[%s5 + $0x130] sm:$0xff]
        %v909 = vld [vmem:[%s5 + $0x138] sm:$0xff]
        %v910 = vld [vmem:[%s5 + $0x140] sm:$0xff]
        %v911 = vld [vmem:[%s5 + $0x148] sm:$0xff]
        %v912 = vld [vmem:[%s5 + $0x150] sm:$0xff]
        %v913 = vld [vmem:[%s5 + $0x158] sm:$0xff]
        %v914 = vld [vmem:[%s5 + $0x160] sm:$0xff]
        %v915 = vld [vmem:[%s5 + $0x168] sm:$0xff]
        %v916 = vld [vmem:[%s5 + $0x170] sm:$0xff]
        %v917 = vld [vmem:[%s5 + $0x178] sm:$0xff]
        %v918 = vld [vmem:[%s5 + $0x180] sm:$0xff]
        %v919 = vld [vmem:[%s5 + $0x188] sm:$0xff]
        %v920 = vld [vmem:[%s5 + $0x190] sm:$0xff]
        %v921 = vld [vmem:[%s5 + $0x198] sm:$0xff]
        %v922 = vld [vmem:[%s5 + $0x1a0] sm:$0xff]
        %v923 = vld [vmem:[%s5 + $0x1a8] sm:$0xff]
        %v924 = vld [vmem:[%s5 + $0x1b0] sm:$0xff]
        %v925 = vld [vmem:[%s5 + $0x1b8] sm:$0xff]
        %v926 = vld [vmem:[%s5 + $0x1c0] sm:$0xff]
        %v927 = vld [vmem:[%s5 + $0x1c8] sm:$0xff]
        %v928 = vld [vmem:[%s5 + $0x1d0] sm:$0xff]
        %v929 = vld [vmem:[%s5 + $0x1d8] sm:$0xff]
        %v930 = vld [vmem:[%s5 + $0x1e0] sm:$0xff]
        %v931 = vld [vmem:[%s5 + $0x1e8] sm:$0xff]
        %v932 = vld [vmem:[%s5 + $0x1f0] sm:$0xff]
        %v933 = vld [vmem:[%s5 + $0x1f8] sm:$0xff]
        %v934 = vld [vmem:[%s5 + $0x200] sm:$0xff]
        %v935 = vld [vmem:[%s5 + $0x208] sm:$0xff]
        %v936 = vld [vmem:[%s5 + $0x210] sm:$0xff]
        %v937 = vld [vmem:[%s5 + $0x218] sm:$0xff]
        %v938 = vld [vmem:[%s5 + $0x220] sm:$0xff]
        %v939 = vld [vmem:[%s5 + $0x228] sm:$0xff]
        %v940 = vld [vmem:[%s5 + $0x230] sm:$0xff]
        %v941 = vld [vmem:[%s5 + $0x238] sm:$0xff]
        %v942 = vld [vmem:[%s5 + $0x240] sm:$0xff]
        %v943 = vld [vmem:[%s5 + $0x248] sm:$0xff]
        %v944 = vld [vmem:[%s5 + $0x250] sm:$0xff]
        %v945 = vld [vmem:[%s5 + $0x258] sm:$0xff]
        %v946 = vld [vmem:[%s5 + $0x260] sm:$0xff]
        %v947 = vld [vmem:[%s5 + $0x268] sm:$0xff]
        %v948 = vld [vmem:[%s5 + $0x270] sm:$0xff]
        %v949 = vld [vmem:[%s5 + $0x278] sm:$0xff]
        %v950 = vld [vmem:[%s5 + $0x280] sm:$0xff]
        %v951 = vld [vmem:[%s5 + $0x288] sm:$0xff]
        %v952 = vld [vmem:[%s5 + $0x290] sm:$0xff]
        %v953 = vld [vmem:[%s5 + $0x298] sm:$0xff]
        %v954 = vld [vmem:[%s5 + $0x2a0] sm:$0xff]
        %v955 = vld [vmem:[%s5 + $0x2a8] sm:$0xff]
        %v956 = vld [vmem:[%s5 + $0x2b0] sm:$0xff]
        %v957 = vld [vmem:[%s5 + $0x2b8] sm:$0xff]
        %v958 = vld [vmem:[%s5 + $0x2c0] sm:$0xff]
        %v959 = vld [vmem:[%s5 + $0x2c8] sm:$0xff]
        %v960 = vld [vmem:[%s5 + $0x2d0] sm:$0xff]
        %v961 = vld [vmem:[%s5 + $0x2d8] sm:$0xff]
        %v962 = vld [vmem:[%s5 + $0x2e0] sm:$0xff]
        %v963 = vld [vmem:[%s5 + $0x2e8] sm:$0xff]
        %v964 = vld [vmem:[%s5 + $0x2f0] sm:$0xff]
        %v965 = vld [vmem:[%s5 + $0x2f8] sm:$0xff]
        %v966 = vld [vmem:[%s5 + $0x300] sm:$0xff]
        %v967 = vld [vmem:[%s5 + $0x308] sm:$0xff]
        %v968 = vld [vmem:[%s5 + $0x310] sm:$0xff]
        %v969 = vld [vmem:[%s5 + $0x318] sm:$0xff]
        %v970 = vld [vmem:[%s5 + $0x320] sm:$0xff]
        %v971 = vld [vmem:[%s5 + $0x328] sm:$0xff]
        %v972 = vld [vmem:[%s5 + $0x330] sm:$0xff]
        %v973 = vld [vmem:[%s5 + $0x338] sm:$0xff]
        %v974 = vld [vmem:[%s5 + $0x340] sm:$0xff]
        %v975 = vld [vmem:[%s5 + $0x348] sm:$0xff]
        %v976 = vld [vmem:[%s5 + $0x350] sm:$0xff]
        %v977 = vld [vmem:[%s5 + $0x358] sm:$0xff]
        %v978 = vld [vmem:[%s5 + $0x360] sm:$0xff]
        %v979 = vld [vmem:[%s5 + $0x368] sm:$0xff]
        %v980 = vld [vmem:[%s5 + $0x370] sm:$0xff]
        %v981 = vld [vmem:[%s5 + $0x378] sm:$0xff]
        %v982 = vld [vmem:[%s5 + $0x380] sm:$0xff]
        %v983 = vld [vmem:[%s5 + $0x388] sm:$0xff]
        %v984 = vld [vmem:[%s5 + $0x390] sm:$0xff]
        %v985 = vld [vmem:[%s5 + $0x398] sm:$0xff]
        %v986 = vld [vmem:[%s5 + $0x3a0] sm:$0xff]
        %v987 = vld [vmem:[%s5 + $0x3a8] sm:$0xff]
        %v988 = vld [vmem:[%s5 + $0x3b0] sm:$0xff]
        %v989 = vld [vmem:[%s5 + $0x3b8] sm:$0xff]
        %v990 = vld [vmem:[%s5 + $0x3c0] sm:$0xff]
        %v991 = vld [vmem:[%s5 + $0x3c8] sm:$0xff]
        %v992 = vld [vmem:[%s5 + $0x3d0] sm:$0xff]
        %v993 = vld [vmem:[%s5 + $0x3d8] sm:$0xff]
        %v994 = vld [vmem:[%s5 + $0x3e0] sm:$0xff]
        %v995 = vld [vmem:[%s5 + $0x3e8] sm:$0xff]
        %v996 = vld [vmem:[%s5 + $0x3f0] sm:$0xff]
        %v997 = vld [vmem:[%s5 + $0x3f8] sm:$0xff]
        %v998 = vld [vmem:[%s5 + $0x400] sm:$0xff]
        %v999 = vld [vmem:[%s5 + $0x408] sm:$0xff]
        %v1000 = vld [vmem:[%s5 + $0x410] sm:$0xff]
        %v1001 = vld [vmem:[%s5 + $0x418] sm:$0xff]
        %v1002 = vld [vmem:[%s5 + $0x420] sm:$0xff]
        %v1003 = vld [vmem:[%s5 + $0x428] sm:$0xff]
        %v1004 = vld [vmem:[%s5 + $0x430] sm:$0xff]
        %v1005 = vld [vmem:[%s5 + $0x438] sm:$0xff]
        %v1006 = vld [vmem:[%s5 + $0x440] sm:$0xff]
        %v1007 = vld [vmem:[%s5 + $0x448] sm:$0xff]
        %v1008 = vld [vmem:[%s5 + $0x450] sm:$0xff]
        %v1009 = vld [vmem:[%s5 + $0x458] sm:$0xff]
        %v1010 = vld [vmem:[%s5 + $0x460] sm:$0xff]
        %v1011 = vld [vmem:[%s5 + $0x468] sm:$0xff]
        %v1012 = vld [vmem:[%s5 + $0x470] sm:$0xff]
        %v1013 = vld [vmem:[%s5 + $0x478] sm:$0xff]
        %v1014 = vld [vmem:[%s5 + $0x480] sm:$0xff]
        %v1015 = vld [vmem:[%s5 + $0x488] sm:$0xff]
        %v1016 = vld [vmem:[%s5 + $0x490] sm:$0xff]
        %v1017 = vld [vmem:[%s5 + $0x498] sm:$0xff]
        %v1018 = vld [vmem:[%s5 + $0x4a0] sm:$0xff]
        %v1019 = vld [vmem:[%s5 + $0x4a8] sm:$0xff]
        %v1020 = vld [vmem:[%s5 + $0x4b0] sm:$0xff]
        %v1021 = vld [vmem:[%s5 + $0x4b8] sm:$0xff]
        %v1022 = vld [vmem:[%s5 + $0x4c0] sm:$0xff]
        %v1023 = vld [vmem:[%s5 + $0x4c8] sm:$0xff]
        %v1024 = vld [vmem:[%s5 + $0x4d0] sm:$0xff]
        %v1025 = vld [vmem:[%s5 + $0x4d8] sm:$0xff]
        %v1026 = vld [vmem:[%s5 + $0x4e0] sm:$0xff]
        %v1027 = vld [vmem:[%s5 + $0x4e8] sm:$0xff]
        %v1028 = vld [vmem:[%s5 + $0x4f0] sm:$0xff]
        %v1029 = vld [vmem:[%s5 + $0x4f8] sm:$0xff]
        %v1030 = vld [vmem:[%s5 + $0x500] sm:$0xff]
        %v1031 = vld [vmem:[%s5 + $0x508] sm:$0xff]
        %v1032 = vld [vmem:[%s5 + $0x510] sm:$0xff]
        %v1033 = vld [vmem:[%s5 + $0x518] sm:$0xff]
        %v1034 = vld [vmem:[%s5 + $0x520] sm:$0xff]
        %v1035 = vld [vmem:[%s5 + $0x528] sm:$0xff]
        %v1036 = vld [vmem:[%s5 + $0x530] sm:$0xff]
        %v1037 = vld [vmem:[%s5 + $0x538] sm:$0xff]
        %v1038 = vld [vmem:[%s5 + $0x540] sm:$0xff]
        %v1039 = vld [vmem:[%s5 + $0x548] sm:$0xff]
        %v1040 = vld [vmem:[%s5 + $0x550] sm:$0xff]
        %v1041 = vld [vmem:[%s5 + $0x558] sm:$0xff]
        %v1042 = vld [vmem:[%s5 + $0x560] sm:$0xff]
        %v1043 = vld [vmem:[%s5 + $0x568] sm:$0xff]
        %v1044 = vld [vmem:[%s5 + $0x570] sm:$0xff]
        %v1045 = vld [vmem:[%s5 + $0x578] sm:$0xff]
        %v1046 = vld [vmem:[%s5 + $0x580] sm:$0xff]
        %v1047 = vld [vmem:[%s5 + $0x588] sm:$0xff]
        %v1048 = vld [vmem:[%s5 + $0x590] sm:$0xff]
        %v1049 = vld [vmem:[%s5 + $0x598] sm:$0xff]
        %v1050 = vld [vmem:[%s5 + $0x5a0] sm:$0xff]
        %v1051 = vld [vmem:[%s5 + $0x5a8] sm:$0xff]
        %v1052 = vld [vmem:[%s5 + $0x5b0] sm:$0xff]
        %v1053 = vld [vmem:[%s5 + $0x5b8] sm:$0xff]
        %v1054 = vld [vmem:[%s5 + $0x5c0] sm:$0xff]
        %v1055 = vld [vmem:[%s5 + $0x5c8] sm:$0xff]
        %v1056 = vld [vmem:[%s5 + $0x5d0] sm:$0xff]
        %v1057 = vld [vmem:[%s5 + $0x5d8] sm:$0xff]
        %v1058 = vld [vmem:[%s5 + $0x5e0] sm:$0xff]
        %v1059 = vld [vmem:[%s5 + $0x5e8] sm:$0xff]
        %v1060 = vld [vmem:[%s5 + $0x5f0] sm:$0xff]
        %v1061 = vld [vmem:[%s5 + $0x5f8] sm:$0xff]
        %v1062 = vld [vmem:[%s5 + $0x600] sm:$0xff]
        %v1063 = vld [vmem:[%s5 + $0x608] sm:$0xff]
        %v1064 = vld [vmem:[%s5 + $0x610] sm:$0xff]
        %v1065 = vld [vmem:[%s5 + $0x618] sm:$0xf]
        %v1066 = vld [vmem:[%s5 + $0x620] sm:$0xf]
        %v1067 = vld [vmem:[%s5 + $0x628] sm:$0xf]
        %vm1068 = vcmask 97280
        %v1070 = vsel %vm1068, %v869, 0
        %v1073 = vsel %vm762, %v1065, 0
        %v1076 = vsel %vm762, %v1066, 0
        %v1079 = vsel %vm762, %v1067, 0
        %1081 = vmatprep.subr.mxu0 %v916
        %1082 = vmatpush1.msra.mxu0 %v915
        %1083 = vmatprep.subr.mxu0 %v913
        %1084 = vmatpush1.msra.mxu0 %v912
        %1085 = vmatprep.subr.mxu0 %v910
        %1086 = vmatpush1.msra.mxu0 %v909
        %1087 = vmatprep.subr.mxu0 %v907
        %1088 = vmatpush1.msra.mxu0 %v906
        %1089 = vmatprep.subr.mxu0 %v904
        %1090 = vmatpush1.msra.mxu0 %v903
        %1091 = vmatprep.subr.mxu0 %v901
        %1092 = vmatpush1.msra.mxu0 %v900
        %1093 = vmatprep.subr.mxu0 %v898
        %1094 = vmatpush1.msra.mxu0 %v897
        %1095 = vmatprep.subr.mxu0 %v895
        %1096 = vmatpush1.msra.mxu0 %v894
        %1097 = vmatprep.subr.mxu0 %v892
        %1098 = vmatpush1.msra.mxu0 %v891
        %1099 = vmatprep.subr.mxu0 %v889
        %1100 = vmatpush1.msra.mxu0 %v888
        %1101 = vmatprep.subr.mxu0 %v886
        %1102 = vmatpush1.msra.mxu0 %v885
        %1103 = vmatprep.subr.mxu0 %v883
        %1104 = vmatpush1.msra.mxu0 %v882
        %1105 = vmatprep.subr.mxu0 %v880
        %1106 = vmatpush1.msra.mxu0 %v879
        %1107 = vmatprep.subr.mxu0 %v877
        %1108 = vmatpush1.msra.mxu0 %v876
        %1109 = vmatprep.subr.mxu0 %v874
        %1110 = vmatpush1.msra.mxu0 %v873
        %1111 = vmatprep.subr.mxu0 %v871
        %1112 = vmatpush1.msra.mxu0 %v870
        %1113 = vmatprep.subr.mxu0 %v964
        %1114 = vmatpush2.msra.mxu0 %v963
        %1115 = vmatprep.subr.mxu0 %v961
        %1116 = vmatpush2.msra.mxu0 %v960
        %1117 = vmatprep.subr.mxu0 %v958
        %1118 = vmatpush2.msra.mxu0 %v957
        %1119 = vmatprep.subr.mxu0 %v955
        %1120 = vmatpush2.msra.mxu0 %v954
        %1121 = vmatprep.subr.mxu0 %v952
        %1122 = vmatpush2.msra.mxu0 %v951
        %1123 = vmatprep.subr.mxu0 %v949
        %1124 = vmatpush2.msra.mxu0 %v948
        %1125 = vmatprep.subr.mxu0 %v946
        %1126 = vmatpush2.msra.mxu0 %v945
        %1127 = vmatprep.subr.mxu0 %v943
        %1128 = vmatpush2.msra.mxu0 %v942
        %1129 = vmatprep.subr.mxu0 %v940
        %1130 = vmatpush2.msra.mxu0 %v939
        %1131 = vmatprep.subr.mxu0 %v937
        %1132 = vmatpush2.msra.mxu0 %v936
        %1133 = vmatprep.subr.mxu0 %v934
        %1134 = vmatpush2.msra.mxu0 %v933
        %1135 = vmatprep.subr.mxu0 %v931
        %1136 = vmatpush2.msra.mxu0 %v930
        %1137 = vmatprep.subr.mxu0 %v928
        %1138 = vmatpush2.msra.mxu0 %v927
        %1139 = vmatprep.subr.mxu0 %v925
        %1140 = vmatpush2.msra.mxu0 %v924
        %1141 = vmatprep.subr.mxu0 %v922
        %1142 = vmatpush2.msra.mxu0 %v921
        %1143 = vmatprep.subr.mxu0 %v919
        %1144 = vmatpush2.msra.mxu0 %v918
        %1145 = vmatprep.mubr.f32.mxu0 %v866
        %1146 = vmatmul.mubr.f32.gmra.mxu0 %v865
        %v1147 = vpop.f32.mrf.mxu0
        %v1148 = vadd.f32 0.0, %v1147
        %v1149 = vpop.f32.mrf.mxu0
        %v1150 = vadd.f32 0.0, %v1149
        %1151 = vdwg.mxu0
        %1152 = vmatprep.subr.mxu0 %v1012
        %1153 = vmatpush1.msra.mxu0 %v1011
        %1154 = vmatprep.subr.mxu0 %v1009
        %1155 = vmatpush1.msra.mxu0 %v1008
        %1156 = vmatprep.subr.mxu0 %v1006
        %1157 = vmatpush1.msra.mxu0 %v1005
        %1158 = vmatprep.subr.mxu0 %v1003
        %1159 = vmatpush1.msra.mxu0 %v1002
        %1160 = vmatprep.subr.mxu0 %v1000
        %1161 = vmatpush1.msra.mxu0 %v999
        %1162 = vmatprep.subr.mxu0 %v997
        %1163 = vmatpush1.msra.mxu0 %v996
        %1164 = vmatprep.subr.mxu0 %v994
        %1165 = vmatpush1.msra.mxu0 %v993
        %1166 = vmatprep.subr.mxu0 %v991
        %1167 = vmatpush1.msra.mxu0 %v990
        %1168 = vmatprep.subr.mxu0 %v988
        %1169 = vmatpush1.msra.mxu0 %v987
        %1170 = vmatprep.subr.mxu0 %v985
        %1171 = vmatpush1.msra.mxu0 %v984
        %1172 = vmatprep.subr.mxu0 %v982
        %1173 = vmatpush1.msra.mxu0 %v981
        %1174 = vmatprep.subr.mxu0 %v979
        %1175 = vmatpush1.msra.mxu0 %v978
        %1176 = vmatprep.subr.mxu0 %v976
        %1177 = vmatpush1.msra.mxu0 %v975
        %1178 = vmatprep.subr.mxu0 %v973
        %1179 = vmatpush1.msra.mxu0 %v972
        %1180 = vmatprep.subr.mxu0 %v970
        %1181 = vmatpush1.msra.mxu0 %v969
        %1182 = vmatprep.subr.mxu0 %v967
        %1183 = vmatpush1.msra.mxu0 %v966
        %1184 = vmatprep.subr.mxu0 %v1060
        %1185 = vmatpush2.msra.mxu0 %v1059
        %1186 = vmatprep.subr.mxu0 %v1057
        %1187 = vmatpush2.msra.mxu0 %v1056
        %1188 = vmatprep.subr.mxu0 %v1054
        %1189 = vmatpush2.msra.mxu0 %v1053
        %1190 = vmatprep.subr.mxu0 %v1051
        %1191 = vmatpush2.msra.mxu0 %v1050
        %1192 = vmatprep.subr.mxu0 %v1048
        %1193 = vmatpush2.msra.mxu0 %v1047
        %1194 = vmatprep.subr.mxu0 %v1045
        %1195 = vmatpush2.msra.mxu0 %v1044
        %1196 = vmatprep.subr.mxu0 %v1042
        %1197 = vmatpush2.msra.mxu0 %v1041
        %1198 = vmatprep.subr.mxu0 %v1039
        %1199 = vmatpush2.msra.mxu0 %v1038
        %1200 = vmatprep.subr.mxu0 %v1036
        %1201 = vmatpush2.msra.mxu0 %v1035
        %1202 = vmatprep.subr.mxu0 %v1033
        %1203 = vmatpush2.msra.mxu0 %v1032
        %1204 = vmatprep.subr.mxu0 %v1030
        %1205 = vmatpush2.msra.mxu0 %v1029
        %1206 = vmatprep.subr.mxu0 %v1027
        %1207 = vmatpush2.msra.mxu0 %v1026
        %1208 = vmatprep.subr.mxu0 %v1024
        %1209 = vmatpush2.msra.mxu0 %v1023
        %1210 = vmatprep.subr.mxu0 %v1021
        %1211 = vmatpush2.msra.mxu0 %v1020
        %1212 = vmatprep.subr.mxu0 %v1018
        %1213 = vmatpush2.msra.mxu0 %v1017
        %1214 = vmatprep.subr.mxu0 %v1015
        %1215 = vmatpush2.msra.mxu0 %v1014
        %1216 = vmatprep.mubr.f32.mxu0 %v868
        %1217 = vmatmul.mubr.f32.gmra.mxu0 %v867
        %v1218 = vpop.f32.mrf.mxu0
        %v1219 = vadd.f32 %v1148, %v1218
        %v1220 = vpop.f32.mrf.mxu0
        %v1221 = vadd.f32 %v1150, %v1220
        %1222 = vdwg.mxu0
        %1223 = vmatprep.subr.mxu0 0.0
        %1224 = vmatpush1.msra.mxu0 0.0
        %1225 = vmatprep.subr.mxu0 0.0
        %1226 = vmatpush1.msra.mxu0 0.0
        %1227 = vmatprep.subr.mxu0 0.0
        %1228 = vmatpush1.msra.mxu0 0.0
        %1229 = vmatprep.subr.mxu0 0.0
        %1230 = vmatpush1.msra.mxu0 0.0
        %1231 = vmatprep.subr.mxu0 0.0
        %1232 = vmatpush1.msra.mxu0 0.0
        %1233 = vmatprep.subr.mxu0 0.0
        %1234 = vmatpush1.msra.mxu0 0.0
        %1235 = vmatprep.subr.mxu0 0.0
        %1236 = vmatpush1.msra.mxu0 0.0
        %1237 = vmatprep.subr.mxu0 0.0
        %1238 = vmatpush1.msra.mxu0 0.0
        %1239 = vmatprep.subr.mxu0 0.0
        %1240 = vmatpush1.msra.mxu0 0.0
        %1241 = vmatprep.subr.mxu0 0.0
        %1242 = vmatpush1.msra.mxu0 0.0
        %1243 = vmatprep.subr.mxu0 0.0
        %1244 = vmatpush1.msra.mxu0 0.0
        %1245 = vmatprep.subr.mxu0 0.0
        %1246 = vmatpush1.msra.mxu0 0.0
        %1247 = vmatprep.subr.mxu0 0.0
        %1248 = vmatpush1.msra.mxu0 0.0
        %1249 = vmatprep.subr.mxu0 0.0
        %1250 = vmatpush1.msra.mxu0 0.0
        %1251 = vmatprep.subr.mxu0 %v1076
        %1252 = vmatpush1.msra.mxu0 %v1073
        %1253 = vmatprep.subr.mxu0 %v1063
        %1254 = vmatpush1.msra.mxu0 %v1062
        %1255 = vmatprep.subr.mxu0 0.0
        %1256 = vmatpush2.msra.mxu0 0.0
        %1257 = vmatprep.subr.mxu0 0.0
        %1258 = vmatpush2.msra.mxu0 0.0
        %1259 = vmatprep.subr.mxu0 0.0
        %1260 = vmatpush2.msra.mxu0 0.0
        %1261 = vmatprep.subr.mxu0 0.0
        %1262 = vmatpush2.msra.mxu0 0.0
        %1263 = vmatprep.subr.mxu0 0.0
        %1264 = vmatpush2.msra.mxu0 0.0
        %1265 = vmatprep.subr.mxu0 0.0
        %1266 = vmatpush2.msra.mxu0 0.0
        %1267 = vmatprep.subr.mxu0 0.0
        %1268 = vmatpush2.msra.mxu0 0.0
        %1269 = vmatprep.subr.mxu0 0.0
        %1270 = vmatpush2.msra.mxu0 0.0
        %1271 = vmatprep.subr.mxu0 0.0
        %1272 = vmatpush2.msra.mxu0 0.0
        %1273 = vmatprep.subr.mxu0 0.0
        %1274 = vmatpush2.msra.mxu0 0.0
        %1275 = vmatprep.subr.mxu0 0.0
        %1276 = vmatpush2.msra.mxu0 0.0
        %1277 = vmatprep.subr.mxu0 0.0
        %1278 = vmatpush2.msra.mxu0 0.0
        %1279 = vmatprep.subr.mxu0 0.0
        %1280 = vmatpush2.msra.mxu0 0.0
        %1281 = vmatprep.subr.mxu0 0.0
        %1282 = vmatpush2.msra.mxu0 0.0
        %1283 = vmatprep.subr.mxu0 0.0
        %1284 = vmatpush2.msra.mxu0 0.0
        %1285 = vmatprep.subr.mxu0 0.0
        %1286 = vmatpush2.msra.mxu0 0.0
        %1287 = vmatprep.mubr.f32.mxu0 0.0
        %1288 = vmatmul.mubr.f32.gmra.mxu0 %v1070
        %v1289 = vpop.f32.mrf.mxu0
        %v1290 = vadd.f32 %v1219, %v1289
        %v1291 = vpop.f32.mrf.mxu0
        %v1292 = vadd.f32 %v1221, %v1291
        %1293 = vdwg.mxu0
        %1294 = vmatprep.subr.mxu0 0.0
        %1295 = vmatpush1.msra.mxu0 %v917
        %1296 = vmatprep.subr.mxu0 0.0
        %1297 = vmatpush1.msra.mxu0 %v914
        %1298 = vmatprep.subr.mxu0 0.0
        %1299 = vmatpush1.msra.mxu0 %v911
        %1300 = vmatprep.subr.mxu0 0.0
        %1301 = vmatpush1.msra.mxu0 %v908
        %1302 = vmatprep.subr.mxu0 0.0
        %1303 = vmatpush1.msra.mxu0 %v905
        %1304 = vmatprep.subr.mxu0 0.0
        %1305 = vmatpush1.msra.mxu0 %v902
        %1306 = vmatprep.subr.mxu0 0.0
        %1307 = vmatpush1.msra.mxu0 %v899
        %1308 = vmatprep.subr.mxu0 0.0
        %1309 = vmatpush1.msra.mxu0 %v896
        %1310 = vmatprep.subr.mxu0 0.0
        %1311 = vmatpush1.msra.mxu0 %v893
        %1312 = vmatprep.subr.mxu0 0.0
        %1313 = vmatpush1.msra.mxu0 %v890
        %1314 = vmatprep.subr.mxu0 0.0
        %1315 = vmatpush1.msra.mxu0 %v887
        %1316 = vmatprep.subr.mxu0 0.0
        %1317 = vmatpush1.msra.mxu0 %v884
        %1318 = vmatprep.subr.mxu0 0.0
        %1319 = vmatpush1.msra.mxu0 %v881
        %1320 = vmatprep.subr.mxu0 0.0
        %1321 = vmatpush1.msra.mxu0 %v878
        %1322 = vmatprep.subr.mxu0 0.0
        %1323 = vmatpush1.msra.mxu0 %v875
        %1324 = vmatprep.subr.mxu0 0.0
        %1325 = vmatpush1.msra.mxu0 %v872
        %1326 = vmatprep.subr.mxu0 0.0
        %1327 = vmatpush2.msra.mxu0 %v965
        %1328 = vmatprep.subr.mxu0 0.0
        %1329 = vmatpush2.msra.mxu0 %v962
        %1330 = vmatprep.subr.mxu0 0.0
        %1331 = vmatpush2.msra.mxu0 %v959
        %1332 = vmatprep.subr.mxu0 0.0
        %1333 = vmatpush2.msra.mxu0 %v956
        %1334 = vmatprep.subr.mxu0 0.0
        %1335 = vmatpush2.msra.mxu0 %v953
        %1336 = vmatprep.subr.mxu0 0.0
        %1337 = vmatpush2.msra.mxu0 %v950
        %1338 = vmatprep.subr.mxu0 0.0
        %1339 = vmatpush2.msra.mxu0 %v947
        %1340 = vmatprep.subr.mxu0 0.0
        %1341 = vmatpush2.msra.mxu0 %v944
        %1342 = vmatprep.subr.mxu0 0.0
        %1343 = vmatpush2.msra.mxu0 %v941
        %1344 = vmatprep.subr.mxu0 0.0
        %1345 = vmatpush2.msra.mxu0 %v938
        %1346 = vmatprep.subr.mxu0 0.0
        %1347 = vmatpush2.msra.mxu0 %v935
        %1348 = vmatprep.subr.mxu0 0.0
        %1349 = vmatpush2.msra.mxu0 %v932
        %1350 = vmatprep.subr.mxu0 0.0
        %1351 = vmatpush2.msra.mxu0 %v929
        %1352 = vmatprep.subr.mxu0 0.0
        %1353 = vmatpush2.msra.mxu0 %v926
        %1354 = vmatprep.subr.mxu0 0.0
        %1355 = vmatpush2.msra.mxu0 %v923
        %1356 = vmatprep.subr.mxu0 0.0
        %1357 = vmatpush2.msra.mxu0 %v920
        %1358 = vmatprep.mubr.f32.mxu0 %v866
        %1359 = vmatmul.mubr.f32.gmra.mxu0 %v865
        %v1360 = vpop.f32.mrf.mxu0
        %v1361 = vadd.f32 0.0, %v1360
        %v1362 = vpop.f32.mrf.mxu0
        %1363 = vdwg.mxu0
        %1364 = vmatprep.subr.mxu0 0.0
        %1365 = vmatpush1.msra.mxu0 %v1013
        %1366 = vmatprep.subr.mxu0 0.0
        %1367 = vmatpush1.msra.mxu0 %v1010
        %1368 = vmatprep.subr.mxu0 0.0
        %1369 = vmatpush1.msra.mxu0 %v1007
        %1370 = vmatprep.subr.mxu0 0.0
        %1371 = vmatpush1.msra.mxu0 %v1004
        %1372 = vmatprep.subr.mxu0 0.0
        %1373 = vmatpush1.msra.mxu0 %v1001
        %1374 = vmatprep.subr.mxu0 0.0
        %1375 = vmatpush1.msra.mxu0 %v998
        %1376 = vmatprep.subr.mxu0 0.0
        %1377 = vmatpush1.msra.mxu0 %v995
        %1378 = vmatprep.subr.mxu0 0.0
        %1379 = vmatpush1.msra.mxu0 %v992
        %1380 = vmatprep.subr.mxu0 0.0
        %1381 = vmatpush1.msra.mxu0 %v989
        %1382 = vmatprep.subr.mxu0 0.0
        %1383 = vmatpush1.msra.mxu0 %v986
        %1384 = vmatprep.subr.mxu0 0.0
        %1385 = vmatpush1.msra.mxu0 %v983
        %1386 = vmatprep.subr.mxu0 0.0
        %1387 = vmatpush1.msra.mxu0 %v980
        %1388 = vmatprep.subr.mxu0 0.0
        %1389 = vmatpush1.msra.mxu0 %v977
        %1390 = vmatprep.subr.mxu0 0.0
        %1391 = vmatpush1.msra.mxu0 %v974
        %1392 = vmatprep.subr.mxu0 0.0
        %1393 = vmatpush1.msra.mxu0 %v971
        %1394 = vmatprep.subr.mxu0 0.0
        %1395 = vmatpush1.msra.mxu0 %v968
        %1396 = vmatprep.subr.mxu0 0.0
        %1397 = vmatpush2.msra.mxu0 %v1061
        %1398 = vmatprep.subr.mxu0 0.0
        %1399 = vmatpush2.msra.mxu0 %v1058
        %1400 = vmatprep.subr.mxu0 0.0
        %1401 = vmatpush2.msra.mxu0 %v1055
        %1402 = vmatprep.subr.mxu0 0.0
        %1403 = vmatpush2.msra.mxu0 %v1052
        %1404 = vmatprep.subr.mxu0 0.0
        %1405 = vmatpush2.msra.mxu0 %v1049
        %1406 = vmatprep.subr.mxu0 0.0
        %1407 = vmatpush2.msra.mxu0 %v1046
        %1408 = vmatprep.subr.mxu0 0.0
        %1409 = vmatpush2.msra.mxu0 %v1043
        %1410 = vmatprep.subr.mxu0 0.0
        %1411 = vmatpush2.msra.mxu0 %v1040
        %1412 = vmatprep.subr.mxu0 0.0
        %1413 = vmatpush2.msra.mxu0 %v1037
        %1414 = vmatprep.subr.mxu0 0.0
        %1415 = vmatpush2.msra.mxu0 %v1034
        %1416 = vmatprep.subr.mxu0 0.0
        %1417 = vmatpush2.msra.mxu0 %v1031
        %1418 = vmatprep.subr.mxu0 0.0
        %1419 = vmatpush2.msra.mxu0 %v1028
        %1420 = vmatprep.subr.mxu0 0.0
        %1421 = vmatpush2.msra.mxu0 %v1025
        %1422 = vmatprep.subr.mxu0 0.0
        %1423 = vmatpush2.msra.mxu0 %v1022
        %1424 = vmatprep.subr.mxu0 0.0
        %1425 = vmatpush2.msra.mxu0 %v1019
        %1426 = vmatprep.subr.mxu0 0.0
        %1427 = vmatpush2.msra.mxu0 %v1016
        %1428 = vmatprep.mubr.f32.mxu0 %v868
        %1429 = vmatmul.mubr.f32.gmra.mxu0 %v867
        %v1430 = vpop.f32.mrf.mxu0
        %v1431 = vadd.f32 %v1361, %v1430
        %v1432 = vpop.f32.mrf.mxu0
        %1433 = vdwg.mxu0
        %1434 = vmatprep.subr.mxu0 0.0
        %1435 = vmatpush1.msra.mxu0 0.0
        %1436 = vmatprep.subr.mxu0 0.0
        %1437 = vmatpush1.msra.mxu0 0.0
        %1438 = vmatprep.subr.mxu0 0.0
        %1439 = vmatpush1.msra.mxu0 0.0
        %1440 = vmatprep.subr.mxu0 0.0
        %1441 = vmatpush1.msra.mxu0 0.0
        %1442 = vmatprep.subr.mxu0 0.0
        %1443 = vmatpush1.msra.mxu0 0.0
        %1444 = vmatprep.subr.mxu0 0.0
        %1445 = vmatpush1.msra.mxu0 0.0
        %1446 = vmatprep.subr.mxu0 0.0
        %1447 = vmatpush1.msra.mxu0 0.0
        %1448 = vmatprep.subr.mxu0 0.0
        %1449 = vmatpush1.msra.mxu0 0.0
        %1450 = vmatprep.subr.mxu0 0.0
        %1451 = vmatpush1.msra.mxu0 0.0
        %1452 = vmatprep.subr.mxu0 0.0
        %1453 = vmatpush1.msra.mxu0 0.0
        %1454 = vmatprep.subr.mxu0 0.0
        %1455 = vmatpush1.msra.mxu0 0.0
        %1456 = vmatprep.subr.mxu0 0.0
        %1457 = vmatpush1.msra.mxu0 0.0
        %1458 = vmatprep.subr.mxu0 0.0
        %1459 = vmatpush1.msra.mxu0 0.0
        %1460 = vmatprep.subr.mxu0 0.0
        %1461 = vmatpush1.msra.mxu0 0.0
        %1462 = vmatprep.subr.mxu0 0.0
        %1463 = vmatpush1.msra.mxu0 %v1079
        %1464 = vmatprep.subr.mxu0 0.0
        %1465 = vmatpush1.msra.mxu0 %v1064
        %1466 = vmatprep.subr.mxu0 0.0
        %1467 = vmatpush2.msra.mxu0 0.0
        %1468 = vmatprep.subr.mxu0 0.0
        %1469 = vmatpush2.msra.mxu0 0.0
        %1470 = vmatprep.subr.mxu0 0.0
        %1471 = vmatpush2.msra.mxu0 0.0
        %1472 = vmatprep.subr.mxu0 0.0
        %1473 = vmatpush2.msra.mxu0 0.0
        %1474 = vmatprep.subr.mxu0 0.0
        %1475 = vmatpush2.msra.mxu0 0.0
        %1476 = vmatprep.subr.mxu0 0.0
        %1477 = vmatpush2.msra.mxu0 0.0
        %1478 = vmatprep.subr.mxu0 0.0
        %1479 = vmatpush2.msra.mxu0 0.0
        %1480 = vmatprep.subr.mxu0 0.0
        %1481 = vmatpush2.msra.mxu0 0.0
        %1482 = vmatprep.subr.mxu0 0.0
        %1483 = vmatpush2.msra.mxu0 0.0
        %1484 = vmatprep.subr.mxu0 0.0
        %1485 = vmatpush2.msra.mxu0 0.0
        %1486 = vmatprep.subr.mxu0 0.0
        %1487 = vmatpush2.msra.mxu0 0.0
        %1488 = vmatprep.subr.mxu0 0.0
        %1489 = vmatpush2.msra.mxu0 0.0
        %1490 = vmatprep.subr.mxu0 0.0
        %1491 = vmatpush2.msra.mxu0 0.0
        %1492 = vmatprep.subr.mxu0 0.0
        %1493 = vmatpush2.msra.mxu0 0.0
        %1494 = vmatprep.subr.mxu0 0.0
        %1495 = vmatpush2.msra.mxu0 0.0
        %1496 = vmatprep.subr.mxu0 0.0
        %1497 = vmatpush2.msra.mxu0 0.0
        %1498 = vmatprep.mubr.f32.mxu0 0.0
        %1499 = vmatmul.mubr.f32.gmra.mxu0 %v1070
        %v1500 = vpop.f32.mrf.mxu0
        %v1501 = vadd.f32 %v1431, %v1500
        %v1502 = vpop.f32.mrf.mxu0
        %1503 = vdwg.mxu0
        %v1504 = vld [vmem:[%s6] sm:$0xff]
        %v1505 = vld [vmem:[%s6 + $0x8] sm:$0xff]
        %v1506 = vld [vmem:[%s6 + $0x10] sm:$0xff]
        %v1507 = vld [vmem:[%s6 + $0x18] sm:$0xff]
        %v1508 = vld [vmem:[%s6 + $0x20] sm:$0xff]
        %v1509 = vld [vmem:[%s6 + $0x28] sm:$0xff]
        %v1510 = vld [vmem:[%s6 + $0x30] sm:$0xff]
        %v1511 = vld [vmem:[%s6 + $0x38] sm:$0xff]
        %v1512 = vld [vmem:[%s6 + $0x40] sm:$0xff]
        %v1513 = vld [vmem:[%s6 + $0x48] sm:$0xff]
        %v1514 = vld [vmem:[%s6 + $0x50] sm:$0xff]
        %v1515 = vld [vmem:[%s6 + $0x58] sm:$0xff]
        %v1516 = vld [vmem:[%s6 + $0x60] sm:$0xff]
        %v1517 = vld [vmem:[%s6 + $0x68] sm:$0xff]
        %v1518 = vld [vmem:[%s6 + $0x70] sm:$0xff]
        %v1519 = vld [vmem:[%s6 + $0x78] sm:$0xff]
        %v1520 = vld [vmem:[%s6 + $0x80] sm:$0xff]
        %v1521 = vld [vmem:[%s6 + $0x88] sm:$0xff]
        %v1522 = vld [vmem:[%s6 + $0x90] sm:$0xff]
        %v1523 = vld [vmem:[%s6 + $0x98] sm:$0xff]
        %v1524 = vld [vmem:[%s6 + $0xa0] sm:$0xff]
        %v1525 = vld [vmem:[%s6 + $0xa8] sm:$0xff]
        %v1526 = vld [vmem:[%s6 + $0xb0] sm:$0xff]
        %v1527 = vld [vmem:[%s6 + $0xb8] sm:$0xff]
        %v1528 = vld [vmem:[%s6 + $0xc0] sm:$0xff]
        %v1529 = vld [vmem:[%s6 + $0xc8] sm:$0xff]
        %v1530 = vld [vmem:[%s6 + $0xd0] sm:$0xff]
        %v1531 = vld [vmem:[%s6 + $0xd8] sm:$0xff]
        %v1532 = vld [vmem:[%s6 + $0xe0] sm:$0xff]
        %v1533 = vld [vmem:[%s6 + $0xe8] sm:$0xff]
        %v1534 = vld [vmem:[%s6 + $0xf0] sm:$0xff]
        %v1535 = vld [vmem:[%s6 + $0xf8] sm:$0xff]
        %v1536 = vld [vmem:[%s6 + $0x100] sm:$0xff]
        %v1537 = vld [vmem:[%s6 + $0x108] sm:$0xff]
        %v1538 = vld [vmem:[%s6 + $0x110] sm:$0xff]
        %v1539 = vld [vmem:[%s6 + $0x118] sm:$0xff]
        %v1540 = vld [vmem:[%s6 + $0x120] sm:$0xff]
        %v1541 = vld [vmem:[%s6 + $0x128] sm:$0xff]
        %v1542 = vld [vmem:[%s6 + $0x130] sm:$0xff]
        %v1543 = vld [vmem:[%s6 + $0x138] sm:$0xff]
        %v1544 = vld [vmem:[%s6 + $0x140] sm:$0xff]
        %v1545 = vld [vmem:[%s6 + $0x148] sm:$0xff]
        %v1546 = vld [vmem:[%s6 + $0x150] sm:$0xff]
        %v1547 = vld [vmem:[%s6 + $0x158] sm:$0xff]
        %v1548 = vld [vmem:[%s6 + $0x160] sm:$0xff]
        %v1549 = vld [vmem:[%s6 + $0x168] sm:$0xff]
        %v1550 = vld [vmem:[%s6 + $0x170] sm:$0xff]
        %v1551 = vld [vmem:[%s6 + $0x178] sm:$0xff]
        %v1552 = vld [vmem:[%s6 + $0x180] sm:$0xff]
        %v1553 = vld [vmem:[%s6 + $0x188] sm:$0xff]
        %v1554 = vld [vmem:[%s6 + $0x190] sm:$0xff]
        %v1555 = vld [vmem:[%s6 + $0x198] sm:$0xff]
        %v1556 = vld [vmem:[%s6 + $0x1a0] sm:$0xff]
        %v1557 = vld [vmem:[%s6 + $0x1a8] sm:$0xff]
        %v1558 = vld [vmem:[%s6 + $0x1b0] sm:$0xff]
        %v1559 = vld [vmem:[%s6 + $0x1b8] sm:$0xff]
        %v1560 = vld [vmem:[%s6 + $0x1c0] sm:$0xff]
        %v1561 = vld [vmem:[%s6 + $0x1c8] sm:$0xff]
        %v1562 = vld [vmem:[%s6 + $0x1d0] sm:$0xff]
        %v1563 = vld [vmem:[%s6 + $0x1d8] sm:$0xff]
        %v1564 = vld [vmem:[%s6 + $0x1e0] sm:$0xff]
        %v1565 = vld [vmem:[%s6 + $0x1e8] sm:$0xff]
        %v1566 = vld [vmem:[%s6 + $0x1f0] sm:$0xff]
        %v1567 = vld [vmem:[%s6 + $0x1f8] sm:$0xff]
        %v1568 = vld [vmem:[%s6 + $0x200] sm:$0xff]
        %v1569 = vld [vmem:[%s6 + $0x208] sm:$0xff]
        %v1570 = vld [vmem:[%s6 + $0x210] sm:$0xff]
        %v1571 = vld [vmem:[%s6 + $0x218] sm:$0xff]
        %v1572 = vld [vmem:[%s6 + $0x220] sm:$0xff]
        %v1573 = vld [vmem:[%s6 + $0x228] sm:$0xff]
        %v1574 = vld [vmem:[%s6 + $0x230] sm:$0xff]
        %v1575 = vld [vmem:[%s6 + $0x238] sm:$0xff]
        %v1576 = vld [vmem:[%s6 + $0x240] sm:$0xff]
        %v1577 = vld [vmem:[%s6 + $0x248] sm:$0xff]
        %v1578 = vld [vmem:[%s6 + $0x250] sm:$0xff]
        %v1579 = vld [vmem:[%s6 + $0x258] sm:$0xff]
        %v1580 = vld [vmem:[%s6 + $0x260] sm:$0xff]
        %v1581 = vld [vmem:[%s6 + $0x268] sm:$0xff]
        %v1582 = vld [vmem:[%s6 + $0x270] sm:$0xff]
        %v1583 = vld [vmem:[%s6 + $0x278] sm:$0xff]
        %v1584 = vld [vmem:[%s6 + $0x280] sm:$0xff]
        %v1585 = vld [vmem:[%s6 + $0x288] sm:$0xff]
        %v1586 = vld [vmem:[%s6 + $0x290] sm:$0xff]
        %v1587 = vld [vmem:[%s6 + $0x298] sm:$0xff]
        %v1588 = vld [vmem:[%s6 + $0x2a0] sm:$0xff]
        %v1589 = vld [vmem:[%s6 + $0x2a8] sm:$0xff]
        %v1590 = vld [vmem:[%s6 + $0x2b0] sm:$0xff]
        %v1591 = vld [vmem:[%s6 + $0x2b8] sm:$0xff]
        %v1592 = vld [vmem:[%s6 + $0x2c0] sm:$0xff]
        %v1593 = vld [vmem:[%s6 + $0x2c8] sm:$0xff]
        %v1594 = vld [vmem:[%s6 + $0x2d0] sm:$0xff]
        %v1595 = vld [vmem:[%s6 + $0x2d8] sm:$0xff]
        %v1596 = vld [vmem:[%s6 + $0x2e0] sm:$0xff]
        %v1597 = vld [vmem:[%s6 + $0x2e8] sm:$0xff]
        %v1598 = vld [vmem:[%s6 + $0x2f0] sm:$0xff]
        %v1599 = vld [vmem:[%s6 + $0x2f8] sm:$0xff]
        %v1600 = vld [vmem:[%s6 + $0x300] sm:$0xff]
        %v1601 = vld [vmem:[%s6 + $0x308] sm:$0xff]
        %v1602 = vld [vmem:[%s6 + $0x310] sm:$0xff]
        %v1603 = vld [vmem:[%s6 + $0x318] sm:$0xff]
        %v1604 = vld [vmem:[%s6 + $0x320] sm:$0xff]
        %v1605 = vld [vmem:[%s6 + $0x328] sm:$0xff]
        %v1606 = vld [vmem:[%s6 + $0x330] sm:$0xff]
        %v1607 = vld [vmem:[%s6 + $0x338] sm:$0xff]
        %v1608 = vld [vmem:[%s6 + $0x340] sm:$0xff]
        %v1609 = vld [vmem:[%s6 + $0x348] sm:$0xff]
        %v1610 = vld [vmem:[%s6 + $0x350] sm:$0xff]
        %v1611 = vld [vmem:[%s6 + $0x358] sm:$0xff]
        %v1612 = vld [vmem:[%s6 + $0x360] sm:$0xff]
        %v1613 = vld [vmem:[%s6 + $0x368] sm:$0xff]
        %v1614 = vld [vmem:[%s6 + $0x370] sm:$0xff]
        %v1615 = vld [vmem:[%s6 + $0x378] sm:$0xff]
        %v1616 = vld [vmem:[%s6 + $0x380] sm:$0xff]
        %v1617 = vld [vmem:[%s6 + $0x388] sm:$0xff]
        %v1618 = vld [vmem:[%s6 + $0x390] sm:$0xff]
        %v1619 = vld [vmem:[%s6 + $0x398] sm:$0xff]
        %v1620 = vld [vmem:[%s6 + $0x3a0] sm:$0xff]
        %v1621 = vld [vmem:[%s6 + $0x3a8] sm:$0xff]
        %v1622 = vld [vmem:[%s6 + $0x3b0] sm:$0xff]
        %v1623 = vld [vmem:[%s6 + $0x3b8] sm:$0xff]
        %v1624 = vld [vmem:[%s6 + $0x3c0] sm:$0xff]
        %v1625 = vld [vmem:[%s6 + $0x3c8] sm:$0xff]
        %v1626 = vld [vmem:[%s6 + $0x3d0] sm:$0xff]
        %v1627 = vld [vmem:[%s6 + $0x3d8] sm:$0xff]
        %v1628 = vld [vmem:[%s6 + $0x3e0] sm:$0xff]
        %v1629 = vld [vmem:[%s6 + $0x3e8] sm:$0xff]
        %v1630 = vld [vmem:[%s6 + $0x3f0] sm:$0xff]
        %v1631 = vld [vmem:[%s6 + $0x3f8] sm:$0xff]
        %v1632 = vld [vmem:[%s6 + $0x400] sm:$0xff]
        %v1633 = vld [vmem:[%s6 + $0x408] sm:$0xff]
        %v1634 = vld [vmem:[%s6 + $0x410] sm:$0xff]
        %v1635 = vld [vmem:[%s6 + $0x418] sm:$0xff]
        %v1636 = vld [vmem:[%s6 + $0x420] sm:$0xff]
        %v1637 = vld [vmem:[%s6 + $0x428] sm:$0xff]
        %v1638 = vld [vmem:[%s6 + $0x430] sm:$0xff]
        %v1639 = vld [vmem:[%s6 + $0x438] sm:$0xff]
        %v1640 = vld [vmem:[%s6 + $0x440] sm:$0xff]
        %v1641 = vld [vmem:[%s6 + $0x448] sm:$0xff]
        %v1642 = vld [vmem:[%s6 + $0x450] sm:$0xff]
        %v1643 = vld [vmem:[%s6 + $0x458] sm:$0xff]
        %v1644 = vld [vmem:[%s6 + $0x460] sm:$0xff]
        %v1645 = vld [vmem:[%s6 + $0x468] sm:$0xff]
        %v1646 = vld [vmem:[%s6 + $0x470] sm:$0xff]
        %v1647 = vld [vmem:[%s6 + $0x478] sm:$0xff]
        %v1648 = vld [vmem:[%s6 + $0x480] sm:$0xff]
        %v1649 = vld [vmem:[%s6 + $0x488] sm:$0xff]
        %v1650 = vld [vmem:[%s6 + $0x490] sm:$0xff]
        %v1651 = vld [vmem:[%s6 + $0x498] sm:$0xff]
        %v1652 = vld [vmem:[%s6 + $0x4a0] sm:$0xff]
        %v1653 = vld [vmem:[%s6 + $0x4a8] sm:$0xff]
        %v1654 = vld [vmem:[%s6 + $0x4b0] sm:$0xff]
        %v1655 = vld [vmem:[%s6 + $0x4b8] sm:$0xff]
        %v1656 = vld [vmem:[%s6 + $0x4c0] sm:$0xff]
        %v1657 = vld [vmem:[%s6 + $0x4c8] sm:$0xff]
        %v1658 = vld [vmem:[%s6 + $0x4d0] sm:$0xff]
        %v1659 = vld [vmem:[%s6 + $0x4d8] sm:$0xff]
        %v1660 = vld [vmem:[%s6 + $0x4e0] sm:$0xff]
        %v1661 = vld [vmem:[%s6 + $0x4e8] sm:$0xff]
        %v1662 = vld [vmem:[%s6 + $0x4f0] sm:$0xff]
        %v1663 = vld [vmem:[%s6 + $0x4f8] sm:$0xff]
        %v1664 = vld [vmem:[%s6 + $0x500] sm:$0xff]
        %v1665 = vld [vmem:[%s6 + $0x508] sm:$0xff]
        %v1666 = vld [vmem:[%s6 + $0x510] sm:$0xff]
        %v1667 = vld [vmem:[%s6 + $0x518] sm:$0xff]
        %v1668 = vld [vmem:[%s6 + $0x520] sm:$0xff]
        %v1669 = vld [vmem:[%s6 + $0x528] sm:$0xff]
        %v1670 = vld [vmem:[%s6 + $0x530] sm:$0xff]
        %v1671 = vld [vmem:[%s6 + $0x538] sm:$0xff]
        %v1672 = vld [vmem:[%s6 + $0x540] sm:$0xff]
        %v1673 = vld [vmem:[%s6 + $0x548] sm:$0xff]
        %v1674 = vld [vmem:[%s6 + $0x550] sm:$0xff]
        %v1675 = vld [vmem:[%s6 + $0x558] sm:$0xff]
        %v1676 = vld [vmem:[%s6 + $0x560] sm:$0xff]
        %v1677 = vld [vmem:[%s6 + $0x568] sm:$0xff]
        %v1678 = vld [vmem:[%s6 + $0x570] sm:$0xff]
        %v1679 = vld [vmem:[%s6 + $0x578] sm:$0xff]
        %v1680 = vld [vmem:[%s6 + $0x580] sm:$0xff]
        %v1681 = vld [vmem:[%s6 + $0x588] sm:$0xff]
        %v1682 = vld [vmem:[%s6 + $0x590] sm:$0xff]
        %v1683 = vld [vmem:[%s6 + $0x598] sm:$0xff]
        %v1684 = vld [vmem:[%s6 + $0x5a0] sm:$0xff]
        %v1685 = vld [vmem:[%s6 + $0x5a8] sm:$0xff]
        %v1686 = vld [vmem:[%s6 + $0x5b0] sm:$0xff]
        %v1687 = vld [vmem:[%s6 + $0x5b8] sm:$0xff]
        %v1688 = vld [vmem:[%s6 + $0x5c0] sm:$0xff]
        %v1689 = vld [vmem:[%s6 + $0x5c8] sm:$0xff]
        %v1690 = vld [vmem:[%s6 + $0x5d0] sm:$0xff]
        %v1691 = vld [vmem:[%s6 + $0x5d8] sm:$0xff]
        %v1692 = vld [vmem:[%s6 + $0x5e0] sm:$0xff]
        %v1693 = vld [vmem:[%s6 + $0x5e8] sm:$0xff]
        %v1694 = vld [vmem:[%s6 + $0x5f0] sm:$0xff]
        %v1695 = vld [vmem:[%s6 + $0x5f8] sm:$0xff]
        %v1696 = vld [vmem:[%s6 + $0x600] sm:$0xff]
        %v1697 = vld [vmem:[%s6 + $0x608] sm:$0xff]
        %v1698 = vld [vmem:[%s6 + $0x610] sm:$0xff]
        %v1699 = vld [vmem:[%s6 + $0x618] sm:$0xf]
        %v1700 = vld [vmem:[%s6 + $0x620] sm:$0xf]
        %v1701 = vld [vmem:[%s6 + $0x628] sm:$0xf]
        %v1703 = vsel %vm762, %v1699, 0
        %v1706 = vsel %vm762, %v1700, 0
        %v1709 = vsel %vm762, %v1701, 0
        %1711 = vmatprep.subr.mxu0 %v1550
        %1712 = vmatpush1.msra.mxu0 %v1549
        %1713 = vmatprep.subr.mxu0 %v1547
        %1714 = vmatpush1.msra.mxu0 %v1546
        %1715 = vmatprep.subr.mxu0 %v1544
        %1716 = vmatpush1.msra.mxu0 %v1543
        %1717 = vmatprep.subr.mxu0 %v1541
        %1718 = vmatpush1.msra.mxu0 %v1540
        %1719 = vmatprep.subr.mxu0 %v1538
        %1720 = vmatpush1.msra.mxu0 %v1537
        %1721 = vmatprep.subr.mxu0 %v1535
        %1722 = vmatpush1.msra.mxu0 %v1534
        %1723 = vmatprep.subr.mxu0 %v1532
        %1724 = vmatpush1.msra.mxu0 %v1531
        %1725 = vmatprep.subr.mxu0 %v1529
        %1726 = vmatpush1.msra.mxu0 %v1528
        %1727 = vmatprep.subr.mxu0 %v1526
        %1728 = vmatpush1.msra.mxu0 %v1525
        %1729 = vmatprep.subr.mxu0 %v1523
        %1730 = vmatpush1.msra.mxu0 %v1522
        %1731 = vmatprep.subr.mxu0 %v1520
        %1732 = vmatpush1.msra.mxu0 %v1519
        %1733 = vmatprep.subr.mxu0 %v1517
        %1734 = vmatpush1.msra.mxu0 %v1516
        %1735 = vmatprep.subr.mxu0 %v1514
        %1736 = vmatpush1.msra.mxu0 %v1513
        %1737 = vmatprep.subr.mxu0 %v1511
        %1738 = vmatpush1.msra.mxu0 %v1510
        %1739 = vmatprep.subr.mxu0 %v1508
        %1740 = vmatpush1.msra.mxu0 %v1507
        %1741 = vmatprep.subr.mxu0 %v1505
        %1742 = vmatpush1.msra.mxu0 %v1504
        %1743 = vmatprep.subr.mxu0 %v1598
        %1744 = vmatpush2.msra.mxu0 %v1597
        %1745 = vmatprep.subr.mxu0 %v1595
        %1746 = vmatpush2.msra.mxu0 %v1594
        %1747 = vmatprep.subr.mxu0 %v1592
        %1748 = vmatpush2.msra.mxu0 %v1591
        %1749 = vmatprep.subr.mxu0 %v1589
        %1750 = vmatpush2.msra.mxu0 %v1588
        %1751 = vmatprep.subr.mxu0 %v1586
        %1752 = vmatpush2.msra.mxu0 %v1585
        %1753 = vmatprep.subr.mxu0 %v1583
        %1754 = vmatpush2.msra.mxu0 %v1582
        %1755 = vmatprep.subr.mxu0 %v1580
        %1756 = vmatpush2.msra.mxu0 %v1579
        %1757 = vmatprep.subr.mxu0 %v1577
        %1758 = vmatpush2.msra.mxu0 %v1576
        %1759 = vmatprep.subr.mxu0 %v1574
        %1760 = vmatpush2.msra.mxu0 %v1573
        %1761 = vmatprep.subr.mxu0 %v1571
        %1762 = vmatpush2.msra.mxu0 %v1570
        %1763 = vmatprep.subr.mxu0 %v1568
        %1764 = vmatpush2.msra.mxu0 %v1567
        %1765 = vmatprep.subr.mxu0 %v1565
        %1766 = vmatpush2.msra.mxu0 %v1564
        %1767 = vmatprep.subr.mxu0 %v1562
        %1768 = vmatpush2.msra.mxu0 %v1561
        %1769 = vmatprep.subr.mxu0 %v1559
        %1770 = vmatpush2.msra.mxu0 %v1558
        %1771 = vmatprep.subr.mxu0 %v1556
        %1772 = vmatpush2.msra.mxu0 %v1555
        %1773 = vmatprep.subr.mxu0 %v1553
        %1774 = vmatpush2.msra.mxu0 %v1552
        %1775 = vmatprep.mubr.f32.mxu0 %v866
        %1776 = vmatmul.mubr.f32.gmra.mxu0 %v865
        %v1777 = vpop.f32.mrf.mxu0
        %v1778 = vadd.f32 0.0, %v1777
        %v1779 = vpop.f32.mrf.mxu0
        %v1780 = vadd.f32 0.0, %v1779
        %1781 = vdwg.mxu0
        %1782 = vmatprep.subr.mxu0 %v1646
        %1783 = vmatpush1.msra.mxu0 %v1645
        %1784 = vmatprep.subr.mxu0 %v1643
        %1785 = vmatpush1.msra.mxu0 %v1642
        %1786 = vmatprep.subr.mxu0 %v1640
        %1787 = vmatpush1.msra.mxu0 %v1639
        %1788 = vmatprep.subr.mxu0 %v1637
        %1789 = vmatpush1.msra.mxu0 %v1636
        %1790 = vmatprep.subr.mxu0 %v1634
        %1791 = vmatpush1.msra.mxu0 %v1633
        %1792 = vmatprep.subr.mxu0 %v1631
        %1793 = vmatpush1.msra.mxu0 %v1630
        %1794 = vmatprep.subr.mxu0 %v1628
        %1795 = vmatpush1.msra.mxu0 %v1627
        %1796 = vmatprep.subr.mxu0 %v1625
        %1797 = vmatpush1.msra.mxu0 %v1624
        %1798 = vmatprep.subr.mxu0 %v1622
        %1799 = vmatpush1.msra.mxu0 %v1621
        %1800 = vmatprep.subr.mxu0 %v1619
        %1801 = vmatpush1.msra.mxu0 %v1618
        %1802 = vmatprep.subr.mxu0 %v1616
        %1803 = vmatpush1.msra.mxu0 %v1615
        %1804 = vmatprep.subr.mxu0 %v1613
        %1805 = vmatpush1.msra.mxu0 %v1612
        %1806 = vmatprep.subr.mxu0 %v1610
        %1807 = vmatpush1.msra.mxu0 %v1609
        %1808 = vmatprep.subr.mxu0 %v1607
        %1809 = vmatpush1.msra.mxu0 %v1606
        %1810 = vmatprep.subr.mxu0 %v1604
        %1811 = vmatpush1.msra.mxu0 %v1603
        %1812 = vmatprep.subr.mxu0 %v1601
        %1813 = vmatpush1.msra.mxu0 %v1600
        %1814 = vmatprep.subr.mxu0 %v1694
        %1815 = vmatpush2.msra.mxu0 %v1693
        %1816 = vmatprep.subr.mxu0 %v1691
        %1817 = vmatpush2.msra.mxu0 %v1690
        %1818 = vmatprep.subr.mxu0 %v1688
        %1819 = vmatpush2.msra.mxu0 %v1687
        %1820 = vmatprep.subr.mxu0 %v1685
        %1821 = vmatpush2.msra.mxu0 %v1684
        %1822 = vmatprep.subr.mxu0 %v1682
        %1823 = vmatpush2.msra.mxu0 %v1681
        %1824 = vmatprep.subr.mxu0 %v1679
        %1825 = vmatpush2.msra.mxu0 %v1678
        %1826 = vmatprep.subr.mxu0 %v1676
        %1827 = vmatpush2.msra.mxu0 %v1675
        %1828 = vmatprep.subr.mxu0 %v1673
        %1829 = vmatpush2.msra.mxu0 %v1672
        %1830 = vmatprep.subr.mxu0 %v1670
        %1831 = vmatpush2.msra.mxu0 %v1669
        %1832 = vmatprep.subr.mxu0 %v1667
        %1833 = vmatpush2.msra.mxu0 %v1666
        %1834 = vmatprep.subr.mxu0 %v1664
        %1835 = vmatpush2.msra.mxu0 %v1663
        %1836 = vmatprep.subr.mxu0 %v1661
        %1837 = vmatpush2.msra.mxu0 %v1660
        %1838 = vmatprep.subr.mxu0 %v1658
        %1839 = vmatpush2.msra.mxu0 %v1657
        %1840 = vmatprep.subr.mxu0 %v1655
        %1841 = vmatpush2.msra.mxu0 %v1654
        %1842 = vmatprep.subr.mxu0 %v1652
        %1843 = vmatpush2.msra.mxu0 %v1651
        %1844 = vmatprep.subr.mxu0 %v1649
        %1845 = vmatpush2.msra.mxu0 %v1648
        %1846 = vmatprep.mubr.f32.mxu0 %v868
        %1847 = vmatmul.mubr.f32.gmra.mxu0 %v867
        %v1848 = vpop.f32.mrf.mxu0
        %v1849 = vadd.f32 %v1778, %v1848
        %v1850 = vpop.f32.mrf.mxu0
        %v1851 = vadd.f32 %v1780, %v1850
        %1852 = vdwg.mxu0
        %1853 = vmatprep.subr.mxu0 0.0
        %1854 = vmatpush1.msra.mxu0 0.0
        %1855 = vmatprep.subr.mxu0 0.0
        %1856 = vmatpush1.msra.mxu0 0.0
        %1857 = vmatprep.subr.mxu0 0.0
        %1858 = vmatpush1.msra.mxu0 0.0
        %1859 = vmatprep.subr.mxu0 0.0
        %1860 = vmatpush1.msra.mxu0 0.0
        %1861 = vmatprep.subr.mxu0 0.0
        %1862 = vmatpush1.msra.mxu0 0.0
        %1863 = vmatprep.subr.mxu0 0.0
        %1864 = vmatpush1.msra.mxu0 0.0
        %1865 = vmatprep.subr.mxu0 0.0
        %1866 = vmatpush1.msra.mxu0 0.0
        %1867 = vmatprep.subr.mxu0 0.0
        %1868 = vmatpush1.msra.mxu0 0.0
        %1869 = vmatprep.subr.mxu0 0.0
        %1870 = vmatpush1.msra.mxu0 0.0
        %1871 = vmatprep.subr.mxu0 0.0
        %1872 = vmatpush1.msra.mxu0 0.0
        %1873 = vmatprep.subr.mxu0 0.0
        %1874 = vmatpush1.msra.mxu0 0.0
        %1875 = vmatprep.subr.mxu0 0.0
        %1876 = vmatpush1.msra.mxu0 0.0
        %1877 = vmatprep.subr.mxu0 0.0
        %1878 = vmatpush1.msra.mxu0 0.0
        %1879 = vmatprep.subr.mxu0 0.0
        %1880 = vmatpush1.msra.mxu0 0.0
        %1881 = vmatprep.subr.mxu0 %v1706
        %1882 = vmatpush1.msra.mxu0 %v1703
        %1883 = vmatprep.subr.mxu0 %v1697
        %1884 = vmatpush1.msra.mxu0 %v1696
        %1885 = vmatprep.subr.mxu0 0.0
        %1886 = vmatpush2.msra.mxu0 0.0
        %1887 = vmatprep.subr.mxu0 0.0
        %1888 = vmatpush2.msra.mxu0 0.0
        %1889 = vmatprep.subr.mxu0 0.0
        %1890 = vmatpush2.msra.mxu0 0.0
        %1891 = vmatprep.subr.mxu0 0.0
        %1892 = vmatpush2.msra.mxu0 0.0
        %1893 = vmatprep.subr.mxu0 0.0
        %1894 = vmatpush2.msra.mxu0 0.0
        %1895 = vmatprep.subr.mxu0 0.0
        %1896 = vmatpush2.msra.mxu0 0.0
        %1897 = vmatprep.subr.mxu0 0.0
        %1898 = vmatpush2.msra.mxu0 0.0
        %1899 = vmatprep.subr.mxu0 0.0
        %1900 = vmatpush2.msra.mxu0 0.0
        %1901 = vmatprep.subr.mxu0 0.0
        %1902 = vmatpush2.msra.mxu0 0.0
        %1903 = vmatprep.subr.mxu0 0.0
        %1904 = vmatpush2.msra.mxu0 0.0
        %1905 = vmatprep.subr.mxu0 0.0
        %1906 = vmatpush2.msra.mxu0 0.0
        %1907 = vmatprep.subr.mxu0 0.0
        %1908 = vmatpush2.msra.mxu0 0.0
        %1909 = vmatprep.subr.mxu0 0.0
        %1910 = vmatpush2.msra.mxu0 0.0
        %1911 = vmatprep.subr.mxu0 0.0
        %1912 = vmatpush2.msra.mxu0 0.0
        %1913 = vmatprep.subr.mxu0 0.0
        %1914 = vmatpush2.msra.mxu0 0.0
        %1915 = vmatprep.subr.mxu0 0.0
        %1916 = vmatpush2.msra.mxu0 0.0
        %1917 = vmatprep.mubr.f32.mxu0 0.0
        %1918 = vmatmul.mubr.f32.gmra.mxu0 %v1070
        %v1919 = vpop.f32.mrf.mxu0
        %v1920 = vadd.f32 %v1849, %v1919
        %v1921 = vpop.f32.mrf.mxu0
        %v1922 = vadd.f32 %v1851, %v1921
        %1923 = vdwg.mxu0
        %1924 = vmatprep.subr.mxu0 0.0
        %1925 = vmatpush1.msra.mxu0 %v1551
        %1926 = vmatprep.subr.mxu0 0.0
        %1927 = vmatpush1.msra.mxu0 %v1548
        %1928 = vmatprep.subr.mxu0 0.0
        %1929 = vmatpush1.msra.mxu0 %v1545
        %1930 = vmatprep.subr.mxu0 0.0
        %1931 = vmatpush1.msra.mxu0 %v1542
        %1932 = vmatprep.subr.mxu0 0.0
        %1933 = vmatpush1.msra.mxu0 %v1539
        %1934 = vmatprep.subr.mxu0 0.0
        %1935 = vmatpush1.msra.mxu0 %v1536
        %1936 = vmatprep.subr.mxu0 0.0
        %1937 = vmatpush1.msra.mxu0 %v1533
        %1938 = vmatprep.subr.mxu0 0.0
        %1939 = vmatpush1.msra.mxu0 %v1530
        %1940 = vmatprep.subr.mxu0 0.0
        %1941 = vmatpush1.msra.mxu0 %v1527
        %1942 = vmatprep.subr.mxu0 0.0
        %1943 = vmatpush1.msra.mxu0 %v1524
        %1944 = vmatprep.subr.mxu0 0.0
        %1945 = vmatpush1.msra.mxu0 %v1521
        %1946 = vmatprep.subr.mxu0 0.0
        %1947 = vmatpush1.msra.mxu0 %v1518
        %1948 = vmatprep.subr.mxu0 0.0
        %1949 = vmatpush1.msra.mxu0 %v1515
        %1950 = vmatprep.subr.mxu0 0.0
        %1951 = vmatpush1.msra.mxu0 %v1512
        %1952 = vmatprep.subr.mxu0 0.0
        %1953 = vmatpush1.msra.mxu0 %v1509
        %1954 = vmatprep.subr.mxu0 0.0
        %1955 = vmatpush1.msra.mxu0 %v1506
        %1956 = vmatprep.subr.mxu0 0.0
        %1957 = vmatpush2.msra.mxu0 %v1599
        %1958 = vmatprep.subr.mxu0 0.0
        %1959 = vmatpush2.msra.mxu0 %v1596
        %1960 = vmatprep.subr.mxu0 0.0
        %1961 = vmatpush2.msra.mxu0 %v1593
        %1962 = vmatprep.subr.mxu0 0.0
        %1963 = vmatpush2.msra.mxu0 %v1590
        %1964 = vmatprep.subr.mxu0 0.0
        %1965 = vmatpush2.msra.mxu0 %v1587
        %1966 = vmatprep.subr.mxu0 0.0
        %1967 = vmatpush2.msra.mxu0 %v1584
        %1968 = vmatprep.subr.mxu0 0.0
        %1969 = vmatpush2.msra.mxu0 %v1581
        %1970 = vmatprep.subr.mxu0 0.0
        %1971 = vmatpush2.msra.mxu0 %v1578
        %1972 = vmatprep.subr.mxu0 0.0
        %1973 = vmatpush2.msra.mxu0 %v1575
        %1974 = vmatprep.subr.mxu0 0.0
        %1975 = vmatpush2.msra.mxu0 %v1572
        %1976 = vmatprep.subr.mxu0 0.0
        %1977 = vmatpush2.msra.mxu0 %v1569
        %1978 = vmatprep.subr.mxu0 0.0
        %1979 = vmatpush2.msra.mxu0 %v1566
        %1980 = vmatprep.subr.mxu0 0.0
        %1981 = vmatpush2.msra.mxu0 %v1563
        %1982 = vmatprep.subr.mxu0 0.0
        %1983 = vmatpush2.msra.mxu0 %v1560
        %1984 = vmatprep.subr.mxu0 0.0
        %1985 = vmatpush2.msra.mxu0 %v1557
        %1986 = vmatprep.subr.mxu0 0.0
        %1987 = vmatpush2.msra.mxu0 %v1554
        %1988 = vmatprep.mubr.f32.mxu0 %v866
        %1989 = vmatmul.mubr.f32.gmra.mxu0 %v865
        %v1990 = vpop.f32.mrf.mxu0
        %v1991 = vadd.f32 0.0, %v1990
        %v1992 = vpop.f32.mrf.mxu0
        %1993 = vdwg.mxu0
        %1994 = vmatprep.subr.mxu0 0.0
        %1995 = vmatpush1.msra.mxu0 %v1647
        %1996 = vmatprep.subr.mxu0 0.0
        %1997 = vmatpush1.msra.mxu0 %v1644
        %1998 = vmatprep.subr.mxu0 0.0
        %1999 = vmatpush1.msra.mxu0 %v1641
        %2000 = vmatprep.subr.mxu0 0.0
        %2001 = vmatpush1.msra.mxu0 %v1638
        %2002 = vmatprep.subr.mxu0 0.0
        %2003 = vmatpush1.msra.mxu0 %v1635
        %2004 = vmatprep.subr.mxu0 0.0
        %2005 = vmatpush1.msra.mxu0 %v1632
        %2006 = vmatprep.subr.mxu0 0.0
        %2007 = vmatpush1.msra.mxu0 %v1629
        %2008 = vmatprep.subr.mxu0 0.0
        %2009 = vmatpush1.msra.mxu0 %v1626
        %2010 = vmatprep.subr.mxu0 0.0
        %2011 = vmatpush1.msra.mxu0 %v1623
        %2012 = vmatprep.subr.mxu0 0.0
        %2013 = vmatpush1.msra.mxu0 %v1620
        %2014 = vmatprep.subr.mxu0 0.0
        %2015 = vmatpush1.msra.mxu0 %v1617
        %2016 = vmatprep.subr.mxu0 0.0
        %2017 = vmatpush1.msra.mxu0 %v1614
        %2018 = vmatprep.subr.mxu0 0.0
        %2019 = vmatpush1.msra.mxu0 %v1611
        %2020 = vmatprep.subr.mxu0 0.0
        %2021 = vmatpush1.msra.mxu0 %v1608
        %2022 = vmatprep.subr.mxu0 0.0
        %2023 = vmatpush1.msra.mxu0 %v1605
        %2024 = vmatprep.subr.mxu0 0.0
        %2025 = vmatpush1.msra.mxu0 %v1602
        %2026 = vmatprep.subr.mxu0 0.0
        %2027 = vmatpush2.msra.mxu0 %v1695
        %2028 = vmatprep.subr.mxu0 0.0
        %2029 = vmatpush2.msra.mxu0 %v1692
        %2030 = vmatprep.subr.mxu0 0.0
        %2031 = vmatpush2.msra.mxu0 %v1689
        %2032 = vmatprep.subr.mxu0 0.0
        %2033 = vmatpush2.msra.mxu0 %v1686
        %2034 = vmatprep.subr.mxu0 0.0
        %2035 = vmatpush2.msra.mxu0 %v1683
        %2036 = vmatprep.subr.mxu0 0.0
        %2037 = vmatpush2.msra.mxu0 %v1680
        %2038 = vmatprep.subr.mxu0 0.0
        %2039 = vmatpush2.msra.mxu0 %v1677
        %2040 = vmatprep.subr.mxu0 0.0
        %2041 = vmatpush2.msra.mxu0 %v1674
        %2042 = vmatprep.subr.mxu0 0.0
        %2043 = vmatpush2.msra.mxu0 %v1671
        %2044 = vmatprep.subr.mxu0 0.0
        %2045 = vmatpush2.msra.mxu0 %v1668
        %2046 = vmatprep.subr.mxu0 0.0
        %2047 = vmatpush2.msra.mxu0 %v1665
        %2048 = vmatprep.subr.mxu0 0.0
        %2049 = vmatpush2.msra.mxu0 %v1662
        %2050 = vmatprep.subr.mxu0 0.0
        %2051 = vmatpush2.msra.mxu0 %v1659
        %2052 = vmatprep.subr.mxu0 0.0
        %2053 = vmatpush2.msra.mxu0 %v1656
        %2054 = vmatprep.subr.mxu0 0.0
        %2055 = vmatpush2.msra.mxu0 %v1653
        %2056 = vmatprep.subr.mxu0 0.0
        %2057 = vmatpush2.msra.mxu0 %v1650
        %2058 = vmatprep.mubr.f32.mxu0 %v868
        %2059 = vmatmul.mubr.f32.gmra.mxu0 %v867
        %v2060 = vpop.f32.mrf.mxu0
        %v2061 = vadd.f32 %v1991, %v2060
        %v2062 = vpop.f32.mrf.mxu0
        %2063 = vdwg.mxu0
        %2064 = vmatprep.subr.mxu0 0.0
        %2065 = vmatpush1.msra.mxu0 0.0
        %2066 = vmatprep.subr.mxu0 0.0
        %2067 = vmatpush1.msra.mxu0 0.0
        %2068 = vmatprep.subr.mxu0 0.0
        %2069 = vmatpush1.msra.mxu0 0.0
        %2070 = vmatprep.subr.mxu0 0.0
        %2071 = vmatpush1.msra.mxu0 0.0
        %2072 = vmatprep.subr.mxu0 0.0
        %2073 = vmatpush1.msra.mxu0 0.0
        %2074 = vmatprep.subr.mxu0 0.0
        %2075 = vmatpush1.msra.mxu0 0.0
        %2076 = vmatprep.subr.mxu0 0.0
        %2077 = vmatpush1.msra.mxu0 0.0
        %2078 = vmatprep.subr.mxu0 0.0
        %2079 = vmatpush1.msra.mxu0 0.0
        %2080 = vmatprep.subr.mxu0 0.0
        %2081 = vmatpush1.msra.mxu0 0.0
        %2082 = vmatprep.subr.mxu0 0.0
        %2083 = vmatpush1.msra.mxu0 0.0
        %2084 = vmatprep.subr.mxu0 0.0
        %2085 = vmatpush1.msra.mxu0 0.0
        %2086 = vmatprep.subr.mxu0 0.0
        %2087 = vmatpush1.msra.mxu0 0.0
        %2088 = vmatprep.subr.mxu0 0.0
        %2089 = vmatpush1.msra.mxu0 0.0
        %2090 = vmatprep.subr.mxu0 0.0
        %2091 = vmatpush1.msra.mxu0 0.0
        %2092 = vmatprep.subr.mxu0 0.0
        %2093 = vmatpush1.msra.mxu0 %v1709
        %2094 = vmatprep.subr.mxu0 0.0
        %2095 = vmatpush1.msra.mxu0 %v1698
        %2096 = vmatprep.subr.mxu0 0.0
        %2097 = vmatpush2.msra.mxu0 0.0
        %2098 = vmatprep.subr.mxu0 0.0
        %2099 = vmatpush2.msra.mxu0 0.0
        %2100 = vmatprep.subr.mxu0 0.0
        %2101 = vmatpush2.msra.mxu0 0.0
        %2102 = vmatprep.subr.mxu0 0.0
        %2103 = vmatpush2.msra.mxu0 0.0
        %2104 = vmatprep.subr.mxu0 0.0
        %2105 = vmatpush2.msra.mxu0 0.0
        %2106 = vmatprep.subr.mxu0 0.0
        %2107 = vmatpush2.msra.mxu0 0.0
        %2108 = vmatprep.subr.mxu0 0.0
        %2109 = vmatpush2.msra.mxu0 0.0
        %2110 = vmatprep.subr.mxu0 0.0
        %2111 = vmatpush2.msra.mxu0 0.0
        %2112 = vmatprep.subr.mxu0 0.0
        %2113 = vmatpush2.msra.mxu0 0.0
        %2114 = vmatprep.subr.mxu0 0.0
        %2115 = vmatpush2.msra.mxu0 0.0
        %2116 = vmatprep.subr.mxu0 0.0
        %2117 = vmatpush2.msra.mxu0 0.0
        %2118 = vmatprep.subr.mxu0 0.0
        %2119 = vmatpush2.msra.mxu0 0.0
        %2120 = vmatprep.subr.mxu0 0.0
        %2121 = vmatpush2.msra.mxu0 0.0
        %2122 = vmatprep.subr.mxu0 0.0
        %2123 = vmatpush2.msra.mxu0 0.0
        %2124 = vmatprep.subr.mxu0 0.0
        %2125 = vmatpush2.msra.mxu0 0.0
        %2126 = vmatprep.subr.mxu0 0.0
        %2127 = vmatpush2.msra.mxu0 0.0
        %2128 = vmatprep.mubr.f32.mxu0 0.0
        %2129 = vmatmul.mubr.f32.gmra.mxu0 %v1070
        %v2130 = vpop.f32.mrf.mxu0
        %v2131 = vadd.f32 %v2061, %v2130
        %v2132 = vpop.f32.mrf.mxu0
        %2133 = vdwg.mxu0
        %v2134 = vmax.f32 %v1290, %v1920
        %v2135 = vmax.f32 %v1292, %v1922
        %v2136 = vmax.f32 %v1501, %v2131
        %2137 = vst [vmem:[#allocation3] sm:$0xff] 0.0
        %2138 = vst [vmem:[#allocation3 + $0x8] sm:$0xff] 0.0
        %vm2139 = vcmask 48128
        %2140 = vst.msk [vmem:[#allocation3 + $0x10] sm:$0xff] %vm2139, 0.0
        %2141 = vst [vmem:[#allocation3 + $0x18] sm:$0xff] 0.0
        %2142 = vst [vmem:[#allocation3 + $0x20] sm:$0xff] 0.0
        %2143 = vst.msk [vmem:[#allocation3 + $0x28] sm:$0xff] %vm2139, 0.0
        %2144 = vst [vmem:[#allocation3 + $0x30] sm:$0xf] 0.0
        %2145 = vst [vmem:[#allocation3 + $0x38] sm:$0xf] 0.0
        %vm2146 = vcmask 44032
        %2147 = vst.msk [vmem:[#allocation3 + $0x40] sm:$0xf] %vm2146, 0.0
        %2151 = vrot.lane.b32.xlu0 %v2134, 2
        %v2152 = vpop.permute.xlu0 %2151
        %2153 = vrot.lane.b32.xlu0 %v2135, 2
        %v2154 = vpop.permute.xlu0 %2153
        %2155 = vrot.lane.b32.xlu0 %v2136, 2
        %v2156 = vpop.permute.xlu0 %2155
        %vm2157 = vcmask 15360
        %v2158 = vsel %vm2157, %v2152, %v2154
        %v2159 = vsel %vm2157, %v2154, %v2156
        %vm2163 = vcmask 1043472
        %2164 = vst.msk [vmem:[#allocation3] sm:$0xf] %vm2163, %v2152
        %2165 = vst [vmem:[#allocation3 + $0x8] sm:$0xf] %v2158
        %2166 = vst.msk [vmem:[#allocation3 + $0x10] sm:$0xf] %vm2146, %v2159
        %v2167 = vrot.slane %v2134, 4
        %v2168 = vrot.slane %v2135, 4
        %v2169 = vrot.slane %v2136, 4
        %2170 = vrot.lane.b32.xlu0 %v2167, 1
        %v2171 = vpop.permute.xlu0 %2170
        %2172 = vrot.lane.b32.xlu0 %v2168, 1
        %v2173 = vpop.permute.xlu0 %2172
        %2174 = vrot.lane.b32.xlu0 %v2169, 1
        %v2175 = vpop.permute.xlu0 %2174
        %v2176 = vsel %vm498, %v2171, %v2173
        %v2177 = vsel %vm498, %v2173, %v2175
        %vm2181 = vcmask 1047564
        %2182 = vst.msk [vmem:[#allocation3] sm:$0xf0] %vm2181, %v2171
        %2183 = vst [vmem:[#allocation3 + $0x8] sm:$0xf0] %v2176
        %vm2184 = vcmask 48132
        %2185 = vst.msk [vmem:[#allocation3 + $0x10] sm:$0xf0] %vm2184, %v2177
        %2186 = vst [vmem:[#allocation3 + $0x18] sm:$0xf] %v2134
        %2187 = vst [vmem:[#allocation3 + $0x20] sm:$0xf] %v2135
        %2188 = vst.msk [vmem:[#allocation3 + $0x28] sm:$0xf] %vm2146, %v2136
        %2189 = vrot.lane.b32.xlu0 %v2167, 127
        %v2190 = vpop.permute.xlu0 %2189
        %2191 = vrot.lane.b32.xlu0 %v2168, 127
        %v2192 = vpop.permute.xlu0 %2191
        %2193 = vrot.lane.b32.xlu0 %v2169, 127
        %v2194 = vpop.permute.xlu0 %2193
        %v2195 = vsel %vm513, %v2190, %v2192
        %v2196 = vsel %vm513, %v2192, %v2194
        %2200 = vst [vmem:[#allocation3 + $0x18] sm:$0xf0] %v2195
        %2201 = vst [vmem:[#allocation3 + $0x20] sm:$0xf0] %v2196
        %vm2202 = vcmask 39940
        %2203 = vst.msk [vmem:[#allocation3 + $0x28] sm:$0xf0] %vm2202, %v2194
        %2204 = vrot.lane.b32.xlu0 %v2134, 126
        %v2205 = vpop.permute.xlu0 %2204
        %2206 = vrot.lane.b32.xlu0 %v2135, 126
        %v2207 = vpop.permute.xlu0 %2206
        %2208 = vrot.lane.b32.xlu0 %v2136, 126
        %v2209 = vpop.permute.xlu0 %2208
        %vm2210 = vcmask 1031168
        %v2211 = vsel %vm2210, %v2205, %v2207
        %v2212 = vsel %vm2210, %v2207, %v2209
        %2216 = vst [vmem:[#allocation3 + $0x30] sm:$0xf] %v2211
        %2217 = vst [vmem:[#allocation3 + $0x38] sm:$0xf] %v2212
        %vm2218 = vcmask 27648
        %2219 = vst.msk [vmem:[#allocation3 + $0x40] sm:$0xf] %vm2218, %v2209
        %v2220 = vld [vmem:[%s7] sm:$0xff]
        %v2221 = vld [vmem:[#allocation3] sm:$0xff]
        %v2222 = vld [vmem:[#allocation3 + $0x8] sm:$0xff]
        %v2223 = vld [vmem:[#allocation3 + $0x10] sm:$0xff]
        %v2224 = vld [vmem:[#allocation3 + $0x18] sm:$0xff]
        %v2225 = vld [vmem:[#allocation3 + $0x20] sm:$0xff]
        %v2226 = vld [vmem:[#allocation3 + $0x28] sm:$0xff]
        %v2227 = vld [vmem:[#allocation3 + $0x30] sm:$0xf]
        %v2228 = vld [vmem:[#allocation3 + $0x38] sm:$0xf]
        %v2229 = vld [vmem:[#allocation3 + $0x40] sm:$0xf]
        %v2230 = vld [vmem:[%s8] sm:$0xff]
        %2232 = vset.pattern.permute.xlu0 0
        %2233 = vperm.xlu0 %2232, %v2230
        %v2234 = vpop.permute.xlu0 %2233
        %vm2236 = vcmask 162816
        %v2238 = vsel %vm2236, %v2220, 0
        %v2241 = vsel %vm762, %v2227, 0
        %v2244 = vsel %vm762, %v2228, 0
        %v2247 = vsel %vm762, %v2229, 0
        %2249 = vmatprep.subr.mxu0 0.0
        %2250 = vmatpush1.msra.mxu0 0.0
        %2251 = vmatprep.subr.mxu0 0.0
        %2252 = vmatpush1.msra.mxu0 0.0
        %2253 = vmatprep.subr.mxu0 0.0
        %2254 = vmatpush1.msra.mxu0 0.0
        %2255 = vmatprep.subr.mxu0 0.0
        %2256 = vmatpush1.msra.mxu0 0.0
        %2257 = vmatprep.subr.mxu0 0.0
        %2258 = vmatpush1.msra.mxu0 0.0
        %2259 = vmatprep.subr.mxu0 0.0
        %2260 = vmatpush1.msra.mxu0 0.0
        %2261 = vmatprep.subr.mxu0 0.0
        %2262 = vmatpush1.msra.mxu0 0.0
        %2263 = vmatprep.subr.mxu0 0.0
        %2264 = vmatpush1.msra.mxu0 0.0
        %2265 = vmatprep.subr.mxu0 0.0
        %2266 = vmatpush1.msra.mxu0 0.0
        %2267 = vmatprep.subr.mxu0 0.0
        %2268 = vmatpush1.msra.mxu0 0.0
        %2269 = vmatprep.subr.mxu0 0.0
        %2270 = vmatpush1.msra.mxu0 0.0
        %2271 = vmatprep.subr.mxu0 0.0
        %2272 = vmatpush1.msra.mxu0 0.0
        %2273 = vmatprep.subr.mxu0 0.0
        %2274 = vmatpush1.msra.mxu0 0.0
        %2275 = vmatprep.subr.mxu0 %v2244
        %2276 = vmatpush1.msra.mxu0 %v2241
        %2277 = vmatprep.subr.mxu0 %v2225
        %2278 = vmatpush1.msra.mxu0 %v2224
        %2279 = vmatprep.subr.mxu0 %v2222
        %2280 = vmatpush1.msra.mxu0 %v2221
        %2281 = vmatprep.subr.mxu0 0.0
        %2282 = vmatpush2.msra.mxu0 0.0
        %2283 = vmatprep.subr.mxu0 0.0
        %2284 = vmatpush2.msra.mxu0 0.0
        %2285 = vmatprep.subr.mxu0 0.0
        %2286 = vmatpush2.msra.mxu0 0.0
        %2287 = vmatprep.subr.mxu0 0.0
        %2288 = vmatpush2.msra.mxu0 0.0
        %2289 = vmatprep.subr.mxu0 0.0
        %2290 = vmatpush2.msra.mxu0 0.0
        %2291 = vmatprep.subr.mxu0 0.0
        %2292 = vmatpush2.msra.mxu0 0.0
        %2293 = vmatprep.subr.mxu0 0.0
        %2294 = vmatpush2.msra.mxu0 0.0
        %2295 = vmatprep.subr.mxu0 0.0
        %2296 = vmatpush2.msra.mxu0 0.0
        %2297 = vmatprep.subr.mxu0 0.0
        %2298 = vmatpush2.msra.mxu0 0.0
        %2299 = vmatprep.subr.mxu0 0.0
        %2300 = vmatpush2.msra.mxu0 0.0
        %2301 = vmatprep.subr.mxu0 0.0
        %2302 = vmatpush2.msra.mxu0 0.0
        %2303 = vmatprep.subr.mxu0 0.0
        %2304 = vmatpush2.msra.mxu0 0.0
        %2305 = vmatprep.subr.mxu0 0.0
        %2306 = vmatpush2.msra.mxu0 0.0
        %2307 = vmatprep.subr.mxu0 0.0
        %2308 = vmatpush2.msra.mxu0 0.0
        %2309 = vmatprep.subr.mxu0 0.0
        %2310 = vmatpush2.msra.mxu0 0.0
        %2311 = vmatprep.subr.mxu0 0.0
        %2312 = vmatpush2.msra.mxu0 0.0
        %2313 = vmatprep.mubr.f32.mxu0 0.0
        %2314 = vmatmul.mubr.f32.gmra.mxu0 %v2238
        %v2315 = vpop.f32.mrf.mxu0
        %v2316 = vadd.f32 %v2234, %v2315
        %v2317 = vpop.f32.mrf.mxu0
        %v2318 = vadd.f32 %v2234, %v2317
        %2319 = vdwg.mxu0
        %2320 = vmatprep.subr.mxu0 0.0
        %2321 = vmatpush1.msra.mxu0 0.0
        %2322 = vmatprep.subr.mxu0 0.0
        %2323 = vmatpush1.msra.mxu0 0.0
        %2324 = vmatprep.subr.mxu0 0.0
        %2325 = vmatpush1.msra.mxu0 0.0
        %2326 = vmatprep.subr.mxu0 0.0
        %2327 = vmatpush1.msra.mxu0 0.0
        %2328 = vmatprep.subr.mxu0 0.0
        %2329 = vmatpush1.msra.mxu0 0.0
        %2330 = vmatprep.subr.mxu0 0.0
        %2331 = vmatpush1.msra.mxu0 0.0
        %2332 = vmatprep.subr.mxu0 0.0
        %2333 = vmatpush1.msra.mxu0 0.0
        %2334 = vmatprep.subr.mxu0 0.0
        %2335 = vmatpush1.msra.mxu0 0.0
        %2336 = vmatprep.subr.mxu0 0.0
        %2337 = vmatpush1.msra.mxu0 0.0
        %2338 = vmatprep.subr.mxu0 0.0
        %2339 = vmatpush1.msra.mxu0 0.0
        %2340 = vmatprep.subr.mxu0 0.0
        %2341 = vmatpush1.msra.mxu0 0.0
        %2342 = vmatprep.subr.mxu0 0.0
        %2343 = vmatpush1.msra.mxu0 0.0
        %2344 = vmatprep.subr.mxu0 0.0
        %2345 = vmatpush1.msra.mxu0 0.0
        %2346 = vmatprep.subr.mxu0 0.0
        %2347 = vmatpush1.msra.mxu0 %v2247
        %2348 = vmatprep.subr.mxu0 0.0
        %2349 = vmatpush1.msra.mxu0 %v2226
        %2350 = vmatprep.subr.mxu0 0.0
        %2351 = vmatpush1.msra.mxu0 %v2223
        %2352 = vmatprep.subr.mxu0 0.0
        %2353 = vmatpush2.msra.mxu0 0.0
        %2354 = vmatprep.subr.mxu0 0.0
        %2355 = vmatpush2.msra.mxu0 0.0
        %2356 = vmatprep.subr.mxu0 0.0
        %2357 = vmatpush2.msra.mxu0 0.0
        %2358 = vmatprep.subr.mxu0 0.0
        %2359 = vmatpush2.msra.mxu0 0.0
        %2360 = vmatprep.subr.mxu0 0.0
        %2361 = vmatpush2.msra.mxu0 0.0
        %2362 = vmatprep.subr.mxu0 0.0
        %2363 = vmatpush2.msra.mxu0 0.0
        %2364 = vmatprep.subr.mxu0 0.0
        %2365 = vmatpush2.msra.mxu0 0.0
        %2366 = vmatprep.subr.mxu0 0.0
        %2367 = vmatpush2.msra.mxu0 0.0
        %2368 = vmatprep.subr.mxu0 0.0
        %2369 = vmatpush2.msra.mxu0 0.0
        %2370 = vmatprep.subr.mxu0 0.0
        %2371 = vmatpush2.msra.mxu0 0.0
        %2372 = vmatprep.subr.mxu0 0.0
        %2373 = vmatpush2.msra.mxu0 0.0
        %2374 = vmatprep.subr.mxu0 0.0
        %2375 = vmatpush2.msra.mxu0 0.0
        %2376 = vmatprep.subr.mxu0 0.0
        %2377 = vmatpush2.msra.mxu0 0.0
        %2378 = vmatprep.subr.mxu0 0.0
        %2379 = vmatpush2.msra.mxu0 0.0
        %2380 = vmatprep.subr.mxu0 0.0
        %2381 = vmatpush2.msra.mxu0 0.0
        %2382 = vmatprep.subr.mxu0 0.0
        %2383 = vmatpush2.msra.mxu0 0.0
        %2384 = vmatprep.mubr.f32.mxu0 0.0
        %2385 = vmatmul.mubr.f32.gmra.mxu0 %v2238
        %v2386 = vpop.f32.mrf.mxu0
        %v2387 = vadd.f32 %v2234, %v2386
        %v2388 = vpop.f32.mrf.mxu0
        %2389 = vdwg.mxu0
        %v2390 = vadd.f32 %v2316, %v2318
        %v2391 = vsel %vm2139, %v2387, 0.0
        %v2392 = vadd.f32 %v2390, %v2391
        %2393 = vadd.xlane.f32.xlu0 %v2392
        %v2394 = vpop.xlane.xlu0 %2393
        %v2395 = vrcp.pop 262.0
        %v2396 = vmul.f32 %v2394, %v2395
        %v2397 = vsub.f32 %v2316, %v2396
        %v2398 = vsub.f32 %v2318, %v2396
        %v2399 = vsub.f32 %v2387, %v2396
        %v2400 = vmul.f32 %v2397, %v2397
        %v2401 = vmul.f32 %v2398, %v2398
        %v2402 = vmul.f32 %v2399, %v2399
        %v2403 = vadd.f32 %v2400, %v2401
        %v2404 = vsel %vm2139, %v2402, 0.0
        %v2405 = vadd.f32 %v2403, %v2404
        %2406 = vadd.xlane.f32.xlu0 %v2405
        %v2407 = vpop.xlane.xlu0 %2406
        %v2408 = vmul.f32 %v2407, %v2395
        %v2409 = vadd.f32 %v2408, 1e-05
        %v2410 = vrsqrt.pop %v2409
        %v2411 = vmul.f32 %v2397, %v2410
        %v2412 = vmul.f32 %v2398, %v2410
        %v2413 = vmul.f32 %v2399, %v2410
        %v2414 = vld [vmem:[%s9] sm:$0x7]
        %v2416 = vlaneseq
        %v2417 = vshrl.u32 %v2416, 7
        %v2418 = vsub.s32 0, %v2417
        %v2419 = vrot.slane %v2414, %v2418
        %v2420 = vlaneseq
        %v2421 = vshrl.u32 %v2420, 7
        %v2422 = vsub.s32 1, %v2421
        %v2423 = vrot.slane %v2414, %v2422
        %v2424 = vlaneseq
        %v2425 = vshrl.u32 %v2424, 7
        %v2426 = vsub.s32 2, %v2425
        %v2427 = vrot.slane %v2414, %v2426
        %v2431 = vmul.f32 %v2411, %v2419
        %v2432 = vmul.f32 %v2412, %v2423
        %v2433 = vmul.f32 %v2413, %v2427
        %v2434 = vld [vmem:[%s10] sm:$0x7]
        %v2436 = vlaneseq
        %v2437 = vshrl.u32 %v2436, 7
        %v2438 = vsub.s32 0, %v2437
        %v2439 = vrot.slane %v2434, %v2438
        %v2440 = vlaneseq
        %v2441 = vshrl.u32 %v2440, 7
        %v2442 = vsub.s32 1, %v2441
        %v2443 = vrot.slane %v2434, %v2442
        %v2444 = vlaneseq
        %v2445 = vshrl.u32 %v2444, 7
        %v2446 = vsub.s32 2, %v2445
        %v2447 = vrot.slane %v2434, %v2446
        %v2451 = vadd.f32 %v2431, %v2439
        %v2452 = vadd.f32 %v2432, %v2443
        %v2453 = vadd.f32 %v2433, %v2447
        %v2454 = vld [vmem:[%s11] sm:$0xff]
        %v2455 = vld [vmem:[%s11 + $0x8] sm:$0xff]
        %v2456 = vld [vmem:[%s11 + $0x10] sm:$0xff]
        %v2457 = vld [vmem:[%s11 + $0x18] sm:$0xff]
        %v2458 = vld [vmem:[%s11 + $0x20] sm:$0xff]
        %v2459 = vld [vmem:[%s11 + $0x28] sm:$0xff]
        %v2460 = vld [vmem:[%s11 + $0x30] sm:$0xff]
        %v2461 = vld [vmem:[%s11 + $0x38] sm:$0xff]
        %v2462 = vld [vmem:[%s11 + $0x40] sm:$0xff]
        %v2463 = vld [vmem:[%s11 + $0x48] sm:$0xff]
        %v2464 = vld [vmem:[%s11 + $0x50] sm:$0xff]
        %v2465 = vld [vmem:[%s11 + $0x58] sm:$0xff]
        %v2466 = vld [vmem:[%s11 + $0x60] sm:$0xff]
        %v2467 = vld [vmem:[%s11 + $0x68] sm:$0xff]
        %v2468 = vld [vmem:[%s11 + $0x70] sm:$0xff]
        %v2469 = vld [vmem:[%s11 + $0x78] sm:$0xff]
        %v2470 = vld [vmem:[%s11 + $0x80] sm:$0xff]
        %v2471 = vld [vmem:[%s11 + $0x88] sm:$0xff]
        %v2472 = vld [vmem:[%s11 + $0x90] sm:$0xff]
        %v2473 = vld [vmem:[%s11 + $0x98] sm:$0xff]
        %v2474 = vld [vmem:[%s11 + $0xa0] sm:$0xff]
        %v2475 = vld [vmem:[%s11 + $0xa8] sm:$0xff]
        %v2476 = vld [vmem:[%s11 + $0xb0] sm:$0xff]
        %v2477 = vld [vmem:[%s11 + $0xb8] sm:$0xff]
        %v2478 = vld [vmem:[%s11 + $0xc0] sm:$0xff]
        %v2479 = vld [vmem:[%s11 + $0xc8] sm:$0xff]
        %v2480 = vld [vmem:[%s11 + $0xd0] sm:$0xff]
        %v2481 = vld [vmem:[%s11 + $0xd8] sm:$0xff]
        %v2482 = vld [vmem:[%s11 + $0xe0] sm:$0xff]
        %v2483 = vld [vmem:[%s11 + $0xe8] sm:$0xff]
        %v2484 = vld [vmem:[%s11 + $0xf0] sm:$0xff]
        %v2485 = vld [vmem:[%s11 + $0xf8] sm:$0xff]
        %v2486 = vld [vmem:[%s11 + $0x100] sm:$0xff]
        %v2487 = vld [vmem:[%s11 + $0x108] sm:$0xff]
        %v2488 = vld [vmem:[%s11 + $0x110] sm:$0xff]
        %v2489 = vld [vmem:[%s11 + $0x118] sm:$0xff]
        %v2490 = vld [vmem:[%s11 + $0x120] sm:$0xff]
        %v2491 = vld [vmem:[%s11 + $0x128] sm:$0xff]
        %v2492 = vld [vmem:[%s11 + $0x130] sm:$0xff]
        %v2493 = vld [vmem:[%s11 + $0x138] sm:$0xff]
        %v2494 = vld [vmem:[%s11 + $0x140] sm:$0xff]
        %v2495 = vld [vmem:[%s11 + $0x148] sm:$0xff]
        %v2496 = vld [vmem:[%s11 + $0x150] sm:$0xff]
        %v2497 = vld [vmem:[%s11 + $0x158] sm:$0xff]
        %v2498 = vld [vmem:[%s11 + $0x160] sm:$0xff]
        %v2499 = vld [vmem:[%s11 + $0x168] sm:$0xff]
        %v2500 = vld [vmem:[%s11 + $0x170] sm:$0xff]
        %v2501 = vld [vmem:[%s11 + $0x178] sm:$0xff]
        %v2502 = vld [vmem:[%s11 + $0x180] sm:$0xff]
        %v2503 = vld [vmem:[%s11 + $0x188] sm:$0xff]
        %v2504 = vld [vmem:[%s11 + $0x190] sm:$0xff]
        %v2505 = vld [vmem:[%s11 + $0x198] sm:$0xff]
        %v2506 = vld [vmem:[%s11 + $0x1a0] sm:$0xff]
        %v2507 = vld [vmem:[%s11 + $0x1a8] sm:$0xff]
        %v2508 = vld [vmem:[%s11 + $0x1b0] sm:$0xff]
        %v2509 = vld [vmem:[%s11 + $0x1b8] sm:$0xff]
        %v2510 = vld [vmem:[%s11 + $0x1c0] sm:$0xff]
        %v2511 = vld [vmem:[%s11 + $0x1c8] sm:$0xff]
        %v2512 = vld [vmem:[%s11 + $0x1d0] sm:$0xff]
        %v2513 = vld [vmem:[%s11 + $0x1d8] sm:$0xff]
        %v2514 = vld [vmem:[%s11 + $0x1e0] sm:$0xff]
        %v2515 = vld [vmem:[%s11 + $0x1e8] sm:$0xff]
        %v2516 = vld [vmem:[%s11 + $0x1f0] sm:$0xff]
        %v2517 = vld [vmem:[%s11 + $0x1f8] sm:$0xff]
        %v2518 = vld [vmem:[%s11 + $0x200] sm:$0x3f]
        %v2519 = vld [vmem:[%s11 + $0x208] sm:$0x3f]
        %v2521 = vsel %vm2139, %v2453, 0
        %vm2523 = vcmask 1045504
        %v2525 = vsel %vm2523, %v2518, 0
        %v2528 = vsel %vm2523, %v2519, 0
        %2530 = vmatprep.subr.mxu0 %v2485
        %2531 = vmatpush1.msra.mxu0 %v2484
        %2532 = vmatprep.subr.mxu0 %v2483
        %2533 = vmatpush1.msra.mxu0 %v2482
        %2534 = vmatprep.subr.mxu0 %v2481
        %2535 = vmatpush1.msra.mxu0 %v2480
        %2536 = vmatprep.subr.mxu0 %v2479
        %2537 = vmatpush1.msra.mxu0 %v2478
        %2538 = vmatprep.subr.mxu0 %v2477
        %2539 = vmatpush1.msra.mxu0 %v2476
        %2540 = vmatprep.subr.mxu0 %v2475
        %2541 = vmatpush1.msra.mxu0 %v2474
        %2542 = vmatprep.subr.mxu0 %v2473
        %2543 = vmatpush1.msra.mxu0 %v2472
        %2544 = vmatprep.subr.mxu0 %v2471
        %2545 = vmatpush1.msra.mxu0 %v2470
        %2546 = vmatprep.subr.mxu0 %v2469
        %2547 = vmatpush1.msra.mxu0 %v2468
        %2548 = vmatprep.subr.mxu0 %v2467
        %2549 = vmatpush1.msra.mxu0 %v2466
        %2550 = vmatprep.subr.mxu0 %v2465
        %2551 = vmatpush1.msra.mxu0 %v2464
        %2552 = vmatprep.subr.mxu0 %v2463
        %2553 = vmatpush1.msra.mxu0 %v2462
        %2554 = vmatprep.subr.mxu0 %v2461
        %2555 = vmatpush1.msra.mxu0 %v2460
        %2556 = vmatprep.subr.mxu0 %v2459
        %2557 = vmatpush1.msra.mxu0 %v2458
        %2558 = vmatprep.subr.mxu0 %v2457
        %2559 = vmatpush1.msra.mxu0 %v2456
        %2560 = vmatprep.subr.mxu0 %v2455
        %2561 = vmatpush1.msra.mxu0 %v2454
        %2562 = vmatprep.subr.mxu0 %v2517
        %2563 = vmatpush2.msra.mxu0 %v2516
        %2564 = vmatprep.subr.mxu0 %v2515
        %2565 = vmatpush2.msra.mxu0 %v2514
        %2566 = vmatprep.subr.mxu0 %v2513
        %2567 = vmatpush2.msra.mxu0 %v2512
        %2568 = vmatprep.subr.mxu0 %v2511
        %2569 = vmatpush2.msra.mxu0 %v2510
        %2570 = vmatprep.subr.mxu0 %v2509
        %2571 = vmatpush2.msra.mxu0 %v2508
        %2572 = vmatprep.subr.mxu0 %v2507
        %2573 = vmatpush2.msra.mxu0 %v2506
        %2574 = vmatprep.subr.mxu0 %v2505
        %2575 = vmatpush2.msra.mxu0 %v2504
        %2576 = vmatprep.subr.mxu0 %v2503
        %2577 = vmatpush2.msra.mxu0 %v2502
        %2578 = vmatprep.subr.mxu0 %v2501
        %2579 = vmatpush2.msra.mxu0 %v2500
        %2580 = vmatprep.subr.mxu0 %v2499
        %2581 = vmatpush2.msra.mxu0 %v2498
        %2582 = vmatprep.subr.mxu0 %v2497
        %2583 = vmatpush2.msra.mxu0 %v2496
        %2584 = vmatprep.subr.mxu0 %v2495
        %2585 = vmatpush2.msra.mxu0 %v2494
        %2586 = vmatprep.subr.mxu0 %v2493
        %2587 = vmatpush2.msra.mxu0 %v2492
        %2588 = vmatprep.subr.mxu0 %v2491
        %2589 = vmatpush2.msra.mxu0 %v2490
        %2590 = vmatprep.subr.mxu0 %v2489
        %2591 = vmatpush2.msra.mxu0 %v2488
        %2592 = vmatprep.subr.mxu0 %v2487
        %2593 = vmatpush2.msra.mxu0 %v2486
        %2594 = vmatprep.mubr.f32.mxu0 %v2452
        %2595 = vmatmul.mubr.f32.gmra.mxu0 %v2451
        %v2596 = vpop.f32.mrf.mxu0
        %v2597 = vadd.f32 0.0, %v2596
        %v2598 = vpop.f32.mrf.mxu0
        %v2599 = vadd.f32 0.0, %v2598
        %2600 = vdwg.mxu0
        %2601 = vmatprep.subr.mxu0 0.0
        %2602 = vmatpush1.msra.mxu0 0.0
        %2603 = vmatprep.subr.mxu0 0.0
        %2604 = vmatpush1.msra.mxu0 0.0
        %2605 = vmatprep.subr.mxu0 0.0
        %2606 = vmatpush1.msra.mxu0 0.0
        %2607 = vmatprep.subr.mxu0 0.0
        %2608 = vmatpush1.msra.mxu0 0.0
        %2609 = vmatprep.subr.mxu0 0.0
        %2610 = vmatpush1.msra.mxu0 0.0
        %2611 = vmatprep.subr.mxu0 0.0
        %2612 = vmatpush1.msra.mxu0 0.0
        %2613 = vmatprep.subr.mxu0 0.0
        %2614 = vmatpush1.msra.mxu0 0.0
        %2615 = vmatprep.subr.mxu0 0.0
        %2616 = vmatpush1.msra.mxu0 0.0
        %2617 = vmatprep.subr.mxu0 0.0
        %2618 = vmatpush1.msra.mxu0 0.0
        %2619 = vmatprep.subr.mxu0 0.0
        %2620 = vmatpush1.msra.mxu0 0.0
        %2621 = vmatprep.subr.mxu0 0.0
        %2622 = vmatpush1.msra.mxu0 0.0
        %2623 = vmatprep.subr.mxu0 0.0
        %2624 = vmatpush1.msra.mxu0 0.0
        %2625 = vmatprep.subr.mxu0 0.0
        %2626 = vmatpush1.msra.mxu0 0.0
        %2627 = vmatprep.subr.mxu0 0.0
        %2628 = vmatpush1.msra.mxu0 0.0
        %2629 = vmatprep.subr.mxu0 0.0
        %2630 = vmatpush1.msra.mxu0 0.0
        %2631 = vmatprep.subr.mxu0 %v2528
        %2632 = vmatpush1.msra.mxu0 %v2525
        %2633 = vmatprep.subr.mxu0 0.0
        %2634 = vmatpush2.msra.mxu0 0.0
        %2635 = vmatprep.subr.mxu0 0.0
        %2636 = vmatpush2.msra.mxu0 0.0
        %2637 = vmatprep.subr.mxu0 0.0
        %2638 = vmatpush2.msra.mxu0 0.0
        %2639 = vmatprep.subr.mxu0 0.0
        %2640 = vmatpush2.msra.mxu0 0.0
        %2641 = vmatprep.subr.mxu0 0.0
        %2642 = vmatpush2.msra.mxu0 0.0
        %2643 = vmatprep.subr.mxu0 0.0
        %2644 = vmatpush2.msra.mxu0 0.0
        %2645 = vmatprep.subr.mxu0 0.0
        %2646 = vmatpush2.msra.mxu0 0.0
        %2647 = vmatprep.subr.mxu0 0.0
        %2648 = vmatpush2.msra.mxu0 0.0
        %2649 = vmatprep.subr.mxu0 0.0
        %2650 = vmatpush2.msra.mxu0 0.0
        %2651 = vmatprep.subr.mxu0 0.0
        %2652 = vmatpush2.msra.mxu0 0.0
        %2653 = vmatprep.subr.mxu0 0.0
        %2654 = vmatpush2.msra.mxu0 0.0
        %2655 = vmatprep.subr.mxu0 0.0
        %2656 = vmatpush2.msra.mxu0 0.0
        %2657 = vmatprep.subr.mxu0 0.0
        %2658 = vmatpush2.msra.mxu0 0.0
        %2659 = vmatprep.subr.mxu0 0.0
        %2660 = vmatpush2.msra.mxu0 0.0
        %2661 = vmatprep.subr.mxu0 0.0
        %2662 = vmatpush2.msra.mxu0 0.0
        %2663 = vmatprep.subr.mxu0 0.0
        %2664 = vmatpush2.msra.mxu0 0.0
        %2665 = vmatprep.mubr.f32.mxu0 0.0
        %2666 = vmatmul.mubr.f32.gmra.mxu0 %v2521
        %v2667 = vpop.f32.mrf.mxu0
        %v2668 = vadd.f32 %v2597, %v2667
        %v2669 = vpop.f32.mrf.mxu0
        %v2670 = vadd.f32 %v2599, %v2669
        %2671 = vdwg.mxu0
        %v2672 = vld [vmem:[%s12] sm:$0xff]
        %v2673 = vld [vmem:[%s12 + $0x8] sm:$0xff]
        %v2674 = vld [vmem:[%s12 + $0x10] sm:$0xff]
        %v2675 = vld [vmem:[%s12 + $0x18] sm:$0xff]
        %v2676 = vld [vmem:[%s12 + $0x20] sm:$0xff]
        %v2677 = vld [vmem:[%s12 + $0x28] sm:$0xff]
        %v2678 = vld [vmem:[%s12 + $0x30] sm:$0xff]
        %v2679 = vld [vmem:[%s12 + $0x38] sm:$0xff]
        %v2680 = vld [vmem:[%s12 + $0x40] sm:$0xff]
        %v2681 = vld [vmem:[%s12 + $0x48] sm:$0xff]
        %v2682 = vld [vmem:[%s12 + $0x50] sm:$0xff]
        %v2683 = vld [vmem:[%s12 + $0x58] sm:$0xff]
        %v2684 = vld [vmem:[%s12 + $0x60] sm:$0xff]
        %v2685 = vld [vmem:[%s12 + $0x68] sm:$0xff]
        %v2686 = vld [vmem:[%s12 + $0x70] sm:$0xff]
        %v2687 = vld [vmem:[%s12 + $0x78] sm:$0xff]
        %v2688 = vld [vmem:[%s12 + $0x80] sm:$0xff]
        %v2689 = vld [vmem:[%s12 + $0x88] sm:$0xff]
        %v2690 = vld [vmem:[%s12 + $0x90] sm:$0xff]
        %v2691 = vld [vmem:[%s12 + $0x98] sm:$0xff]
        %v2692 = vld [vmem:[%s12 + $0xa0] sm:$0xff]
        %v2693 = vld [vmem:[%s12 + $0xa8] sm:$0xff]
        %v2694 = vld [vmem:[%s12 + $0xb0] sm:$0xff]
        %v2695 = vld [vmem:[%s12 + $0xb8] sm:$0xff]
        %v2696 = vld [vmem:[%s12 + $0xc0] sm:$0xff]
        %v2697 = vld [vmem:[%s12 + $0xc8] sm:$0xff]
        %v2698 = vld [vmem:[%s12 + $0xd0] sm:$0xff]
        %v2699 = vld [vmem:[%s12 + $0xd8] sm:$0xff]
        %v2700 = vld [vmem:[%s12 + $0xe0] sm:$0xff]
        %v2701 = vld [vmem:[%s12 + $0xe8] sm:$0xff]
        %v2702 = vld [vmem:[%s12 + $0xf0] sm:$0xff]
        %v2703 = vld [vmem:[%s12 + $0xf8] sm:$0xff]
        %v2704 = vld [vmem:[%s12 + $0x100] sm:$0xff]
        %v2705 = vld [vmem:[%s12 + $0x108] sm:$0xff]
        %v2706 = vld [vmem:[%s12 + $0x110] sm:$0xff]
        %v2707 = vld [vmem:[%s12 + $0x118] sm:$0xff]
        %v2708 = vld [vmem:[%s12 + $0x120] sm:$0xff]
        %v2709 = vld [vmem:[%s12 + $0x128] sm:$0xff]
        %v2710 = vld [vmem:[%s12 + $0x130] sm:$0xff]
        %v2711 = vld [vmem:[%s12 + $0x138] sm:$0xff]
        %v2712 = vld [vmem:[%s12 + $0x140] sm:$0xff]
        %v2713 = vld [vmem:[%s12 + $0x148] sm:$0xff]
        %v2714 = vld [vmem:[%s12 + $0x150] sm:$0xff]
        %v2715 = vld [vmem:[%s12 + $0x158] sm:$0xff]
        %v2716 = vld [vmem:[%s12 + $0x160] sm:$0xff]
        %v2717 = vld [vmem:[%s12 + $0x168] sm:$0xff]
        %v2718 = vld [vmem:[%s12 + $0x170] sm:$0xff]
        %v2719 = vld [vmem:[%s12 + $0x178] sm:$0xff]
        %v2720 = vld [vmem:[%s12 + $0x180] sm:$0xff]
        %v2721 = vld [vmem:[%s12 + $0x188] sm:$0xff]
        %v2722 = vld [vmem:[%s12 + $0x190] sm:$0xff]
        %v2723 = vld [vmem:[%s12 + $0x198] sm:$0xff]
        %v2724 = vld [vmem:[%s12 + $0x1a0] sm:$0xff]
        %v2725 = vld [vmem:[%s12 + $0x1a8] sm:$0xff]
        %v2726 = vld [vmem:[%s12 + $0x1b0] sm:$0xff]
        %v2727 = vld [vmem:[%s12 + $0x1b8] sm:$0xff]
        %v2728 = vld [vmem:[%s12 + $0x1c0] sm:$0xff]
        %v2729 = vld [vmem:[%s12 + $0x1c8] sm:$0xff]
        %v2730 = vld [vmem:[%s12 + $0x1d0] sm:$0xff]
        %v2731 = vld [vmem:[%s12 + $0x1d8] sm:$0xff]
        %v2732 = vld [vmem:[%s12 + $0x1e0] sm:$0xff]
        %v2733 = vld [vmem:[%s12 + $0x1e8] sm:$0xff]
        %v2734 = vld [vmem:[%s12 + $0x1f0] sm:$0xff]
        %v2735 = vld [vmem:[%s12 + $0x1f8] sm:$0xff]
        %v2736 = vld [vmem:[%s12 + $0x200] sm:$0x3f]
        %v2737 = vld [vmem:[%s12 + $0x208] sm:$0x3f]
        %v2739 = vsel %vm2523, %v2736, 0
        %v2742 = vsel %vm2523, %v2737, 0
        %2744 = vmatprep.subr.mxu0 %v2703
        %2745 = vmatpush1.msra.mxu0 %v2702
        %2746 = vmatprep.subr.mxu0 %v2701
        %2747 = vmatpush1.msra.mxu0 %v2700
        %2748 = vmatprep.subr.mxu0 %v2699
        %2749 = vmatpush1.msra.mxu0 %v2698
        %2750 = vmatprep.subr.mxu0 %v2697
        %2751 = vmatpush1.msra.mxu0 %v2696
        %2752 = vmatprep.subr.mxu0 %v2695
        %2753 = vmatpush1.msra.mxu0 %v2694
        %2754 = vmatprep.subr.mxu0 %v2693
        %2755 = vmatpush1.msra.mxu0 %v2692
        %2756 = vmatprep.subr.mxu0 %v2691
        %2757 = vmatpush1.msra.mxu0 %v2690
        %2758 = vmatprep.subr.mxu0 %v2689
        %2759 = vmatpush1.msra.mxu0 %v2688
        %2760 = vmatprep.subr.mxu0 %v2687
        %2761 = vmatpush1.msra.mxu0 %v2686
        %2762 = vmatprep.subr.mxu0 %v2685
        %2763 = vmatpush1.msra.mxu0 %v2684
        %2764 = vmatprep.subr.mxu0 %v2683
        %2765 = vmatpush1.msra.mxu0 %v2682
        %2766 = vmatprep.subr.mxu0 %v2681
        %2767 = vmatpush1.msra.mxu0 %v2680
        %2768 = vmatprep.subr.mxu0 %v2679
        %2769 = vmatpush1.msra.mxu0 %v2678
        %2770 = vmatprep.subr.mxu0 %v2677
        %2771 = vmatpush1.msra.mxu0 %v2676
        %2772 = vmatprep.subr.mxu0 %v2675
        %2773 = vmatpush1.msra.mxu0 %v2674
        %2774 = vmatprep.subr.mxu0 %v2673
        %2775 = vmatpush1.msra.mxu0 %v2672
        %2776 = vmatprep.subr.mxu0 %v2735
        %2777 = vmatpush2.msra.mxu0 %v2734
        %2778 = vmatprep.subr.mxu0 %v2733
        %2779 = vmatpush2.msra.mxu0 %v2732
        %2780 = vmatprep.subr.mxu0 %v2731
        %2781 = vmatpush2.msra.mxu0 %v2730
        %2782 = vmatprep.subr.mxu0 %v2729
        %2783 = vmatpush2.msra.mxu0 %v2728
        %2784 = vmatprep.subr.mxu0 %v2727
        %2785 = vmatpush2.msra.mxu0 %v2726
        %2786 = vmatprep.subr.mxu0 %v2725
        %2787 = vmatpush2.msra.mxu0 %v2724
        %2788 = vmatprep.subr.mxu0 %v2723
        %2789 = vmatpush2.msra.mxu0 %v2722
        %2790 = vmatprep.subr.mxu0 %v2721
        %2791 = vmatpush2.msra.mxu0 %v2720
        %2792 = vmatprep.subr.mxu0 %v2719
        %2793 = vmatpush2.msra.mxu0 %v2718
        %2794 = vmatprep.subr.mxu0 %v2717
        %2795 = vmatpush2.msra.mxu0 %v2716
        %2796 = vmatprep.subr.mxu0 %v2715
        %2797 = vmatpush2.msra.mxu0 %v2714
        %2798 = vmatprep.subr.mxu0 %v2713
        %2799 = vmatpush2.msra.mxu0 %v2712
        %2800 = vmatprep.subr.mxu0 %v2711
        %2801 = vmatpush2.msra.mxu0 %v2710
        %2802 = vmatprep.subr.mxu0 %v2709
        %2803 = vmatpush2.msra.mxu0 %v2708
        %2804 = vmatprep.subr.mxu0 %v2707
        %2805 = vmatpush2.msra.mxu0 %v2706
        %2806 = vmatprep.subr.mxu0 %v2705
        %2807 = vmatpush2.msra.mxu0 %v2704
        %2808 = vmatprep.mubr.f32.mxu0 %v2452
        %2809 = vmatmul.mubr.f32.gmra.mxu0 %v2451
        %v2810 = vpop.f32.mrf.mxu0
        %v2811 = vadd.f32 0.0, %v2810
        %v2812 = vpop.f32.mrf.mxu0
        %v2813 = vadd.f32 0.0, %v2812
        %2814 = vdwg.mxu0
        %2815 = vmatprep.subr.mxu0 0.0
        %2816 = vmatpush1.msra.mxu0 0.0
        %2817 = vmatprep.subr.mxu0 0.0
        %2818 = vmatpush1.msra.mxu0 0.0
        %2819 = vmatprep.subr.mxu0 0.0
        %2820 = vmatpush1.msra.mxu0 0.0
        %2821 = vmatprep.subr.mxu0 0.0
        %2822 = vmatpush1.msra.mxu0 0.0
        %2823 = vmatprep.subr.mxu0 0.0
        %2824 = vmatpush1.msra.mxu0 0.0
        %2825 = vmatprep.subr.mxu0 0.0
        %2826 = vmatpush1.msra.mxu0 0.0
        %2827 = vmatprep.subr.mxu0 0.0
        %2828 = vmatpush1.msra.mxu0 0.0
        %2829 = vmatprep.subr.mxu0 0.0
        %2830 = vmatpush1.msra.mxu0 0.0
        %2831 = vmatprep.subr.mxu0 0.0
        %2832 = vmatpush1.msra.mxu0 0.0
        %2833 = vmatprep.subr.mxu0 0.0
        %2834 = vmatpush1.msra.mxu0 0.0
        %2835 = vmatprep.subr.mxu0 0.0
        %2836 = vmatpush1.msra.mxu0 0.0
        %2837 = vmatprep.subr.mxu0 0.0
        %2838 = vmatpush1.msra.mxu0 0.0
        %2839 = vmatprep.subr.mxu0 0.0
        %2840 = vmatpush1.msra.mxu0 0.0
        %2841 = vmatprep.subr.mxu0 0.0
        %2842 = vmatpush1.msra.mxu0 0.0
        %2843 = vmatprep.subr.mxu0 0.0
        %2844 = vmatpush1.msra.mxu0 0.0
        %2845 = vmatprep.subr.mxu0 %v2742
        %2846 = vmatpush1.msra.mxu0 %v2739
        %2847 = vmatprep.subr.mxu0 0.0
        %2848 = vmatpush2.msra.mxu0 0.0
        %2849 = vmatprep.subr.mxu0 0.0
        %2850 = vmatpush2.msra.mxu0 0.0
        %2851 = vmatprep.subr.mxu0 0.0
        %2852 = vmatpush2.msra.mxu0 0.0
        %2853 = vmatprep.subr.mxu0 0.0
        %2854 = vmatpush2.msra.mxu0 0.0
        %2855 = vmatprep.subr.mxu0 0.0
        %2856 = vmatpush2.msra.mxu0 0.0
        %2857 = vmatprep.subr.mxu0 0.0
        %2858 = vmatpush2.msra.mxu0 0.0
        %2859 = vmatprep.subr.mxu0 0.0
        %2860 = vmatpush2.msra.mxu0 0.0
        %2861 = vmatprep.subr.mxu0 0.0
        %2862 = vmatpush2.msra.mxu0 0.0
        %2863 = vmatprep.subr.mxu0 0.0
        %2864 = vmatpush2.msra.mxu0 0.0
        %2865 = vmatprep.subr.mxu0 0.0
        %2866 = vmatpush2.msra.mxu0 0.0
        %2867 = vmatprep.subr.mxu0 0.0
        %2868 = vmatpush2.msra.mxu0 0.0
        %2869 = vmatprep.subr.mxu0 0.0
        %2870 = vmatpush2.msra.mxu0 0.0
        %2871 = vmatprep.subr.mxu0 0.0
        %2872 = vmatpush2.msra.mxu0 0.0
        %2873 = vmatprep.subr.mxu0 0.0
        %2874 = vmatpush2.msra.mxu0 0.0
        %2875 = vmatprep.subr.mxu0 0.0
        %2876 = vmatpush2.msra.mxu0 0.0
        %2877 = vmatprep.subr.mxu0 0.0
        %2878 = vmatpush2.msra.mxu0 0.0
        %2879 = vmatprep.mubr.f32.mxu0 0.0
        %2880 = vmatmul.mubr.f32.gmra.mxu0 %v2521
        %v2881 = vpop.f32.mrf.mxu0
        %v2882 = vadd.f32 %v2811, %v2881
        %v2883 = vpop.f32.mrf.mxu0
        %v2884 = vadd.f32 %v2813, %v2883
        %2885 = vdwg.mxu0
        %v2886 = vmax.f32 %v2668, %v2882
        %v2887 = vmax.f32 %v2670, %v2884
        %v2888 = vld [vmem:[%s14] sm:$0x1]
        %v2889 = vld [vmem:[%s13] sm:$0xff]
        %v2890 = vld [vmem:[%s13 + $0x8] sm:$0xff]
        %v2891 = vld [vmem:[%s13 + $0x10] sm:$0xff]
        %v2892 = vld [vmem:[%s13 + $0x18] sm:$0xff]
        %v2893 = vld [vmem:[%s13 + $0x20] sm:$0xff]
        %v2894 = vld [vmem:[%s13 + $0x28] sm:$0xff]
        %v2895 = vld [vmem:[%s13 + $0x30] sm:$0xff]
        %v2896 = vld [vmem:[%s13 + $0x38] sm:$0xff]
        %v2897 = vld [vmem:[%s13 + $0x40] sm:$0xff]
        %v2898 = vld [vmem:[%s13 + $0x48] sm:$0xff]
        %v2899 = vld [vmem:[%s13 + $0x50] sm:$0xff]
        %v2900 = vld [vmem:[%s13 + $0x58] sm:$0xff]
        %v2901 = vld [vmem:[%s13 + $0x60] sm:$0xff]
        %v2902 = vld [vmem:[%s13 + $0x68] sm:$0xff]
        %v2903 = vld [vmem:[%s13 + $0x70] sm:$0xff]
        %v2904 = vld [vmem:[%s13 + $0x78] sm:$0xff]
        %v2905 = vld [vmem:[%s13 + $0x80] sm:$0x7]
        %v2907 = vsel %vm535, %v2887, 0
        %v2910 = vsel %vm539, %v2905, 0
        %2912 = vmatprep.subr.mxu0 0.0
        %2913 = vmatpush1.msra.mxu0 %v2904
        %2914 = vmatprep.subr.mxu0 0.0
        %2915 = vmatpush1.msra.mxu0 %v2903
        %2916 = vmatprep.subr.mxu0 0.0
        %2917 = vmatpush1.msra.mxu0 %v2902
        %2918 = vmatprep.subr.mxu0 0.0
        %2919 = vmatpush1.msra.mxu0 %v2901
        %2920 = vmatprep.subr.mxu0 0.0
        %2921 = vmatpush1.msra.mxu0 %v2900
        %2922 = vmatprep.subr.mxu0 0.0
        %2923 = vmatpush1.msra.mxu0 %v2899
        %2924 = vmatprep.subr.mxu0 0.0
        %2925 = vmatpush1.msra.mxu0 %v2898
        %2926 = vmatprep.subr.mxu0 0.0
        %2927 = vmatpush1.msra.mxu0 %v2897
        %2928 = vmatprep.subr.mxu0 0.0
        %2929 = vmatpush1.msra.mxu0 %v2896
        %2930 = vmatprep.subr.mxu0 0.0
        %2931 = vmatpush1.msra.mxu0 %v2895
        %2932 = vmatprep.subr.mxu0 0.0
        %2933 = vmatpush1.msra.mxu0 %v2894
        %2934 = vmatprep.subr.mxu0 0.0
        %2935 = vmatpush1.msra.mxu0 %v2893
        %2936 = vmatprep.subr.mxu0 0.0
        %2937 = vmatpush1.msra.mxu0 %v2892
        %2938 = vmatprep.subr.mxu0 0.0
        %2939 = vmatpush1.msra.mxu0 %v2891
        %2940 = vmatprep.subr.mxu0 0.0
        %2941 = vmatpush1.msra.mxu0 %v2890
        %2942 = vmatprep.subr.mxu0 0.0
        %2943 = vmatpush1.msra.mxu0 %v2889
        %2944 = vmatprep.subr.mxu0 0.0
        %2945 = vmatpush2.msra.mxu0 0.0
        %2946 = vmatprep.subr.mxu0 0.0
        %2947 = vmatpush2.msra.mxu0 0.0
        %2948 = vmatprep.subr.mxu0 0.0
        %2949 = vmatpush2.msra.mxu0 0.0
        %2950 = vmatprep.subr.mxu0 0.0
        %2951 = vmatpush2.msra.mxu0 0.0
        %2952 = vmatprep.subr.mxu0 0.0
        %2953 = vmatpush2.msra.mxu0 0.0
        %2954 = vmatprep.subr.mxu0 0.0
        %2955 = vmatpush2.msra.mxu0 0.0
        %2956 = vmatprep.subr.mxu0 0.0
        %2957 = vmatpush2.msra.mxu0 0.0
        %2958 = vmatprep.subr.mxu0 0.0
        %2959 = vmatpush2.msra.mxu0 0.0
        %2960 = vmatprep.subr.mxu0 0.0
        %2961 = vmatpush2.msra.mxu0 0.0
        %2962 = vmatprep.subr.mxu0 0.0
        %2963 = vmatpush2.msra.mxu0 0.0
        %2964 = vmatprep.subr.mxu0 0.0
        %2965 = vmatpush2.msra.mxu0 0.0
        %2966 = vmatprep.subr.mxu0 0.0
        %2967 = vmatpush2.msra.mxu0 0.0
        %2968 = vmatprep.subr.mxu0 0.0
        %2969 = vmatpush2.msra.mxu0 0.0
        %2970 = vmatprep.subr.mxu0 0.0
        %2971 = vmatpush2.msra.mxu0 0.0
        %2972 = vmatprep.subr.mxu0 0.0
        %2973 = vmatpush2.msra.mxu0 0.0
        %2974 = vmatprep.subr.mxu0 0.0
        %2975 = vmatpush2.msra.mxu0 %v2910
        %2976 = vmatprep.mubr.f32.mxu0 %v2907
        %2977 = vmatmul.mubr.f32.gmra.mxu0 %v2886
        %v2978 = vpop.f32.mrf.mxu0
        %v2979 = vadd.f32 0.0, %v2978
        %v2980 = vpop.f32.mrf.mxu0
        %2981 = vdwg.mxu0
        %v2982 = vadd.f32 %v2888, %v2979
        %s2983 = scalar_lea.vmem %s13, 136
        %v2984 = vld [vmem:[%s2983] sm:$0xff]
        %v2985 = vld [vmem:[%s2983 + $0x8] sm:$0xff]
        %v2986 = vld [vmem:[%s2983 + $0x10] sm:$0xff]
        %v2987 = vld [vmem:[%s2983 + $0x18] sm:$0xff]
        %v2988 = vld [vmem:[%s2983 + $0x20] sm:$0xff]
        %v2989 = vld [vmem:[%s2983 + $0x28] sm:$0xff]
        %v2990 = vld [vmem:[%s2983 + $0x30] sm:$0xff]
        %v2991 = vld [vmem:[%s2983 + $0x38] sm:$0xff]
        %v2992 = vld [vmem:[%s2983 + $0x40] sm:$0xff]
        %v2993 = vld [vmem:[%s2983 + $0x48] sm:$0xff]
        %v2994 = vld [vmem:[%s2983 + $0x50] sm:$0xff]
        %v2995 = vld [vmem:[%s2983 + $0x58] sm:$0xff]
        %v2996 = vld [vmem:[%s2983 + $0x60] sm:$0xff]
        %v2997 = vld [vmem:[%s2983 + $0x68] sm:$0xff]
        %v2998 = vld [vmem:[%s2983 + $0x70] sm:$0xff]
        %v2999 = vld [vmem:[%s2983 + $0x78] sm:$0xff]
        %v3000 = vld [vmem:[%s2983 + $0x80] sm:$0x7]
        %v3002 = vrot.slane %v2886, 1
        %v3003 = vrot.slane %v2887, 1
        %v3005 = vsel %vm535, %v3003, 0
        %v3008 = vsel %vm539, %v3000, 0
        %3010 = vmatprep.subr.mxu0 0.0
        %3011 = vmatpush1.msra.mxu0 %v2999
        %3012 = vmatprep.subr.mxu0 0.0
        %3013 = vmatpush1.msra.mxu0 %v2998
        %3014 = vmatprep.subr.mxu0 0.0
        %3015 = vmatpush1.msra.mxu0 %v2997
        %3016 = vmatprep.subr.mxu0 0.0
        %3017 = vmatpush1.msra.mxu0 %v2996
        %3018 = vmatprep.subr.mxu0 0.0
        %3019 = vmatpush1.msra.mxu0 %v2995
        %3020 = vmatprep.subr.mxu0 0.0
        %3021 = vmatpush1.msra.mxu0 %v2994
        %3022 = vmatprep.subr.mxu0 0.0
        %3023 = vmatpush1.msra.mxu0 %v2993
        %3024 = vmatprep.subr.mxu0 0.0
        %3025 = vmatpush1.msra.mxu0 %v2992
        %3026 = vmatprep.subr.mxu0 0.0
        %3027 = vmatpush1.msra.mxu0 %v2991
        %3028 = vmatprep.subr.mxu0 0.0
        %3029 = vmatpush1.msra.mxu0 %v2990
        %3030 = vmatprep.subr.mxu0 0.0
        %3031 = vmatpush1.msra.mxu0 %v2989
        %3032 = vmatprep.subr.mxu0 0.0
        %3033 = vmatpush1.msra.mxu0 %v2988
        %3034 = vmatprep.subr.mxu0 0.0
        %3035 = vmatpush1.msra.mxu0 %v2987
        %3036 = vmatprep.subr.mxu0 0.0
        %3037 = vmatpush1.msra.mxu0 %v2986
        %3038 = vmatprep.subr.mxu0 0.0
        %3039 = vmatpush1.msra.mxu0 %v2985
        %3040 = vmatprep.subr.mxu0 0.0
        %3041 = vmatpush1.msra.mxu0 %v2984
        %3042 = vmatprep.subr.mxu0 0.0
        %3043 = vmatpush2.msra.mxu0 0.0
        %3044 = vmatprep.subr.mxu0 0.0
        %3045 = vmatpush2.msra.mxu0 0.0
        %3046 = vmatprep.subr.mxu0 0.0
        %3047 = vmatpush2.msra.mxu0 0.0
        %3048 = vmatprep.subr.mxu0 0.0
        %3049 = vmatpush2.msra.mxu0 0.0
        %3050 = vmatprep.subr.mxu0 0.0
        %3051 = vmatpush2.msra.mxu0 0.0
        %3052 = vmatprep.subr.mxu0 0.0
        %3053 = vmatpush2.msra.mxu0 0.0
        %3054 = vmatprep.subr.mxu0 0.0
        %3055 = vmatpush2.msra.mxu0 0.0
        %3056 = vmatprep.subr.mxu0 0.0
        %3057 = vmatpush2.msra.mxu0 0.0
        %3058 = vmatprep.subr.mxu0 0.0
        %3059 = vmatpush2.msra.mxu0 0.0
        %3060 = vmatprep.subr.mxu0 0.0
        %3061 = vmatpush2.msra.mxu0 0.0
        %3062 = vmatprep.subr.mxu0 0.0
        %3063 = vmatpush2.msra.mxu0 0.0
        %3064 = vmatprep.subr.mxu0 0.0
        %3065 = vmatpush2.msra.mxu0 0.0
        %3066 = vmatprep.subr.mxu0 0.0
        %3067 = vmatpush2.msra.mxu0 0.0
        %3068 = vmatprep.subr.mxu0 0.0
        %3069 = vmatpush2.msra.mxu0 0.0
        %3070 = vmatprep.subr.mxu0 0.0
        %3071 = vmatpush2.msra.mxu0 0.0
        %3072 = vmatprep.subr.mxu0 0.0
        %3073 = vmatpush2.msra.mxu0 %v3008
        %3074 = vmatprep.mubr.f32.mxu0 %v3005
        %3075 = vmatmul.mubr.f32.gmra.mxu0 %v3002
        %v3076 = vpop.f32.mrf.mxu0
        %v3077 = vadd.f32 0.0, %v3076
        %v3078 = vpop.f32.mrf.mxu0
        %3079 = vdwg.mxu0
        %v3080 = vadd.f32 %v2982, %v3077
        %s3081 = scalar_lea.vmem %s13, 272
        %v3082 = vld [vmem:[%s3081] sm:$0xff]
        %v3083 = vld [vmem:[%s3081 + $0x8] sm:$0xff]
        %v3084 = vld [vmem:[%s3081 + $0x10] sm:$0xff]
        %v3085 = vld [vmem:[%s3081 + $0x18] sm:$0xff]
        %v3086 = vld [vmem:[%s3081 + $0x20] sm:$0xff]
        %v3087 = vld [vmem:[%s3081 + $0x28] sm:$0xff]
        %v3088 = vld [vmem:[%s3081 + $0x30] sm:$0xff]
        %v3089 = vld [vmem:[%s3081 + $0x38] sm:$0xff]
        %v3090 = vld [vmem:[%s3081 + $0x40] sm:$0xff]
        %v3091 = vld [vmem:[%s3081 + $0x48] sm:$0xff]
        %v3092 = vld [vmem:[%s3081 + $0x50] sm:$0xff]
        %v3093 = vld [vmem:[%s3081 + $0x58] sm:$0xff]
        %v3094 = vld [vmem:[%s3081 + $0x60] sm:$0xff]
        %v3095 = vld [vmem:[%s3081 + $0x68] sm:$0xff]
        %v3096 = vld [vmem:[%s3081 + $0x70] sm:$0xff]
        %v3097 = vld [vmem:[%s3081 + $0x78] sm:$0xff]
        %v3098 = vld [vmem:[%s3081 + $0x80] sm:$0x7]
        %v3099 = vrot.slane %v2886, 2
        %v3100 = vrot.slane %v2887, 2
        %v3102 = vsel %vm535, %v3100, 0
        %v3105 = vsel %vm539, %v3098, 0
        %3107 = vmatprep.subr.mxu0 0.0
        %3108 = vmatpush1.msra.mxu0 %v3097
        %3109 = vmatprep.subr.mxu0 0.0
        %3110 = vmatpush1.msra.mxu0 %v3096
        %3111 = vmatprep.subr.mxu0 0.0
        %3112 = vmatpush1.msra.mxu0 %v3095
        %3113 = vmatprep.subr.mxu0 0.0
        %3114 = vmatpush1.msra.mxu0 %v3094
        %3115 = vmatprep.subr.mxu0 0.0
        %3116 = vmatpush1.msra.mxu0 %v3093
        %3117 = vmatprep.subr.mxu0 0.0
        %3118 = vmatpush1.msra.mxu0 %v3092
        %3119 = vmatprep.subr.mxu0 0.0
        %3120 = vmatpush1.msra.mxu0 %v3091
        %3121 = vmatprep.subr.mxu0 0.0
        %3122 = vmatpush1.msra.mxu0 %v3090
        %3123 = vmatprep.subr.mxu0 0.0
        %3124 = vmatpush1.msra.mxu0 %v3089
        %3125 = vmatprep.subr.mxu0 0.0
        %3126 = vmatpush1.msra.mxu0 %v3088
        %3127 = vmatprep.subr.mxu0 0.0
        %3128 = vmatpush1.msra.mxu0 %v3087
        %3129 = vmatprep.subr.mxu0 0.0
        %3130 = vmatpush1.msra.mxu0 %v3086
        %3131 = vmatprep.subr.mxu0 0.0
        %3132 = vmatpush1.msra.mxu0 %v3085
        %3133 = vmatprep.subr.mxu0 0.0
        %3134 = vmatpush1.msra.mxu0 %v3084
        %3135 = vmatprep.subr.mxu0 0.0
        %3136 = vmatpush1.msra.mxu0 %v3083
        %3137 = vmatprep.subr.mxu0 0.0
        %3138 = vmatpush1.msra.mxu0 %v3082
        %3139 = vmatprep.subr.mxu0 0.0
        %3140 = vmatpush2.msra.mxu0 0.0
        %3141 = vmatprep.subr.mxu0 0.0
        %3142 = vmatpush2.msra.mxu0 0.0
        %3143 = vmatprep.subr.mxu0 0.0
        %3144 = vmatpush2.msra.mxu0 0.0
        %3145 = vmatprep.subr.mxu0 0.0
        %3146 = vmatpush2.msra.mxu0 0.0
        %3147 = vmatprep.subr.mxu0 0.0
        %3148 = vmatpush2.msra.mxu0 0.0
        %3149 = vmatprep.subr.mxu0 0.0
        %3150 = vmatpush2.msra.mxu0 0.0
        %3151 = vmatprep.subr.mxu0 0.0
        %3152 = vmatpush2.msra.mxu0 0.0
        %3153 = vmatprep.subr.mxu0 0.0
        %3154 = vmatpush2.msra.mxu0 0.0
        %3155 = vmatprep.subr.mxu0 0.0
        %3156 = vmatpush2.msra.mxu0 0.0
        %3157 = vmatprep.subr.mxu0 0.0
        %3158 = vmatpush2.msra.mxu0 0.0
        %3159 = vmatprep.subr.mxu0 0.0
        %3160 = vmatpush2.msra.mxu0 0.0
        %3161 = vmatprep.subr.mxu0 0.0
        %3162 = vmatpush2.msra.mxu0 0.0
        %3163 = vmatprep.subr.mxu0 0.0
        %3164 = vmatpush2.msra.mxu0 0.0
        %3165 = vmatprep.subr.mxu0 0.0
        %3166 = vmatpush2.msra.mxu0 0.0
        %3167 = vmatprep.subr.mxu0 0.0
        %3168 = vmatpush2.msra.mxu0 0.0
        %3169 = vmatprep.subr.mxu0 0.0
        %3170 = vmatpush2.msra.mxu0 %v3105
        %3171 = vmatprep.mubr.f32.mxu0 %v3102
        %3172 = vmatmul.mubr.f32.gmra.mxu0 %v3099
        %v3173 = vpop.f32.mrf.mxu0
        %v3174 = vadd.f32 0.0, %v3173
        %v3175 = vpop.f32.mrf.mxu0
        %3176 = vdwg.mxu0
        %v3177 = vadd.f32 %v3080, %v3174
        %s3178 = scalar_lea.vmem %s13, 408
        %v3179 = vld [vmem:[%s3178] sm:$0xff]
        %v3180 = vld [vmem:[%s3178 + $0x8] sm:$0xff]
        %v3181 = vld [vmem:[%s3178 + $0x10] sm:$0xff]
        %v3182 = vld [vmem:[%s3178 + $0x18] sm:$0xff]
        %v3183 = vld [vmem:[%s3178 + $0x20] sm:$0xff]
        %v3184 = vld [vmem:[%s3178 + $0x28] sm:$0xff]
        %v3185 = vld [vmem:[%s3178 + $0x30] sm:$0xff]
        %v3186 = vld [vmem:[%s3178 + $0x38] sm:$0xff]
        %v3187 = vld [vmem:[%s3178 + $0x40] sm:$0xff]
        %v3188 = vld [vmem:[%s3178 + $0x48] sm:$0xff]
        %v3189 = vld [vmem:[%s3178 + $0x50] sm:$0xff]
        %v3190 = vld [vmem:[%s3178 + $0x58] sm:$0xff]
        %v3191 = vld [vmem:[%s3178 + $0x60] sm:$0xff]
        %v3192 = vld [vmem:[%s3178 + $0x68] sm:$0xff]
        %v3193 = vld [vmem:[%s3178 + $0x70] sm:$0xff]
        %v3194 = vld [vmem:[%s3178 + $0x78] sm:$0xff]
        %v3195 = vld [vmem:[%s3178 + $0x80] sm:$0x7]
        %v3196 = vrot.slane %v2886, 3
        %v3197 = vrot.slane %v2887, 3
        %v3199 = vsel %vm535, %v3197, 0
        %v3202 = vsel %vm539, %v3195, 0
        %3204 = vmatprep.subr.mxu0 0.0
        %3205 = vmatpush1.msra.mxu0 %v3194
        %3206 = vmatprep.subr.mxu0 0.0
        %3207 = vmatpush1.msra.mxu0 %v3193
        %3208 = vmatprep.subr.mxu0 0.0
        %3209 = vmatpush1.msra.mxu0 %v3192
        %3210 = vmatprep.subr.mxu0 0.0
        %3211 = vmatpush1.msra.mxu0 %v3191
        %3212 = vmatprep.subr.mxu0 0.0
        %3213 = vmatpush1.msra.mxu0 %v3190
        %3214 = vmatprep.subr.mxu0 0.0
        %3215 = vmatpush1.msra.mxu0 %v3189
        %3216 = vmatprep.subr.mxu0 0.0
        %3217 = vmatpush1.msra.mxu0 %v3188
        %3218 = vmatprep.subr.mxu0 0.0
        %3219 = vmatpush1.msra.mxu0 %v3187
        %3220 = vmatprep.subr.mxu0 0.0
        %3221 = vmatpush1.msra.mxu0 %v3186
        %3222 = vmatprep.subr.mxu0 0.0
        %3223 = vmatpush1.msra.mxu0 %v3185
        %3224 = vmatprep.subr.mxu0 0.0
        %3225 = vmatpush1.msra.mxu0 %v3184
        %3226 = vmatprep.subr.mxu0 0.0
        %3227 = vmatpush1.msra.mxu0 %v3183
        %3228 = vmatprep.subr.mxu0 0.0
        %3229 = vmatpush1.msra.mxu0 %v3182
        %3230 = vmatprep.subr.mxu0 0.0
        %3231 = vmatpush1.msra.mxu0 %v3181
        %3232 = vmatprep.subr.mxu0 0.0
        %3233 = vmatpush1.msra.mxu0 %v3180
        %3234 = vmatprep.subr.mxu0 0.0
        %3235 = vmatpush1.msra.mxu0 %v3179
        %3236 = vmatprep.subr.mxu0 0.0
        %3237 = vmatpush2.msra.mxu0 0.0
        %3238 = vmatprep.subr.mxu0 0.0
        %3239 = vmatpush2.msra.mxu0 0.0
        %3240 = vmatprep.subr.mxu0 0.0
        %3241 = vmatpush2.msra.mxu0 0.0
        %3242 = vmatprep.subr.mxu0 0.0
        %3243 = vmatpush2.msra.mxu0 0.0
        %3244 = vmatprep.subr.mxu0 0.0
        %3245 = vmatpush2.msra.mxu0 0.0
        %3246 = vmatprep.subr.mxu0 0.0
        %3247 = vmatpush2.msra.mxu0 0.0
        %3248 = vmatprep.subr.mxu0 0.0
        %3249 = vmatpush2.msra.mxu0 0.0
        %3250 = vmatprep.subr.mxu0 0.0
        %3251 = vmatpush2.msra.mxu0 0.0
        %3252 = vmatprep.subr.mxu0 0.0
        %3253 = vmatpush2.msra.mxu0 0.0
        %3254 = vmatprep.subr.mxu0 0.0
        %3255 = vmatpush2.msra.mxu0 0.0
        %3256 = vmatprep.subr.mxu0 0.0
        %3257 = vmatpush2.msra.mxu0 0.0
        %3258 = vmatprep.subr.mxu0 0.0
        %3259 = vmatpush2.msra.mxu0 0.0
        %3260 = vmatprep.subr.mxu0 0.0
        %3261 = vmatpush2.msra.mxu0 0.0
        %3262 = vmatprep.subr.mxu0 0.0
        %3263 = vmatpush2.msra.mxu0 0.0
        %3264 = vmatprep.subr.mxu0 0.0
        %3265 = vmatpush2.msra.mxu0 0.0
        %3266 = vmatprep.subr.mxu0 0.0
        %3267 = vmatpush2.msra.mxu0 %v3202
        %3268 = vmatprep.mubr.f32.mxu0 %v3199
        %3269 = vmatmul.mubr.f32.gmra.mxu0 %v3196
        %v3270 = vpop.f32.mrf.mxu0
        %v3271 = vadd.f32 0.0, %v3270
        %v3272 = vpop.f32.mrf.mxu0
        %3273 = vdwg.mxu0
        %v3274 = vadd.f32 %v3177, %v3271
        %s3275 = scalar_lea.vmem %s13, 544
        %v3276 = vld [vmem:[%s3275] sm:$0xff]
        %v3277 = vld [vmem:[%s3275 + $0x8] sm:$0xff]
        %v3278 = vld [vmem:[%s3275 + $0x10] sm:$0xff]
        %v3279 = vld [vmem:[%s3275 + $0x18] sm:$0xff]
        %v3280 = vld [vmem:[%s3275 + $0x20] sm:$0xff]
        %v3281 = vld [vmem:[%s3275 + $0x28] sm:$0xff]
        %v3282 = vld [vmem:[%s3275 + $0x30] sm:$0xff]
        %v3283 = vld [vmem:[%s3275 + $0x38] sm:$0xff]
        %v3284 = vld [vmem:[%s3275 + $0x40] sm:$0xff]
        %v3285 = vld [vmem:[%s3275 + $0x48] sm:$0xff]
        %v3286 = vld [vmem:[%s3275 + $0x50] sm:$0xff]
        %v3287 = vld [vmem:[%s3275 + $0x58] sm:$0xff]
        %v3288 = vld [vmem:[%s3275 + $0x60] sm:$0xff]
        %v3289 = vld [vmem:[%s3275 + $0x68] sm:$0xff]
        %v3290 = vld [vmem:[%s3275 + $0x70] sm:$0xff]
        %v3291 = vld [vmem:[%s3275 + $0x78] sm:$0xff]
        %v3292 = vld [vmem:[%s3275 + $0x80] sm:$0x7]
        %v3293 = vrot.slane %v2886, 4
        %v3294 = vrot.slane %v2887, 4
        %v3296 = vsel %vm535, %v3294, 0
        %v3299 = vsel %vm539, %v3292, 0
        %3301 = vmatprep.subr.mxu0 0.0
        %3302 = vmatpush1.msra.mxu0 %v3291
        %3303 = vmatprep.subr.mxu0 0.0
        %3304 = vmatpush1.msra.mxu0 %v3290
        %3305 = vmatprep.subr.mxu0 0.0
        %3306 = vmatpush1.msra.mxu0 %v3289
        %3307 = vmatprep.subr.mxu0 0.0
        %3308 = vmatpush1.msra.mxu0 %v3288
        %3309 = vmatprep.subr.mxu0 0.0
        %3310 = vmatpush1.msra.mxu0 %v3287
        %3311 = vmatprep.subr.mxu0 0.0
        %3312 = vmatpush1.msra.mxu0 %v3286
        %3313 = vmatprep.subr.mxu0 0.0
        %3314 = vmatpush1.msra.mxu0 %v3285
        %3315 = vmatprep.subr.mxu0 0.0
        %3316 = vmatpush1.msra.mxu0 %v3284
        %3317 = vmatprep.subr.mxu0 0.0
        %3318 = vmatpush1.msra.mxu0 %v3283
        %3319 = vmatprep.subr.mxu0 0.0
        %3320 = vmatpush1.msra.mxu0 %v3282
        %3321 = vmatprep.subr.mxu0 0.0
        %3322 = vmatpush1.msra.mxu0 %v3281
        %3323 = vmatprep.subr.mxu0 0.0
        %3324 = vmatpush1.msra.mxu0 %v3280
        %3325 = vmatprep.subr.mxu0 0.0
        %3326 = vmatpush1.msra.mxu0 %v3279
        %3327 = vmatprep.subr.mxu0 0.0
        %3328 = vmatpush1.msra.mxu0 %v3278
        %3329 = vmatprep.subr.mxu0 0.0
        %3330 = vmatpush1.msra.mxu0 %v3277
        %3331 = vmatprep.subr.mxu0 0.0
        %3332 = vmatpush1.msra.mxu0 %v3276
        %3333 = vmatprep.subr.mxu0 0.0
        %3334 = vmatpush2.msra.mxu0 0.0
        %3335 = vmatprep.subr.mxu0 0.0
        %3336 = vmatpush2.msra.mxu0 0.0
        %3337 = vmatprep.subr.mxu0 0.0
        %3338 = vmatpush2.msra.mxu0 0.0
        %3339 = vmatprep.subr.mxu0 0.0
        %3340 = vmatpush2.msra.mxu0 0.0
        %3341 = vmatprep.subr.mxu0 0.0
        %3342 = vmatpush2.msra.mxu0 0.0
        %3343 = vmatprep.subr.mxu0 0.0
        %3344 = vmatpush2.msra.mxu0 0.0
        %3345 = vmatprep.subr.mxu0 0.0
        %3346 = vmatpush2.msra.mxu0 0.0
        %3347 = vmatprep.subr.mxu0 0.0
        %3348 = vmatpush2.msra.mxu0 0.0
        %3349 = vmatprep.subr.mxu0 0.0
        %3350 = vmatpush2.msra.mxu0 0.0
        %3351 = vmatprep.subr.mxu0 0.0
        %3352 = vmatpush2.msra.mxu0 0.0
        %3353 = vmatprep.subr.mxu0 0.0
        %3354 = vmatpush2.msra.mxu0 0.0
        %3355 = vmatprep.subr.mxu0 0.0
        %3356 = vmatpush2.msra.mxu0 0.0
        %3357 = vmatprep.subr.mxu0 0.0
        %3358 = vmatpush2.msra.mxu0 0.0
        %3359 = vmatprep.subr.mxu0 0.0
        %3360 = vmatpush2.msra.mxu0 0.0
        %3361 = vmatprep.subr.mxu0 0.0
        %3362 = vmatpush2.msra.mxu0 0.0
        %3363 = vmatprep.subr.mxu0 0.0
        %3364 = vmatpush2.msra.mxu0 %v3299
        %3365 = vmatprep.mubr.f32.mxu0 %v3296
        %3366 = vmatmul.mubr.f32.gmra.mxu0 %v3293
        %v3367 = vpop.f32.mrf.mxu0
        %v3368 = vadd.f32 0.0, %v3367
        %v3369 = vpop.f32.mrf.mxu0
        %3370 = vdwg.mxu0
        %v3371 = vadd.f32 %v3274, %v3368
        %s3372 = scalar_lea.vmem %s13, 680
        %v3373 = vld [vmem:[%s3372] sm:$0xff]
        %v3374 = vld [vmem:[%s3372 + $0x8] sm:$0xff]
        %v3375 = vld [vmem:[%s3372 + $0x10] sm:$0xff]
        %v3376 = vld [vmem:[%s3372 + $0x18] sm:$0xff]
        %v3377 = vld [vmem:[%s3372 + $0x20] sm:$0xff]
        %v3378 = vld [vmem:[%s3372 + $0x28] sm:$0xff]
        %v3379 = vld [vmem:[%s3372 + $0x30] sm:$0xff]
        %v3380 = vld [vmem:[%s3372 + $0x38] sm:$0xff]
        %v3381 = vld [vmem:[%s3372 + $0x40] sm:$0xff]
        %v3382 = vld [vmem:[%s3372 + $0x48] sm:$0xff]
        %v3383 = vld [vmem:[%s3372 + $0x50] sm:$0xff]
        %v3384 = vld [vmem:[%s3372 + $0x58] sm:$0xff]
        %v3385 = vld [vmem:[%s3372 + $0x60] sm:$0xff]
        %v3386 = vld [vmem:[%s3372 + $0x68] sm:$0xff]
        %v3387 = vld [vmem:[%s3372 + $0x70] sm:$0xff]
        %v3388 = vld [vmem:[%s3372 + $0x78] sm:$0xff]
        %v3389 = vld [vmem:[%s3372 + $0x80] sm:$0x7]
        %v3390 = vrot.slane %v2886, 5
        %v3391 = vrot.slane %v2887, 5
        %v3393 = vsel %vm535, %v3391, 0
        %v3396 = vsel %vm539, %v3389, 0
        %3398 = vmatprep.subr.mxu0 0.0
        %3399 = vmatpush1.msra.mxu0 %v3388
        %3400 = vmatprep.subr.mxu0 0.0
        %3401 = vmatpush1.msra.mxu0 %v3387
        %3402 = vmatprep.subr.mxu0 0.0
        %3403 = vmatpush1.msra.mxu0 %v3386
        %3404 = vmatprep.subr.mxu0 0.0
        %3405 = vmatpush1.msra.mxu0 %v3385
        %3406 = vmatprep.subr.mxu0 0.0
        %3407 = vmatpush1.msra.mxu0 %v3384
        %3408 = vmatprep.subr.mxu0 0.0
        %3409 = vmatpush1.msra.mxu0 %v3383
        %3410 = vmatprep.subr.mxu0 0.0
        %3411 = vmatpush1.msra.mxu0 %v3382
        %3412 = vmatprep.subr.mxu0 0.0
        %3413 = vmatpush1.msra.mxu0 %v3381
        %3414 = vmatprep.subr.mxu0 0.0
        %3415 = vmatpush1.msra.mxu0 %v3380
        %3416 = vmatprep.subr.mxu0 0.0
        %3417 = vmatpush1.msra.mxu0 %v3379
        %3418 = vmatprep.subr.mxu0 0.0
        %3419 = vmatpush1.msra.mxu0 %v3378
        %3420 = vmatprep.subr.mxu0 0.0
        %3421 = vmatpush1.msra.mxu0 %v3377
        %3422 = vmatprep.subr.mxu0 0.0
        %3423 = vmatpush1.msra.mxu0 %v3376
        %3424 = vmatprep.subr.mxu0 0.0
        %3425 = vmatpush1.msra.mxu0 %v3375
        %3426 = vmatprep.subr.mxu0 0.0
        %3427 = vmatpush1.msra.mxu0 %v3374
        %3428 = vmatprep.subr.mxu0 0.0
        %3429 = vmatpush1.msra.mxu0 %v3373
        %3430 = vmatprep.subr.mxu0 0.0
        %3431 = vmatpush2.msra.mxu0 0.0
        %3432 = vmatprep.subr.mxu0 0.0
        %3433 = vmatpush2.msra.mxu0 0.0
        %3434 = vmatprep.subr.mxu0 0.0
        %3435 = vmatpush2.msra.mxu0 0.0
        %3436 = vmatprep.subr.mxu0 0.0
        %3437 = vmatpush2.msra.mxu0 0.0
        %3438 = vmatprep.subr.mxu0 0.0
        %3439 = vmatpush2.msra.mxu0 0.0
        %3440 = vmatprep.subr.mxu0 0.0
        %3441 = vmatpush2.msra.mxu0 0.0
        %3442 = vmatprep.subr.mxu0 0.0
        %3443 = vmatpush2.msra.mxu0 0.0
        %3444 = vmatprep.subr.mxu0 0.0
        %3445 = vmatpush2.msra.mxu0 0.0
        %3446 = vmatprep.subr.mxu0 0.0
        %3447 = vmatpush2.msra.mxu0 0.0
        %3448 = vmatprep.subr.mxu0 0.0
        %3449 = vmatpush2.msra.mxu0 0.0
        %3450 = vmatprep.subr.mxu0 0.0
        %3451 = vmatpush2.msra.mxu0 0.0
        %3452 = vmatprep.subr.mxu0 0.0
        %3453 = vmatpush2.msra.mxu0 0.0
        %3454 = vmatprep.subr.mxu0 0.0
        %3455 = vmatpush2.msra.mxu0 0.0
        %3456 = vmatprep.subr.mxu0 0.0
        %3457 = vmatpush2.msra.mxu0 0.0
        %3458 = vmatprep.subr.mxu0 0.0
        %3459 = vmatpush2.msra.mxu0 0.0
        %3460 = vmatprep.subr.mxu0 0.0
        %3461 = vmatpush2.msra.mxu0 %v3396
        %3462 = vmatprep.mubr.f32.mxu0 %v3393
        %3463 = vmatmul.mubr.f32.gmra.mxu0 %v3390
        %v3464 = vpop.f32.mrf.mxu0
        %v3465 = vadd.f32 0.0, %v3464
        %v3466 = vpop.f32.mrf.mxu0
        %3467 = vdwg.mxu0
        %v3468 = vadd.f32 %v3371, %v3465
        %s3469 = scalar_lea.vmem %s13, 816
        %v3470 = vld [vmem:[%s3469] sm:$0xff]
        %v3471 = vld [vmem:[%s3469 + $0x8] sm:$0xff]
        %v3472 = vld [vmem:[%s3469 + $0x10] sm:$0xff]
        %v3473 = vld [vmem:[%s3469 + $0x18] sm:$0xff]
        %v3474 = vld [vmem:[%s3469 + $0x20] sm:$0xff]
        %v3475 = vld [vmem:[%s3469 + $0x28] sm:$0xff]
        %v3476 = vld [vmem:[%s3469 + $0x30] sm:$0xff]
        %v3477 = vld [vmem:[%s3469 + $0x38] sm:$0xff]
        %v3478 = vld [vmem:[%s3469 + $0x40] sm:$0xff]
        %v3479 = vld [vmem:[%s3469 + $0x48] sm:$0xff]
        %v3480 = vld [vmem:[%s3469 + $0x50] sm:$0xff]
        %v3481 = vld [vmem:[%s3469 + $0x58] sm:$0xff]
        %v3482 = vld [vmem:[%s3469 + $0x60] sm:$0xff]
        %v3483 = vld [vmem:[%s3469 + $0x68] sm:$0xff]
        %v3484 = vld [vmem:[%s3469 + $0x70] sm:$0xff]
        %v3485 = vld [vmem:[%s3469 + $0x78] sm:$0xff]
        %v3486 = vld [vmem:[%s3469 + $0x80] sm:$0x7]
        %v3487 = vrot.slane %v2886, 6
        %v3488 = vrot.slane %v2887, 6
        %v3490 = vsel %vm535, %v3488, 0
        %v3493 = vsel %vm539, %v3486, 0
        %3495 = vmatprep.subr.mxu0 0.0
        %3496 = vmatpush1.msra.mxu0 %v3485
        %3497 = vmatprep.subr.mxu0 0.0
        %3498 = vmatpush1.msra.mxu0 %v3484
        %3499 = vmatprep.subr.mxu0 0.0
        %3500 = vmatpush1.msra.mxu0 %v3483
        %3501 = vmatprep.subr.mxu0 0.0
        %3502 = vmatpush1.msra.mxu0 %v3482
        %3503 = vmatprep.subr.mxu0 0.0
        %3504 = vmatpush1.msra.mxu0 %v3481
        %3505 = vmatprep.subr.mxu0 0.0
        %3506 = vmatpush1.msra.mxu0 %v3480
        %3507 = vmatprep.subr.mxu0 0.0
        %3508 = vmatpush1.msra.mxu0 %v3479
        %3509 = vmatprep.subr.mxu0 0.0
        %3510 = vmatpush1.msra.mxu0 %v3478
        %3511 = vmatprep.subr.mxu0 0.0
        %3512 = vmatpush1.msra.mxu0 %v3477
        %3513 = vmatprep.subr.mxu0 0.0
        %3514 = vmatpush1.msra.mxu0 %v3476
        %3515 = vmatprep.subr.mxu0 0.0
        %3516 = vmatpush1.msra.mxu0 %v3475
        %3517 = vmatprep.subr.mxu0 0.0
        %3518 = vmatpush1.msra.mxu0 %v3474
        %3519 = vmatprep.subr.mxu0 0.0
        %3520 = vmatpush1.msra.mxu0 %v3473
        %3521 = vmatprep.subr.mxu0 0.0
        %3522 = vmatpush1.msra.mxu0 %v3472
        %3523 = vmatprep.subr.mxu0 0.0
        %3524 = vmatpush1.msra.mxu0 %v3471
        %3525 = vmatprep.subr.mxu0 0.0
        %3526 = vmatpush1.msra.mxu0 %v3470
        %3527 = vmatprep.subr.mxu0 0.0
        %3528 = vmatpush2.msra.mxu0 0.0
        %3529 = vmatprep.subr.mxu0 0.0
        %3530 = vmatpush2.msra.mxu0 0.0
        %3531 = vmatprep.subr.mxu0 0.0
        %3532 = vmatpush2.msra.mxu0 0.0
        %3533 = vmatprep.subr.mxu0 0.0
        %3534 = vmatpush2.msra.mxu0 0.0
        %3535 = vmatprep.subr.mxu0 0.0
        %3536 = vmatpush2.msra.mxu0 0.0
        %3537 = vmatprep.subr.mxu0 0.0
        %3538 = vmatpush2.msra.mxu0 0.0
        %3539 = vmatprep.subr.mxu0 0.0
        %3540 = vmatpush2.msra.mxu0 0.0
        %3541 = vmatprep.subr.mxu0 0.0
        %3542 = vmatpush2.msra.mxu0 0.0
        %3543 = vmatprep.subr.mxu0 0.0
        %3544 = vmatpush2.msra.mxu0 0.0
        %3545 = vmatprep.subr.mxu0 0.0
        %3546 = vmatpush2.msra.mxu0 0.0
        %3547 = vmatprep.subr.mxu0 0.0
        %3548 = vmatpush2.msra.mxu0 0.0
        %3549 = vmatprep.subr.mxu0 0.0
        %3550 = vmatpush2.msra.mxu0 0.0
        %3551 = vmatprep.subr.mxu0 0.0
        %3552 = vmatpush2.msra.mxu0 0.0
        %3553 = vmatprep.subr.mxu0 0.0
        %3554 = vmatpush2.msra.mxu0 0.0
        %3555 = vmatprep.subr.mxu0 0.0
        %3556 = vmatpush2.msra.mxu0 0.0
        %3557 = vmatprep.subr.mxu0 0.0
        %3558 = vmatpush2.msra.mxu0 %v3493
        %3559 = vmatprep.mubr.f32.mxu0 %v3490
        %3560 = vmatmul.mubr.f32.gmra.mxu0 %v3487
        %v3561 = vpop.f32.mrf.mxu0
        %v3562 = vadd.f32 0.0, %v3561
        %v3563 = vpop.f32.mrf.mxu0
        %3564 = vdwg.mxu0
        %v3565 = vadd.f32 %v3468, %v3562
        %s3566 = scalar_lea.vmem %s13, 952
        %v3567 = vld [vmem:[%s3566] sm:$0xff]
        %v3568 = vld [vmem:[%s3566 + $0x8] sm:$0xff]
        %v3569 = vld [vmem:[%s3566 + $0x10] sm:$0xff]
        %v3570 = vld [vmem:[%s3566 + $0x18] sm:$0xff]
        %v3571 = vld [vmem:[%s3566 + $0x20] sm:$0xff]
        %v3572 = vld [vmem:[%s3566 + $0x28] sm:$0xff]
        %v3573 = vld [vmem:[%s3566 + $0x30] sm:$0xff]
        %v3574 = vld [vmem:[%s3566 + $0x38] sm:$0xff]
        %v3575 = vld [vmem:[%s3566 + $0x40] sm:$0xff]
        %v3576 = vld [vmem:[%s3566 + $0x48] sm:$0xff]
        %v3577 = vld [vmem:[%s3566 + $0x50] sm:$0xff]
        %v3578 = vld [vmem:[%s3566 + $0x58] sm:$0xff]
        %v3579 = vld [vmem:[%s3566 + $0x60] sm:$0xff]
        %v3580 = vld [vmem:[%s3566 + $0x68] sm:$0xff]
        %v3581 = vld [vmem:[%s3566 + $0x70] sm:$0xff]
        %v3582 = vld [vmem:[%s3566 + $0x78] sm:$0xff]
        %v3583 = vld [vmem:[%s3566 + $0x80] sm:$0x7]
        %v3584 = vrot.slane %v2886, 7
        %v3585 = vrot.slane %v2887, 7
        %v3587 = vsel %vm535, %v3585, 0
        %v3590 = vsel %vm539, %v3583, 0
        %3592 = vmatprep.subr.mxu0 0.0
        %3593 = vmatpush1.msra.mxu0 %v3582
        %3594 = vmatprep.subr.mxu0 0.0
        %3595 = vmatpush1.msra.mxu0 %v3581
        %3596 = vmatprep.subr.mxu0 0.0
        %3597 = vmatpush1.msra.mxu0 %v3580
        %3598 = vmatprep.subr.mxu0 0.0
        %3599 = vmatpush1.msra.mxu0 %v3579
        %3600 = vmatprep.subr.mxu0 0.0
        %3601 = vmatpush1.msra.mxu0 %v3578
        %3602 = vmatprep.subr.mxu0 0.0
        %3603 = vmatpush1.msra.mxu0 %v3577
        %3604 = vmatprep.subr.mxu0 0.0
        %3605 = vmatpush1.msra.mxu0 %v3576
        %3606 = vmatprep.subr.mxu0 0.0
        %3607 = vmatpush1.msra.mxu0 %v3575
        %3608 = vmatprep.subr.mxu0 0.0
        %3609 = vmatpush1.msra.mxu0 %v3574
        %3610 = vmatprep.subr.mxu0 0.0
        %3611 = vmatpush1.msra.mxu0 %v3573
        %3612 = vmatprep.subr.mxu0 0.0
        %3613 = vmatpush1.msra.mxu0 %v3572
        %3614 = vmatprep.subr.mxu0 0.0
        %3615 = vmatpush1.msra.mxu0 %v3571
        %3616 = vmatprep.subr.mxu0 0.0
        %3617 = vmatpush1.msra.mxu0 %v3570
        %3618 = vmatprep.subr.mxu0 0.0
        %3619 = vmatpush1.msra.mxu0 %v3569
        %3620 = vmatprep.subr.mxu0 0.0
        %3621 = vmatpush1.msra.mxu0 %v3568
        %3622 = vmatprep.subr.mxu0 0.0
        %3623 = vmatpush1.msra.mxu0 %v3567
        %3624 = vmatprep.subr.mxu0 0.0
        %3625 = vmatpush2.msra.mxu0 0.0
        %3626 = vmatprep.subr.mxu0 0.0
        %3627 = vmatpush2.msra.mxu0 0.0
        %3628 = vmatprep.subr.mxu0 0.0
        %3629 = vmatpush2.msra.mxu0 0.0
        %3630 = vmatprep.subr.mxu0 0.0
        %3631 = vmatpush2.msra.mxu0 0.0
        %3632 = vmatprep.subr.mxu0 0.0
        %3633 = vmatpush2.msra.mxu0 0.0
        %3634 = vmatprep.subr.mxu0 0.0
        %3635 = vmatpush2.msra.mxu0 0.0
        %3636 = vmatprep.subr.mxu0 0.0
        %3637 = vmatpush2.msra.mxu0 0.0
        %3638 = vmatprep.subr.mxu0 0.0
        %3639 = vmatpush2.msra.mxu0 0.0
        %3640 = vmatprep.subr.mxu0 0.0
        %3641 = vmatpush2.msra.mxu0 0.0
        %3642 = vmatprep.subr.mxu0 0.0
        %3643 = vmatpush2.msra.mxu0 0.0
        %3644 = vmatprep.subr.mxu0 0.0
        %3645 = vmatpush2.msra.mxu0 0.0
        %3646 = vmatprep.subr.mxu0 0.0
        %3647 = vmatpush2.msra.mxu0 0.0
        %3648 = vmatprep.subr.mxu0 0.0
        %3649 = vmatpush2.msra.mxu0 0.0
        %3650 = vmatprep.subr.mxu0 0.0
        %3651 = vmatpush2.msra.mxu0 0.0
        %3652 = vmatprep.subr.mxu0 0.0
        %3653 = vmatpush2.msra.mxu0 0.0
        %3654 = vmatprep.subr.mxu0 0.0
        %3655 = vmatpush2.msra.mxu0 %v3590
        %3656 = vmatprep.mubr.f32.mxu0 %v3587
        %3657 = vmatmul.mubr.f32.gmra.mxu0 %v3584
        %v3658 = vpop.f32.mrf.mxu0
        %v3659 = vadd.f32 0.0, %v3658
        %v3660 = vpop.f32.mrf.mxu0
        %3661 = vdwg.mxu0
        %v3662 = vadd.f32 %v3565, %v3659
        %v3663 = vmul.f32 %v3662, 0.5
        %v3664 = vmul.f32 %v3662, 0.70710677
        %v3665 = verf.f32.pop %v3664
        %v3666 = vadd.f32 %v3665, 1.0
        %v3667 = vmul.f32 %v3663, %v3666
        %3668 = vst [vmem:[%s484] sm:$0x1] %v3667
        %s3669 = sand.u32 %s357, 1
        %s3670 = scalar_lea.sflag [#allocation5], %s3669
        %s3671 = sand.u32 %s357, 1
        %s3672 = scalar_lea.vmem [#allocation4], %s3671
        // Predicated region
        $region81: #{bruce_cnn_cell_forward.1} parent=79 // pred_check
          %p3673 = pneg %p367
        $region82: #{bruce_cnn_cell_forward.1} parent=79 // pred_check_branch
          %3675 = sbr.rel (%p3673) target = $region84
        $region83: #{bruce_cnn_cell_forward.1} parent=79 // pred_region
          %s3677 = ssub.s32 16, 16
          %3678 = vsyncadd %s3670, %s3677
          %s3679 = smul.addr %s29, 16
          %s3680 = scalar_lea.hbm %s15, %s3679
          %s3682 = sshll.u32 %s3672, 4
          %s3683 = int_to_ptr.vmem [resolvable:$true] %s3682
          %3685 = dma.vmem_to_hbm [thread:$0]  %s3683, 16, %s3680, %s3670
        $region84: #{bruce_cnn_cell_forward.1} parent=79 // pred_fallthru
          _
      $region80: #{bruce_cnn_cell_forward.1} parent=5 // pred_fallthru
        _
      %p3686 = scmp.le.s32.totalorder 2, %s24
      // Predicated region
      $region85: #{bruce_cnn_cell_forward.1} parent=5 // pred_check
        %p3687 = pneg %p3686
      $region86: #{bruce_cnn_cell_forward.1} parent=5 // pred_check_branch
        %3689 = sbr.rel (%p3687) target = $region88
      $region87: #{bruce_cnn_cell_forward.1} parent=5 // pred_region
        %s3690 = ssub.s32 %s24, 2
        // Predicated region
        $region89: #{bruce_cnn_cell_forward.1} parent=87 // pred_check
          %p3691 = pneg %p373
        $region90: #{bruce_cnn_cell_forward.1} parent=87 // pred_check_branch
          %3693 = sbr.rel (%p3691) target = $region92
        $region91: #{bruce_cnn_cell_forward.1} parent=87 // pred_region
          %s3694 = sand.u32 %s358, 1
          %s3695 = scalar_lea.sflag [#allocation5], %s3694
          %s3696 = sand.u32 %s358, 1
          %s3697 = scalar_lea.vmem [#allocation4], %s3696
          %3698 = dma.done %s3695, 16
        $region92: #{bruce_cnn_cell_forward.1} parent=87 // pred_fallthru
          _
      $region88: #{bruce_cnn_cell_forward.1} parent=5 // pred_fallthru
        _
    $region6: #{bruce_cnn_cell_forward.1} parent=1 // loop_footer
      %s28 = sadd.s32 1, %s24
    $region7: #{bruce_cnn_cell_forward.1} parent=1 // loop_footer_branch
      %23 = sbr.rel target = $region3
    $region8: #{bruce_cnn_cell_forward.1} parent=1 // loop_exit
      _
    %3699 = vsyncpa [#allocation5], 1
    %s3700 = scalar_lea.sflag [#allocation5], 1
    %3701 = vsyncpa %s3700, 1

</llo_original>
